<compile_context>
chip_gen: v5e
topology: v5e:2x2
jax: 0.10.0
libtpu: 0.0.40
codegen_flags: <defaults>
</compile_context>

<pallas_src>
import functools

import jax
import jax.numpy as jnp
from jax import lax
from jax.experimental import pallas as pl
from jax.experimental.pallas import tpu as pltpu

_EPS = 1e-5


# ----------------------------- in-kernel helpers --------------------------- #

def _zero_border(xp_ref):
    """Zero only the 1-pixel padding border of an (N, H+2, W+2, C) scratch.

    The interior is fully overwritten right after, so a full-buffer zero would
    only burn store slots (perf feedback item 2)."""
    n, hp, wp, c = xp_ref.shape
    xp_ref[:, pl.ds(0, 1), :, :] = jnp.zeros((n, 1, wp, c), xp_ref.dtype)
    xp_ref[:, pl.ds(hp - 1, 1), :, :] = jnp.zeros((n, 1, wp, c), xp_ref.dtype)
    xp_ref[:, :, pl.ds(0, 1), :] = jnp.zeros((n, hp, 1, c), xp_ref.dtype)
    xp_ref[:, :, pl.ds(wp - 1, 1), :] = jnp.zeros((n, hp, 1, c), xp_ref.dtype)


def _conv3x3(xp_ref, cols_ref, w_ref, b_ref):
    """3x3 'SAME' conv over the WHOLE batch as one MXU matmul (M = N*H*W).

    xp_ref:   (N, H+2, W+2, C) f32  zero-padded activations (interior filled)
    cols_ref: (N*H*W, 9*C)     bf16 im2col scratch, tap-major K layout
    w_ref:    (9*C, Cout)      bf16
    b_ref:    (1, Cout)        f32
    returns   (N*H*W, Cout)    f32
    """
    n_imgs, hp, wp, c = xp_ref.shape
    h, w = hp - 2, wp - 2
    hw = h * w
    for n in range(n_imgs):
        for t in range(9):
            dy, dx = divmod(t, 3)
            tap = xp_ref[n, pl.ds(dy, h), pl.ds(dx, w), :]            # (h, w, c)
            # bf16 cast fused into the (unavoidable) tap write; at production
            # channel counts (C a multiple of 128) this store is lane-dense.
            cols_ref[pl.ds(n * hw, hw), pl.ds(t * c, c)] = (
                tap.reshape(hw, c).astype(cols_ref.dtype))
    z = jnp.dot(cols_ref[...], w_ref[...], preferred_element_type=jnp.float32)
    return z + b_ref[...]


def _bn_relu_train(z, gamma, beta, inv_count, eps):
    """Training-mode BatchNorm (two-pass mean/var, biased variance) + ReLU."""
    # TODO(synk): nn.BatchNorm2d running_mean/running_var momentum updates are
    # not emitted (forward output only).
    mean = jnp.sum(z, axis=0, keepdims=True) * inv_count
    cen = z - mean
    var = jnp.sum(cen * cen, axis=0, keepdims=True) * inv_count
    scale = gamma * lax.rsqrt(var + eps)            # rsqrt -> EUP slot
    shift = beta - mean * scale
    return jnp.maximum(z * scale + shift, 0.0)


# ------------------------------ fused kernel ------------------------------- #

def _down_fused_kernel(x_ref, w1_ref, b1_ref, g1_ref, be1_ref,
                       w2_ref, b2_ref, g2_ref, be2_ref,
                       out_ref,
                       xp1_ref, cols1_ref, xp2_ref, cols2_ref, *, eps):
    # x_ref: (N, H2, 2, W2, 2*Cin) -- the input reshaped (metadata only) so the
    #        2x2 pool window lives in dim 2 (row parity) and the lane-folded
    #        dim 4 (col parity x channels).
    n_imgs, h2, _, w2, _ = x_ref.shape
    cin = xp1_ref.shape[-1]
    cmid = xp2_ref.shape[-1]
    hw = h2 * w2
    inv_count = 1.0 / float(n_imgs * hw)

    _zero_border(xp1_ref)
    _zero_border(xp2_ref)

    # --- fused 2x2 max-pool -> interior of the conv1 padded input ---
    for n in range(n_imgs):
        xn = x_ref[n]                                        # (h2, 2, w2, 2cin)
        rows = jnp.maximum(xn[:, 0], xn[:, 1])               # (h2, w2, 2cin)
        pooled = jnp.maximum(rows[:, :, :cin], rows[:, :, cin:])
        xp1_ref[n, pl.ds(1, h2), pl.ds(1, w2), :] = pooled

    # --- conv1 + bias (one M=N*HW matmul), BN1 batch stats + ReLU (in VMEM) ---
    z1 = _conv3x3(xp1_ref, cols1_ref, w1_ref, b1_ref)        # (N*HW, cmid) f32
    a1 = _bn_relu_train(z1, g1_ref[...], be1_ref[...], inv_count, eps)

    # --- a1 -> interior of the conv2 padded input (never leaves VMEM) ---
    for n in range(n_imgs):
        xp2_ref[n, pl.ds(1, h2), pl.ds(1, w2), :] = (
            a1[n * hw:(n + 1) * hw, :].reshape(h2, w2, cmid))

    # --- conv2 + bias, BN2 batch stats + ReLU -> output ---
    z2 = _conv3x3(xp2_ref, cols2_ref, w2_ref, b2_ref)        # (N*HW, cout) f32
    # At Cout=8 this store is lane-masked; at production Cout (multiple of 128)
    # the same layout is fully lane-dense.  The 4 KB output did not justify an
    # in-kernel relayout to a 512-wide slab.
    out_ref[...] = _bn_relu_train(z2, g2_ref[...], be2_ref[...], inv_count, eps)


# --------------------------------- wrapper ---------------------------------- #

def down_forward(x_nchw, params, eps=_EPS):
    """PyTorch `Down` forward: (N, Cin, H, W) -> (N, Cout, H//2, W//2)."""
    n, cin, h, w = x_nchw.shape
    h2, w2 = h // 2, w // 2
    hw = h2 * w2
    cmid = params["w1"].shape[0]
    cout = params["w2"].shape[0]

    # Layout plumbing (XLA, outside the kernel): NCHW -> NHWC, expose the 2x2
    # pool phases (metadata-only reshape), OIHW -> tap-major (9*Cin, Cout) bf16.
    x_nhwc = jnp.transpose(x_nchw, (0, 2, 3, 1))
    xr = x_nhwc.reshape(n, h2, 2, w2, 2 * cin)
    w1c = jnp.transpose(params["w1"], (2, 3, 1, 0)).reshape(9 * cin, cmid)
    w1c = w1c.astype(jnp.bfloat16)
    w2c = jnp.transpose(params["w2"], (2, 3, 1, 0)).reshape(9 * cmid, cout)
    w2c = w2c.astype(jnp.bfloat16)
    b1 = params["b1"].reshape(1, cmid).astype(jnp.float32)
    g1 = params["g1"].reshape(1, cmid).astype(jnp.float32)
    be1 = params["be1"].reshape(1, cmid).astype(jnp.float32)
    b2 = params["b2"].reshape(1, cout).astype(jnp.float32)
    g2 = params["g2"].reshape(1, cout).astype(jnp.float32)
    be2 = params["be2"].reshape(1, cout).astype(jnp.float32)

    kernel = functools.partial(_down_fused_kernel, eps=eps)
    out_flat = pl.pallas_call(
        kernel,
        out_shape=jax.ShapeDtypeStruct((n * hw, cout), jnp.float32),
        grid_spec=pltpu.PrefetchScalarGridSpec(
            num_scalar_prefetch=0,
            # Full-batch BN stats are computed in-kernel, so the whole (tiny)
            # batch runs as one grid step; at production sizes a halo'd
            # spatial-row axis + separate stats pass would be reintroduced for
            # megacore sharding / pipelining and v7x VMEM budgeting.
            grid=(1,),
            in_specs=[
                pl.BlockSpec((n, h2, 2, w2, 2 * cin), lambda i: (0, 0, 0, 0, 0)),
                pl.BlockSpec((9 * cin, cmid), lambda i: (0, 0)),
                pl.BlockSpec((1, cmid), lambda i: (0, 0)),
                pl.BlockSpec((1, cmid), lambda i: (0, 0)),
                pl.BlockSpec((1, cmid), lambda i: (0, 0)),
                pl.BlockSpec((9 * cmid, cout), lambda i: (0, 0)),
                pl.BlockSpec((1, cout), lambda i: (0, 0)),
                pl.BlockSpec((1, cout), lambda i: (0, 0)),
                pl.BlockSpec((1, cout), lambda i: (0, 0)),
            ],
            out_specs=pl.BlockSpec((n * hw, cout), lambda i: (0, 0)),
            scratch_shapes=[
                pltpu.VMEM((n, h2 + 2, w2 + 2, cin), jnp.float32),   # padded pool
                pltpu.VMEM((n * hw, 9 * cin), jnp.bfloat16),         # conv1 cols
                pltpu.VMEM((n, h2 + 2, w2 + 2, cmid), jnp.float32),  # padded act1
                pltpu.VMEM((n * hw, 9 * cmid), jnp.bfloat16),        # conv2 cols
            ]),
        compiler_params=pltpu.CompilerParams(
            dimension_semantics=("arbitrary",),
            vmem_limit_bytes=32 * 1024 * 1024),   # fits v7x's smaller VMEM
    )(xr, w1c, b1, g1, be1, w2c, b2, g2, be2)

    # (N*H2*W2, Cout) row-major == NHWC; back to PyTorch NCHW.
    return jnp.transpose(out_flat.reshape(n, h2, w2, cout), (0, 3, 1, 2))


# ----------------------------- pure-JAX reference --------------------------- #

def down_reference(x_nchw, params, eps=_EPS, matmul_dtype=None):
    """f32 NCHW reference with PyTorch semantics; if matmul_dtype is set, the
    conv operands are rounded through that dtype (mirrors the kernel's bf16
    MXU operands with f32 accumulation)."""
    def rnd(v):
        return v.astype(matmul_dtype).astype(jnp.float32) if matmul_dtype else v

    p = lax.reduce_window(x_nchw, -jnp.inf, lax.max,
                          (1, 1, 2, 2), (1, 1, 2, 2), "VALID")

    def block(h, w, b, g, be):
        z = lax.conv_general_dilated(
            rnd(h), rnd(w), (1, 1), "SAME",
            dimension_numbers=("NCHW", "OIHW", "NCHW"),
            preferred_element_type=jnp.float32) + b.reshape(1, -1, 1, 1)
        m = jnp.mean(z, axis=(0, 2, 3), keepdims=True)
        v = jnp.var(z, axis=(0, 2, 3), keepdims=True)
        zn = (z - m) / jnp.sqrt(v + eps) * g.reshape(1, -1, 1, 1) \
            + be.reshape(1, -1, 1, 1)
        return jnp.maximum(zn, 0.0)

    h1 = block(p, params["w1"], params["b1"], params["g1"], params["be1"])
    return block(h1, params["w2"], params["b2"], params["g2"], params["be2"])


# ----------------------------------- main ----------------------------------- #

if __name__ == "__main__":
    key = jax.random.PRNGKey(0)
    ks = jax.random.split(key, 5)

    N, Cin, H, W = 2, 4, 16, 16      # Down(in_channels=4, out_channels=8)
    Cout = 8

    # PyTorch-layout input and parameters (NCHW / OIHW).
    x = jax.random.normal(ks[0], (N, Cin, H, W), jnp.float32)
    params = dict(
        w1=jax.random.normal(ks[1], (Cout, Cin, 3, 3), jnp.float32) * 0.1,
        b1=jax.random.normal(ks[2], (Cout,), jnp.float32) * 0.1,
        g1=jnp.ones((Cout,), jnp.float32),      # BN gamma init (PyTorch: ones)
        be1=jnp.zeros((Cout,), jnp.float32),    # BN beta init (PyTorch: zeros)
        w2=jax.random.normal(ks[3], (Cout, Cout, 3, 3), jnp.float32) * 0.1,
        b2=jax.random.normal(ks[4], (Cout,), jnp.float32) * 0.1,
        g2=jnp.ones((Cout,), jnp.float32),
        be2=jnp.zeros((Cout,), jnp.float32),
    )

    out = jax.jit(down_forward)(x, params)
    jax.block_until_ready(out)
    assert out.shape == (N, Cout, H // 2, W // 2), out.shape

    # Strict check vs a reference whose conv operands are rounded to bf16
    # exactly like the kernel's MXU operands (validates the kernel logic).
    ref_bf16 = down_reference(x, params, matmul_dtype=jnp.bfloat16)
    err_b = float(jnp.max(jnp.abs(out - ref_bf16)))
    assert jnp.allclose(out, ref_bf16, atol=3e-2, rtol=3e-2), err_b

    # Looser check vs the exact f32 (PyTorch-semantics) reference; the gap is
    # only the documented bf16 rounding of the matmul operands.
    ref_f32 = down_reference(x, params)
    err_f = float(jnp.max(jnp.abs(out - ref_f32)))
    assert jnp.allclose(out, ref_f32, atol=1e-1, rtol=1e-1), err_f

    print("KERNEL_OK")
</pallas_src>

<mosaic_0001>
module attributes {stable_mosaic.version = 11 : i64} {
  func.func @_down_fused_kernel(%arg0: i32, %arg1: memref<2x8x2x8x8xf32, #tpu.memory_space<vmem>>, %arg2: memref<36x8xbf16, #tpu.memory_space<vmem>>, %arg3: memref<1x8xf32, #tpu.memory_space<vmem>>, %arg4: memref<1x8xf32, #tpu.memory_space<vmem>>, %arg5: memref<1x8xf32, #tpu.memory_space<vmem>>, %arg6: memref<72x8xbf16, #tpu.memory_space<vmem>>, %arg7: memref<1x8xf32, #tpu.memory_space<vmem>>, %arg8: memref<1x8xf32, #tpu.memory_space<vmem>>, %arg9: memref<1x8xf32, #tpu.memory_space<vmem>>, %arg10: memref<128x8xf32, #tpu.memory_space<vmem>>, %arg11: memref<2x10x10x4xf32, #tpu.memory_space<vmem>>, %arg12: memref<128x36xbf16, #tpu.memory_space<vmem>>, %arg13: memref<2x10x10x8xf32, #tpu.memory_space<vmem>>, %arg14: memref<128x72xbf16, #tpu.memory_space<vmem>>) attributes {dimension_semantics = [#tpu.dimension_semantics<arbitrary>], iteration_bounds = array<i64: 1>, scalar_prefetch = 0 : i64, scratch_operands = 4 : i64, tpu.core_type = #tpu.core_type<tc>, window_params = [{pipeline_mode = #tpu.pipeline_mode<synchronous>, transform_indices = @transform_0, window_bounds = array<i64: 2, 8, 2, 8, 8>}, {pipeline_mode = #tpu.pipeline_mode<synchronous>, transform_indices = @transform_1, window_bounds = array<i64: 36, 8>}, {pipeline_mode = #tpu.pipeline_mode<synchronous>, transform_indices = @transform_2, window_bounds = array<i64: 1, 8>}, {pipeline_mode = #tpu.pipeline_mode<synchronous>, transform_indices = @transform_3, window_bounds = array<i64: 1, 8>}, {pipeline_mode = #tpu.pipeline_mode<synchronous>, transform_indices = @transform_4, window_bounds = array<i64: 1, 8>}, {pipeline_mode = #tpu.pipeline_mode<synchronous>, transform_indices = @transform_5, window_bounds = array<i64: 72, 8>}, {pipeline_mode = #tpu.pipeline_mode<synchronous>, transform_indices = @transform_6, window_bounds = array<i64: 1, 8>}, {pipeline_mode = #tpu.pipeline_mode<synchronous>, transform_indices = @transform_7, window_bounds = array<i64: 1, 8>}, {pipeline_mode = #tpu.pipeline_mode<synchronous>, transform_indices = @transform_8, window_bounds = array<i64: 1, 8>}, {pipeline_mode = #tpu.pipeline_mode<synchronous>, transform_indices = @transform_9, window_bounds = array<i64: 128, 8>}]} {
    %cst = arith.constant 0.000000e+00 : f32
    %0 = vector.broadcast %cst : f32 to vector<2x1x10x4xf32>
    %c0 = arith.constant 0 : index
    %c0_0 = arith.constant 0 : index
    %c0_1 = arith.constant 0 : index
    %c0_2 = arith.constant 0 : index
    %1 = vector.load %arg11[%c0, %c0_0, %c0_1, %c0_2] : memref<2x10x10x4xf32, #tpu.memory_space<vmem>>, vector<2x1x10x4xf32>
    tpu.vector_store %arg11[%c0, %c0_0, %c0_1, %c0_2], %0 {strides = array<i32>} : memref<2x10x10x4xf32, #tpu.memory_space<vmem>>, vector<2x1x10x4xf32>,
    %cst_3 = arith.constant 0.000000e+00 : f32
    %2 = vector.broadcast %cst_3 : f32 to vector<2x1x10x4xf32>
    %c0_4 = arith.constant 0 : index
    %c9 = arith.constant 9 : index
    %c0_5 = arith.constant 0 : index
    %c0_6 = arith.constant 0 : index
    %3 = vector.load %arg11[%c0_4, %c9, %c0_5, %c0_6] : memref<2x10x10x4xf32, #tpu.memory_space<vmem>>, vector<2x1x10x4xf32>
    tpu.vector_store %arg11[%c0_4, %c9, %c0_5, %c0_6], %2 {strides = array<i32>} : memref<2x10x10x4xf32, #tpu.memory_space<vmem>>, vector<2x1x10x4xf32>,
    %cst_7 = arith.constant 0.000000e+00 : f32
    %4 = vector.broadcast %cst_7 : f32 to vector<2x10x1x4xf32>
    %c0_8 = arith.constant 0 : index
    %c0_9 = arith.constant 0 : index
    %c0_10 = arith.constant 0 : index
    %c0_11 = arith.constant 0 : index
    %5 = vector.load %arg11[%c0_8, %c0_9, %c0_10, %c0_11] : memref<2x10x10x4xf32, #tpu.memory_space<vmem>>, vector<2x10x1x4xf32>
    tpu.vector_store %arg11[%c0_8, %c0_9, %c0_10, %c0_11], %4 {strides = array<i32>} : memref<2x10x10x4xf32, #tpu.memory_space<vmem>>, vector<2x10x1x4xf32>,
    %cst_12 = arith.constant 0.000000e+00 : f32
    %6 = vector.broadcast %cst_12 : f32 to vector<2x10x1x4xf32>
    %c0_13 = arith.constant 0 : index
    %c0_14 = arith.constant 0 : index
    %c9_15 = arith.constant 9 : index
    %c0_16 = arith.constant 0 : index
    %7 = vector.load %arg11[%c0_13, %c0_14, %c9_15, %c0_16] : memref<2x10x10x4xf32, #tpu.memory_space<vmem>>, vector<2x10x1x4xf32>
    tpu.vector_store %arg11[%c0_13, %c0_14, %c9_15, %c0_16], %6 {strides = array<i32>} : memref<2x10x10x4xf32, #tpu.memory_space<vmem>>, vector<2x10x1x4xf32>,
    %cst_17 = arith.constant 0.000000e+00 : f32
    %8 = vector.broadcast %cst_17 : f32 to vector<2x1x10x8xf32>
    %c0_18 = arith.constant 0 : index
    %c0_19 = arith.constant 0 : index
    %c0_20 = arith.constant 0 : index
    %c0_21 = arith.constant 0 : index
    %9 = vector.load %arg13[%c0_18, %c0_19, %c0_20, %c0_21] : memref<2x10x10x8xf32, #tpu.memory_space<vmem>>, vector<2x1x10x8xf32>
    tpu.vector_store %arg13[%c0_18, %c0_19, %c0_20, %c0_21], %8 {strides = array<i32>} : memref<2x10x10x8xf32, #tpu.memory_space<vmem>>, vector<2x1x10x8xf32>,
    %cst_22 = arith.constant 0.000000e+00 : f32
    %10 = vector.broadcast %cst_22 : f32 to vector<2x1x10x8xf32>
    %c0_23 = arith.constant 0 : index
    %c9_24 = arith.constant 9 : index
    %c0_25 = arith.constant 0 : index
    %c0_26 = arith.constant 0 : index
    %11 = vector.load %arg13[%c0_23, %c9_24, %c0_25, %c0_26] : memref<2x10x10x8xf32, #tpu.memory_space<vmem>>, vector<2x1x10x8xf32>
    tpu.vector_store %arg13[%c0_23, %c9_24, %c0_25, %c0_26], %10 {strides = array<i32>} : memref<2x10x10x8xf32, #tpu.memory_space<vmem>>, vector<2x1x10x8xf32>,
    %cst_27 = arith.constant 0.000000e+00 : f32
    %12 = vector.broadcast %cst_27 : f32 to vector<2x10x1x8xf32>
    %c0_28 = arith.constant 0 : index
    %c0_29 = arith.constant 0 : index
    %c0_30 = arith.constant 0 : index
    %c0_31 = arith.constant 0 : index
    %13 = vector.load %arg13[%c0_28, %c0_29, %c0_30, %c0_31] : memref<2x10x10x8xf32, #tpu.memory_space<vmem>>, vector<2x10x1x8xf32>
    tpu.vector_store %arg13[%c0_28, %c0_29, %c0_30, %c0_31], %12 {strides = array<i32>} : memref<2x10x10x8xf32, #tpu.memory_space<vmem>>, vector<2x10x1x8xf32>,
    %cst_32 = arith.constant 0.000000e+00 : f32
    %14 = vector.broadcast %cst_32 : f32 to vector<2x10x1x8xf32>
    %c0_33 = arith.constant 0 : index
    %c0_34 = arith.constant 0 : index
    %c9_35 = arith.constant 9 : index
    %c0_36 = arith.constant 0 : index
    %15 = vector.load %arg13[%c0_33, %c0_34, %c9_35, %c0_36] : memref<2x10x10x8xf32, #tpu.memory_space<vmem>>, vector<2x10x1x8xf32>
    tpu.vector_store %arg13[%c0_33, %c0_34, %c9_35, %c0_36], %14 {strides = array<i32>} : memref<2x10x10x8xf32, #tpu.memory_space<vmem>>, vector<2x10x1x8xf32>,
    %c0_37 = arith.constant 0 : index
    %c0_38 = arith.constant 0 : index
    %c0_39 = arith.constant 0 : index
    %c0_40 = arith.constant 0 : index
    %c0_41 = arith.constant 0 : index
    %16 = vector.load %arg1[%c0_37, %c0_38, %c0_39, %c0_40, %c0_41] : memref<2x8x2x8x8xf32, #tpu.memory_space<vmem>>, vector<1x8x2x8x8xf32>
    %17 = vector.shape_cast %16 : vector<1x8x2x8x8xf32> to vector<8x2x8x8xf32>
    %18 = vector.extract_strided_slice %17 {offsets = [0, 0, 0, 0], sizes = [8, 1, 8, 8], strides = [1, 1, 1, 1]} : vector<8x2x8x8xf32> to vector<8x1x8x8xf32>
    %19 = vector.shape_cast %18 : vector<8x1x8x8xf32> to vector<8x8x8xf32>
    %20 = vector.extract_strided_slice %17 {offsets = [0, 1, 0, 0], sizes = [8, 1, 8, 8], strides = [1, 1, 1, 1]} : vector<8x2x8x8xf32> to vector<8x1x8x8xf32>
    %21 = vector.shape_cast %20 : vector<8x1x8x8xf32> to vector<8x8x8xf32>
    %22 = arith.maximumf %19, %21 : vector<8x8x8xf32>
    %23 = vector.extract_strided_slice %22 {offsets = [0, 0, 0], sizes = [8, 8, 4], strides = [1, 1, 1]} : vector<8x8x8xf32> to vector<8x8x4xf32>
    %24 = vector.extract_strided_slice %22 {offsets = [0, 0, 4], sizes = [8, 8, 4], strides = [1, 1, 1]} : vector<8x8x8xf32> to vector<8x8x4xf32>
    %25 = arith.maximumf %23, %24 : vector<8x8x4xf32>
    %c0_42 = arith.constant 0 : index
    %c1 = arith.constant 1 : index
    %c1_43 = arith.constant 1 : index
    %c0_44 = arith.constant 0 : index
    %26 = vector.load %arg11[%c0_42, %c1, %c1_43, %c0_44] : memref<2x10x10x4xf32, #tpu.memory_space<vmem>>, vector<1x8x8x4xf32>
    %27 = vector.shape_cast %26 : vector<1x8x8x4xf32> to vector<8x8x4xf32>
    %28 = vector.shape_cast %25 : vector<8x8x4xf32> to vector<1x8x8x4xf32>
    tpu.vector_store %arg11[%c0_42, %c1, %c1_43, %c0_44], %28 {strides = array<i32>} : memref<2x10x10x4xf32, #tpu.memory_space<vmem>>, vector<1x8x8x4xf32>,
    %c1_45 = arith.constant 1 : index
    %c0_46 = arith.constant 0 : index
    %c0_47 = arith.constant 0 : index
    %c0_48 = arith.constant 0 : index
    %c0_49 = arith.constant 0 : index
    %29 = vector.load %arg1[%c1_45, %c0_46, %c0_47, %c0_48, %c0_49] : memref<2x8x2x8x8xf32, #tpu.memory_space<vmem>>, vector<1x8x2x8x8xf32>
    %30 = vector.shape_cast %29 : vector<1x8x2x8x8xf32> to vector<8x2x8x8xf32>
    %31 = vector.extract_strided_slice %30 {offsets = [0, 0, 0, 0], sizes = [8, 1, 8, 8], strides = [1, 1, 1, 1]} : vector<8x2x8x8xf32> to vector<8x1x8x8xf32>
    %32 = vector.shape_cast %31 : vector<8x1x8x8xf32> to vector<8x8x8xf32>
    %33 = vector.extract_strided_slice %30 {offsets = [0, 1, 0, 0], sizes = [8, 1, 8, 8], strides = [1, 1, 1, 1]} : vector<8x2x8x8xf32> to vector<8x1x8x8xf32>
    %34 = vector.shape_cast %33 : vector<8x1x8x8xf32> to vector<8x8x8xf32>
    %35 = arith.maximumf %32, %34 : vector<8x8x8xf32>
    %36 = vector.extract_strided_slice %35 {offsets = [0, 0, 0], sizes = [8, 8, 4], strides = [1, 1, 1]} : vector<8x8x8xf32> to vector<8x8x4xf32>
    %37 = vector.extract_strided_slice %35 {offsets = [0, 0, 4], sizes = [8, 8, 4], strides = [1, 1, 1]} : vector<8x8x8xf32> to vector<8x8x4xf32>
    %38 = arith.maximumf %36, %37 : vector<8x8x4xf32>
    %c1_50 = arith.constant 1 : index
    %c1_51 = arith.constant 1 : index
    %c1_52 = arith.constant 1 : index
    %c0_53 = arith.constant 0 : index
    %39 = vector.load %arg11[%c1_50, %c1_51, %c1_52, %c0_53] : memref<2x10x10x4xf32, #tpu.memory_space<vmem>>, vector<1x8x8x4xf32>
    %40 = vector.shape_cast %39 : vector<1x8x8x4xf32> to vector<8x8x4xf32>
    %41 = vector.shape_cast %38 : vector<8x8x4xf32> to vector<1x8x8x4xf32>
    tpu.vector_store %arg11[%c1_50, %c1_51, %c1_52, %c0_53], %41 {strides = array<i32>} : memref<2x10x10x4xf32, #tpu.memory_space<vmem>>, vector<1x8x8x4xf32>,
    %c0_54 = arith.constant 0 : index
    %c0_55 = arith.constant 0 : index
    %c0_56 = arith.constant 0 : index
    %c0_57 = arith.constant 0 : index
    %42 = vector.load %arg11[%c0_54, %c0_55, %c0_56, %c0_57] : memref<2x10x10x4xf32, #tpu.memory_space<vmem>>, vector<1x8x8x4xf32>
    %43 = vector.shape_cast %42 : vector<1x8x8x4xf32> to vector<8x8x4xf32>
    %44 = vector.shape_cast %43 : vector<8x8x4xf32> to vector<64x4xf32>
    %45 = arith.truncf %44 : vector<64x4xf32> to vector<64x4xbf16>
    %c0_58 = arith.constant 0 : index
    %c0_59 = arith.constant 0 : index
    %46 = vector.load %arg12[%c0_58, %c0_59] : memref<128x36xbf16, #tpu.memory_space<vmem>>, vector<64x4xbf16>
    tpu.vector_store %arg12[%c0_58, %c0_59], %45 {strides = array<i32>} : memref<128x36xbf16, #tpu.memory_space<vmem>>, vector<64x4xbf16>,
    %c0_60 = arith.constant 0 : index
    %c0_61 = arith.constant 0 : index
    %c1_62 = arith.constant 1 : index
    %c0_63 = arith.constant 0 : index
    %47 = vector.load %arg11[%c0_60, %c0_61, %c1_62, %c0_63] : memref<2x10x10x4xf32, #tpu.memory_space<vmem>>, vector<1x8x8x4xf32>
    %48 = vector.shape_cast %47 : vector<1x8x8x4xf32> to vector<8x8x4xf32>
    %49 = vector.shape_cast %48 : vector<8x8x4xf32> to vector<64x4xf32>
    %50 = arith.truncf %49 : vector<64x4xf32> to vector<64x4xbf16>
    %c0_64 = arith.constant 0 : index
    %c4 = arith.constant 4 : index
    %51 = vector.load %arg12[%c0_64, %c4] : memref<128x36xbf16, #tpu.memory_space<vmem>>, vector<64x4xbf16>
    tpu.vector_store %arg12[%c0_64, %c4], %50 {strides = array<i32>} : memref<128x36xbf16, #tpu.memory_space<vmem>>, vector<64x4xbf16>,
    %c0_65 = arith.constant 0 : index
    %c0_66 = arith.constant 0 : index
    %c2 = arith.constant 2 : index
    %c0_67 = arith.constant 0 : index
    %52 = vector.load %arg11[%c0_65, %c0_66, %c2, %c0_67] : memref<2x10x10x4xf32, #tpu.memory_space<vmem>>, vector<1x8x8x4xf32>
    %53 = vector.shape_cast %52 : vector<1x8x8x4xf32> to vector<8x8x4xf32>
    %54 = vector.shape_cast %53 : vector<8x8x4xf32> to vector<64x4xf32>
    %55 = arith.truncf %54 : vector<64x4xf32> to vector<64x4xbf16>
    %c0_68 = arith.constant 0 : index
    %c8 = arith.constant 8 : index
    %56 = vector.load %arg12[%c0_68, %c8] : memref<128x36xbf16, #tpu.memory_space<vmem>>, vector<64x4xbf16>
    tpu.vector_store %arg12[%c0_68, %c8], %55 {strides = array<i32>} : memref<128x36xbf16, #tpu.memory_space<vmem>>, vector<64x4xbf16>,
    %c0_69 = arith.constant 0 : index
    %c1_70 = arith.constant 1 : index
    %c0_71 = arith.constant 0 : index
    %c0_72 = arith.constant 0 : index
    %57 = vector.load %arg11[%c0_69, %c1_70, %c0_71, %c0_72] : memref<2x10x10x4xf32, #tpu.memory_space<vmem>>, vector<1x8x8x4xf32>
    %58 = vector.shape_cast %57 : vector<1x8x8x4xf32> to vector<8x8x4xf32>
    %59 = vector.shape_cast %58 : vector<8x8x4xf32> to vector<64x4xf32>
    %60 = arith.truncf %59 : vector<64x4xf32> to vector<64x4xbf16>
    %c0_73 = arith.constant 0 : index
    %c12 = arith.constant 12 : index
    %61 = vector.load %arg12[%c0_73, %c12] : memref<128x36xbf16, #tpu.memory_space<vmem>>, vector<64x4xbf16>
    tpu.vector_store %arg12[%c0_73, %c12], %60 {strides = array<i32>} : memref<128x36xbf16, #tpu.memory_space<vmem>>, vector<64x4xbf16>,
    %c0_74 = arith.constant 0 : index
    %c1_75 = arith.constant 1 : index
    %c1_76 = arith.constant 1 : index
    %c0_77 = arith.constant 0 : index
    %62 = vector.load %arg11[%c0_74, %c1_75, %c1_76, %c0_77] : memref<2x10x10x4xf32, #tpu.memory_space<vmem>>, vector<1x8x8x4xf32>
    %63 = vector.shape_cast %62 : vector<1x8x8x4xf32> to vector<8x8x4xf32>
    %64 = vector.shape_cast %63 : vector<8x8x4xf32> to vector<64x4xf32>
    %65 = arith.truncf %64 : vector<64x4xf32> to vector<64x4xbf16>
    %c0_78 = arith.constant 0 : index
    %c16 = arith.constant 16 : index
    %66 = vector.load %arg12[%c0_78, %c16] : memref<128x36xbf16, #tpu.memory_space<vmem>>, vector<64x4xbf16>
    tpu.vector_store %arg12[%c0_78, %c16], %65 {strides = array<i32>} : memref<128x36xbf16, #tpu.memory_space<vmem>>, vector<64x4xbf16>,
    %c0_79 = arith.constant 0 : index
    %c1_80 = arith.constant 1 : index
    %c2_81 = arith.constant 2 : index
    %c0_82 = arith.constant 0 : index
    %67 = vector.load %arg11[%c0_79, %c1_80, %c2_81, %c0_82] : memref<2x10x10x4xf32, #tpu.memory_space<vmem>>, vector<1x8x8x4xf32>
    %68 = vector.shape_cast %67 : vector<1x8x8x4xf32> to vector<8x8x4xf32>
    %69 = vector.shape_cast %68 : vector<8x8x4xf32> to vector<64x4xf32>
    %70 = arith.truncf %69 : vector<64x4xf32> to vector<64x4xbf16>
    %c0_83 = arith.constant 0 : index
    %c20 = arith.constant 20 : index
    %71 = vector.load %arg12[%c0_83, %c20] : memref<128x36xbf16, #tpu.memory_space<vmem>>, vector<64x4xbf16>
    tpu.vector_store %arg12[%c0_83, %c20], %70 {strides = array<i32>} : memref<128x36xbf16, #tpu.memory_space<vmem>>, vector<64x4xbf16>,
    %c0_84 = arith.constant 0 : index
    %c2_85 = arith.constant 2 : index
    %c0_86 = arith.constant 0 : index
    %c0_87 = arith.constant 0 : index
    %72 = vector.load %arg11[%c0_84, %c2_85, %c0_86, %c0_87] : memref<2x10x10x4xf32, #tpu.memory_space<vmem>>, vector<1x8x8x4xf32>
    %73 = vector.shape_cast %72 : vector<1x8x8x4xf32> to vector<8x8x4xf32>
    %74 = vector.shape_cast %73 : vector<8x8x4xf32> to vector<64x4xf32>
    %75 = arith.truncf %74 : vector<64x4xf32> to vector<64x4xbf16>
    %c0_88 = arith.constant 0 : index
    %c24 = arith.constant 24 : index
    %76 = vector.load %arg12[%c0_88, %c24] : memref<128x36xbf16, #tpu.memory_space<vmem>>, vector<64x4xbf16>
    tpu.vector_store %arg12[%c0_88, %c24], %75 {strides = array<i32>} : memref<128x36xbf16, #tpu.memory_space<vmem>>, vector<64x4xbf16>,
    %c0_89 = arith.constant 0 : index
    %c2_90 = arith.constant 2 : index
    %c1_91 = arith.constant 1 : index
    %c0_92 = arith.constant 0 : index
    %77 = vector.load %arg11[%c0_89, %c2_90, %c1_91, %c0_92] : memref<2x10x10x4xf32, #tpu.memory_space<vmem>>, vector<1x8x8x4xf32>
    %78 = vector.shape_cast %77 : vector<1x8x8x4xf32> to vector<8x8x4xf32>
    %79 = vector.shape_cast %78 : vector<8x8x4xf32> to vector<64x4xf32>
    %80 = arith.truncf %79 : vector<64x4xf32> to vector<64x4xbf16>
    %c0_93 = arith.constant 0 : index
    %c28 = arith.constant 28 : index
    %81 = vector.load %arg12[%c0_93, %c28] : memref<128x36xbf16, #tpu.memory_space<vmem>>, vector<64x4xbf16>
    tpu.vector_store %arg12[%c0_93, %c28], %80 {strides = array<i32>} : memref<128x36xbf16, #tpu.memory_space<vmem>>, vector<64x4xbf16>,
    %c0_94 = arith.constant 0 : index
    %c2_95 = arith.constant 2 : index
    %c2_96 = arith.constant 2 : index
    %c0_97 = arith.constant 0 : index
    %82 = vector.load %arg11[%c0_94, %c2_95, %c2_96, %c0_97] : memref<2x10x10x4xf32, #tpu.memory_space<vmem>>, vector<1x8x8x4xf32>
    %83 = vector.shape_cast %82 : vector<1x8x8x4xf32> to vector<8x8x4xf32>
    %84 = vector.shape_cast %83 : vector<8x8x4xf32> to vector<64x4xf32>
    %85 = arith.truncf %84 : vector<64x4xf32> to vector<64x4xbf16>
    %c0_98 = arith.constant 0 : index
    %c32 = arith.constant 32 : index
    %86 = vector.load %arg12[%c0_98, %c32] : memref<128x36xbf16, #tpu.memory_space<vmem>>, vector<64x4xbf16>
    tpu.vector_store %arg12[%c0_98, %c32], %85 {strides = array<i32>} : memref<128x36xbf16, #tpu.memory_space<vmem>>, vector<64x4xbf16>,
    %c1_99 = arith.constant 1 : index
    %c0_100 = arith.constant 0 : index
    %c0_101 = arith.constant 0 : index
    %c0_102 = arith.constant 0 : index
    %87 = vector.load %arg11[%c1_99, %c0_100, %c0_101, %c0_102] : memref<2x10x10x4xf32, #tpu.memory_space<vmem>>, vector<1x8x8x4xf32>
    %88 = vector.shape_cast %87 : vector<1x8x8x4xf32> to vector<8x8x4xf32>
    %89 = vector.shape_cast %88 : vector<8x8x4xf32> to vector<64x4xf32>
    %90 = arith.truncf %89 : vector<64x4xf32> to vector<64x4xbf16>
    %c64 = arith.constant 64 : index
    %c0_103 = arith.constant 0 : index
    %91 = vector.load %arg12[%c64, %c0_103] : memref<128x36xbf16, #tpu.memory_space<vmem>>, vector<64x4xbf16>
    tpu.vector_store %arg12[%c64, %c0_103], %90 {strides = array<i32>} : memref<128x36xbf16, #tpu.memory_space<vmem>>, vector<64x4xbf16>,
    %c1_104 = arith.constant 1 : index
    %c0_105 = arith.constant 0 : index
    %c1_106 = arith.constant 1 : index
    %c0_107 = arith.constant 0 : index
    %92 = vector.load %arg11[%c1_104, %c0_105, %c1_106, %c0_107] : memref<2x10x10x4xf32, #tpu.memory_space<vmem>>, vector<1x8x8x4xf32>
    %93 = vector.shape_cast %92 : vector<1x8x8x4xf32> to vector<8x8x4xf32>
    %94 = vector.shape_cast %93 : vector<8x8x4xf32> to vector<64x4xf32>
    %95 = arith.truncf %94 : vector<64x4xf32> to vector<64x4xbf16>
    %c64_108 = arith.constant 64 : index
    %c4_109 = arith.constant 4 : index
    %96 = vector.load %arg12[%c64_108, %c4_109] : memref<128x36xbf16, #tpu.memory_space<vmem>>, vector<64x4xbf16>
    tpu.vector_store %arg12[%c64_108, %c4_109], %95 {strides = array<i32>} : memref<128x36xbf16, #tpu.memory_space<vmem>>, vector<64x4xbf16>,
    %c1_110 = arith.constant 1 : index
    %c0_111 = arith.constant 0 : index
    %c2_112 = arith.constant 2 : index
    %c0_113 = arith.constant 0 : index
    %97 = vector.load %arg11[%c1_110, %c0_111, %c2_112, %c0_113] : memref<2x10x10x4xf32, #tpu.memory_space<vmem>>, vector<1x8x8x4xf32>
    %98 = vector.shape_cast %97 : vector<1x8x8x4xf32> to vector<8x8x4xf32>
    %99 = vector.shape_cast %98 : vector<8x8x4xf32> to vector<64x4xf32>
    %100 = arith.truncf %99 : vector<64x4xf32> to vector<64x4xbf16>
    %c64_114 = arith.constant 64 : index
    %c8_115 = arith.constant 8 : index
    %101 = vector.load %arg12[%c64_114, %c8_115] : memref<128x36xbf16, #tpu.memory_space<vmem>>, vector<64x4xbf16>
    tpu.vector_store %arg12[%c64_114, %c8_115], %100 {strides = array<i32>} : memref<128x36xbf16, #tpu.memory_space<vmem>>, vector<64x4xbf16>,
    %c1_116 = arith.constant 1 : index
    %c1_117 = arith.constant 1 : index
    %c0_118 = arith.constant 0 : index
    %c0_119 = arith.constant 0 : index
    %102 = vector.load %arg11[%c1_116, %c1_117, %c0_118, %c0_119] : memref<2x10x10x4xf32, #tpu.memory_space<vmem>>, vector<1x8x8x4xf32>
    %103 = vector.shape_cast %102 : vector<1x8x8x4xf32> to vector<8x8x4xf32>
    %104 = vector.shape_cast %103 : vector<8x8x4xf32> to vector<64x4xf32>
    %105 = arith.truncf %104 : vector<64x4xf32> to vector<64x4xbf16>
    %c64_120 = arith.constant 64 : index
    %c12_121 = arith.constant 12 : index
    %106 = vector.load %arg12[%c64_120, %c12_121] : memref<128x36xbf16, #tpu.memory_space<vmem>>, vector<64x4xbf16>
    tpu.vector_store %arg12[%c64_120, %c12_121], %105 {strides = array<i32>} : memref<128x36xbf16, #tpu.memory_space<vmem>>, vector<64x4xbf16>,
    %c1_122 = arith.constant 1 : index
    %c1_123 = arith.constant 1 : index
    %c1_124 = arith.constant 1 : index
    %c0_125 = arith.constant 0 : index
    %107 = vector.load %arg11[%c1_122, %c1_123, %c1_124, %c0_125] : memref<2x10x10x4xf32, #tpu.memory_space<vmem>>, vector<1x8x8x4xf32>
    %108 = vector.shape_cast %107 : vector<1x8x8x4xf32> to vector<8x8x4xf32>
    %109 = vector.shape_cast %108 : vector<8x8x4xf32> to vector<64x4xf32>
    %110 = arith.truncf %109 : vector<64x4xf32> to vector<64x4xbf16>
    %c64_126 = arith.constant 64 : index
    %c16_127 = arith.constant 16 : index
    %111 = vector.load %arg12[%c64_126, %c16_127] : memref<128x36xbf16, #tpu.memory_space<vmem>>, vector<64x4xbf16>
    tpu.vector_store %arg12[%c64_126, %c16_127], %110 {strides = array<i32>} : memref<128x36xbf16, #tpu.memory_space<vmem>>, vector<64x4xbf16>,
    %c1_128 = arith.constant 1 : index
    %c1_129 = arith.constant 1 : index
    %c2_130 = arith.constant 2 : index
    %c0_131 = arith.constant 0 : index
    %112 = vector.load %arg11[%c1_128, %c1_129, %c2_130, %c0_131] : memref<2x10x10x4xf32, #tpu.memory_space<vmem>>, vector<1x8x8x4xf32>
    %113 = vector.shape_cast %112 : vector<1x8x8x4xf32> to vector<8x8x4xf32>
    %114 = vector.shape_cast %113 : vector<8x8x4xf32> to vector<64x4xf32>
    %115 = arith.truncf %114 : vector<64x4xf32> to vector<64x4xbf16>
    %c64_132 = arith.constant 64 : index
    %c20_133 = arith.constant 20 : index
    %116 = vector.load %arg12[%c64_132, %c20_133] : memref<128x36xbf16, #tpu.memory_space<vmem>>, vector<64x4xbf16>
    tpu.vector_store %arg12[%c64_132, %c20_133], %115 {strides = array<i32>} : memref<128x36xbf16, #tpu.memory_space<vmem>>, vector<64x4xbf16>,
    %c1_134 = arith.constant 1 : index
    %c2_135 = arith.constant 2 : index
    %c0_136 = arith.constant 0 : index
    %c0_137 = arith.constant 0 : index
    %117 = vector.load %arg11[%c1_134, %c2_135, %c0_136, %c0_137] : memref<2x10x10x4xf32, #tpu.memory_space<vmem>>, vector<1x8x8x4xf32>
    %118 = vector.shape_cast %117 : vector<1x8x8x4xf32> to vector<8x8x4xf32>
    %119 = vector.shape_cast %118 : vector<8x8x4xf32> to vector<64x4xf32>
    %120 = arith.truncf %119 : vector<64x4xf32> to vector<64x4xbf16>
    %c64_138 = arith.constant 64 : index
    %c24_139 = arith.constant 24 : index
    %121 = vector.load %arg12[%c64_138, %c24_139] : memref<128x36xbf16, #tpu.memory_space<vmem>>, vector<64x4xbf16>
    tpu.vector_store %arg12[%c64_138, %c24_139], %120 {strides = array<i32>} : memref<128x36xbf16, #tpu.memory_space<vmem>>, vector<64x4xbf16>,
    %c1_140 = arith.constant 1 : index
    %c2_141 = arith.constant 2 : index
    %c1_142 = arith.constant 1 : index
    %c0_143 = arith.constant 0 : index
    %122 = vector.load %arg11[%c1_140, %c2_141, %c1_142, %c0_143] : memref<2x10x10x4xf32, #tpu.memory_space<vmem>>, vector<1x8x8x4xf32>
    %123 = vector.shape_cast %122 : vector<1x8x8x4xf32> to vector<8x8x4xf32>
    %124 = vector.shape_cast %123 : vector<8x8x4xf32> to vector<64x4xf32>
    %125 = arith.truncf %124 : vector<64x4xf32> to vector<64x4xbf16>
    %c64_144 = arith.constant 64 : index
    %c28_145 = arith.constant 28 : index
    %126 = vector.load %arg12[%c64_144, %c28_145] : memref<128x36xbf16, #tpu.memory_space<vmem>>, vector<64x4xbf16>
    tpu.vector_store %arg12[%c64_144, %c28_145], %125 {strides = array<i32>} : memref<128x36xbf16, #tpu.memory_space<vmem>>, vector<64x4xbf16>,
    %c1_146 = arith.constant 1 : index
    %c2_147 = arith.constant 2 : index
    %c2_148 = arith.constant 2 : index
    %c0_149 = arith.constant 0 : index
    %127 = vector.load %arg11[%c1_146, %c2_147, %c2_148, %c0_149] : memref<2x10x10x4xf32, #tpu.memory_space<vmem>>, vector<1x8x8x4xf32>
    %128 = vector.shape_cast %127 : vector<1x8x8x4xf32> to vector<8x8x4xf32>
    %129 = vector.shape_cast %128 : vector<8x8x4xf32> to vector<64x4xf32>
    %130 = arith.truncf %129 : vector<64x4xf32> to vector<64x4xbf16>
    %c64_150 = arith.constant 64 : index
    %c32_151 = arith.constant 32 : index
    %131 = vector.load %arg12[%c64_150, %c32_151] : memref<128x36xbf16, #tpu.memory_space<vmem>>, vector<64x4xbf16>
    tpu.vector_store %arg12[%c64_150, %c32_151], %130 {strides = array<i32>} : memref<128x36xbf16, #tpu.memory_space<vmem>>, vector<64x4xbf16>,
    %c0_152 = arith.constant 0 : index
    %c0_153 = arith.constant 0 : index
    %132 = vector.load %arg12[%c0_152, %c0_153] : memref<128x36xbf16, #tpu.memory_space<vmem>>, vector<128x36xbf16>
    %c0_154 = arith.constant 0 : index
    %c0_155 = arith.constant 0 : index
    %133 = vector.load %arg2[%c0_154, %c0_155] : memref<36x8xbf16, #tpu.memory_space<vmem>>, vector<36x8xbf16>
    %cst_156 = arith.constant dense<0.000000e+00> : vector<128x8xf32>
    %134 = tpu.matmul %132, %133, %cst_156 {dimension_numbers = #tpu.dot_dimension_numbers<[1], [0], [0], [1], [0, 0, 1, 1], [], []>} : vector<128x36xbf16>, vector<36x8xbf16>, vector<128x8xf32> -> vector<128x8xf32>
    %c0_157 = arith.constant 0 : index
    %c0_158 = arith.constant 0 : index
    %135 = vector.load %arg3[%c0_157, %c0_158] : memref<1x8xf32, #tpu.memory_space<vmem>>, vector<1x8xf32>
    %136 = vector.broadcast %135 : vector<1x8xf32> to vector<128x8xf32>
    %137 = arith.addf %134, %136 : vector<128x8xf32>
    %c0_159 = arith.constant 0 : index
    %c0_160 = arith.constant 0 : index
    %138 = vector.load %arg4[%c0_159, %c0_160] : memref<1x8xf32, #tpu.memory_space<vmem>>, vector<1x8xf32>
    %c0_161 = arith.constant 0 : index
    %c0_162 = arith.constant 0 : index
    %139 = vector.load %arg5[%c0_161, %c0_162] : memref<1x8xf32, #tpu.memory_space<vmem>>, vector<1x8xf32>
    %cst_163 = arith.constant dense<0.000000e+00> : vector<8xf32>
    %140 = vector.multi_reduction <add>, %137, %cst_163 [0] : vector<128x8xf32> to vector<8xf32>
    %141 = vector.shape_cast %140 : vector<8xf32> to vector<1x8xf32>
    %cst_164 = arith.constant 7.812500e-03 : f32
    %142 = vector.broadcast %cst_164 : f32 to vector<1x8xf32>
    %143 = arith.mulf %141, %142 : vector<1x8xf32>
    %144 = vector.broadcast %143 : vector<1x8xf32> to vector<128x8xf32>
    %145 = arith.subf %137, %144 : vector<128x8xf32>
    %146 = arith.mulf %145, %145 : vector<128x8xf32>
    %cst_165 = arith.constant dense<0.000000e+00> : vector<8xf32>
    %147 = vector.multi_reduction <add>, %146, %cst_165 [0] : vector<128x8xf32> to vector<8xf32>
    %148 = vector.shape_cast %147 : vector<8xf32> to vector<1x8xf32>
    %cst_166 = arith.constant 7.812500e-03 : f32
    %149 = vector.broadcast %cst_166 : f32 to vector<1x8xf32>
    %150 = arith.mulf %148, %149 : vector<1x8xf32>
    %cst_167 = arith.constant 9.99999974E-6 : f32
    %151 = vector.broadcast %cst_167 : f32 to vector<1x8xf32>
    %152 = arith.addf %150, %151 : vector<1x8xf32>
    %153 = math.rsqrt %152 : vector<1x8xf32>
    %154 = arith.mulf %138, %153 : vector<1x8xf32>
    %155 = arith.mulf %143, %154 : vector<1x8xf32>
    %156 = arith.subf %139, %155 : vector<1x8xf32>
    %157 = vector.broadcast %154 : vector<1x8xf32> to vector<128x8xf32>
    %158 = arith.mulf %137, %157 : vector<128x8xf32>
    %159 = vector.broadcast %156 : vector<1x8xf32> to vector<128x8xf32>
    %160 = arith.addf %158, %159 : vector<128x8xf32>
    %cst_168 = arith.constant 0.000000e+00 : f32
    %161 = vector.broadcast %cst_168 : f32 to vector<128x8xf32>
    %162 = arith.maximumf %160, %161 : vector<128x8xf32>
    %163 = vector.extract_strided_slice %162 {offsets = [0, 0], sizes = [64, 8], strides = [1, 1]} : vector<128x8xf32> to vector<64x8xf32>
    %164 = vector.shape_cast %163 : vector<64x8xf32> to vector<8x8x8xf32>
    %c0_169 = arith.constant 0 : index
    %c1_170 = arith.constant 1 : index
    %c1_171 = arith.constant 1 : index
    %c0_172 = arith.constant 0 : index
    %165 = vector.load %arg13[%c0_169, %c1_170, %c1_171, %c0_172] : memref<2x10x10x8xf32, #tpu.memory_space<vmem>>, vector<1x8x8x8xf32>
    %166 = vector.shape_cast %165 : vector<1x8x8x8xf32> to vector<8x8x8xf32>
    %167 = vector.shape_cast %164 : vector<8x8x8xf32> to vector<1x8x8x8xf32>
    tpu.vector_store %arg13[%c0_169, %c1_170, %c1_171, %c0_172], %167 {strides = array<i32>} : memref<2x10x10x8xf32, #tpu.memory_space<vmem>>, vector<1x8x8x8xf32>,
    %168 = vector.extract_strided_slice %162 {offsets = [64, 0], sizes = [64, 8], strides = [1, 1]} : vector<128x8xf32> to vector<64x8xf32>
    %169 = vector.shape_cast %168 : vector<64x8xf32> to vector<8x8x8xf32>
    %c1_173 = arith.constant 1 : index
    %c1_174 = arith.constant 1 : index
    %c1_175 = arith.constant 1 : index
    %c0_176 = arith.constant 0 : index
    %170 = vector.load %arg13[%c1_173, %c1_174, %c1_175, %c0_176] : memref<2x10x10x8xf32, #tpu.memory_space<vmem>>, vector<1x8x8x8xf32>
    %171 = vector.shape_cast %170 : vector<1x8x8x8xf32> to vector<8x8x8xf32>
    %172 = vector.shape_cast %169 : vector<8x8x8xf32> to vector<1x8x8x8xf32>
    tpu.vector_store %arg13[%c1_173, %c1_174, %c1_175, %c0_176], %172 {strides = array<i32>} : memref<2x10x10x8xf32, #tpu.memory_space<vmem>>, vector<1x8x8x8xf32>,
    %c0_177 = arith.constant 0 : index
    %c0_178 = arith.constant 0 : index
    %c0_179 = arith.constant 0 : index
    %c0_180 = arith.constant 0 : index
    %173 = vector.load %arg13[%c0_177, %c0_178, %c0_179, %c0_180] : memref<2x10x10x8xf32, #tpu.memory_space<vmem>>, vector<1x8x8x8xf32>
    %174 = vector.shape_cast %173 : vector<1x8x8x8xf32> to vector<8x8x8xf32>
    %175 = vector.shape_cast %174 : vector<8x8x8xf32> to vector<64x8xf32>
    %176 = arith.truncf %175 : vector<64x8xf32> to vector<64x8xbf16>
    %c0_181 = arith.constant 0 : index
    %c0_182 = arith.constant 0 : index
    %177 = vector.load %arg14[%c0_181, %c0_182] : memref<128x72xbf16, #tpu.memory_space<vmem>>, vector<64x8xbf16>
    tpu.vector_store %arg14[%c0_181, %c0_182], %176 {strides = array<i32>} : memref<128x72xbf16, #tpu.memory_space<vmem>>, vector<64x8xbf16>,
    %c0_183 = arith.constant 0 : index
    %c0_184 = arith.constant 0 : index
    %c1_185 = arith.constant 1 : index
    %c0_186 = arith.constant 0 : index
    %178 = vector.load %arg13[%c0_183, %c0_184, %c1_185, %c0_186] : memref<2x10x10x8xf32, #tpu.memory_space<vmem>>, vector<1x8x8x8xf32>
    %179 = vector.shape_cast %178 : vector<1x8x8x8xf32> to vector<8x8x8xf32>
    %180 = vector.shape_cast %179 : vector<8x8x8xf32> to vector<64x8xf32>
    %181 = arith.truncf %180 : vector<64x8xf32> to vector<64x8xbf16>
    %c0_187 = arith.constant 0 : index
    %c8_188 = arith.constant 8 : index
    %182 = vector.load %arg14[%c0_187, %c8_188] : memref<128x72xbf16, #tpu.memory_space<vmem>>, vector<64x8xbf16>
    tpu.vector_store %arg14[%c0_187, %c8_188], %181 {strides = array<i32>} : memref<128x72xbf16, #tpu.memory_space<vmem>>, vector<64x8xbf16>,
    %c0_189 = arith.constant 0 : index
    %c0_190 = arith.constant 0 : index
    %c2_191 = arith.constant 2 : index
    %c0_192 = arith.constant 0 : index
    %183 = vector.load %arg13[%c0_189, %c0_190, %c2_191, %c0_192] : memref<2x10x10x8xf32, #tpu.memory_space<vmem>>, vector<1x8x8x8xf32>
    %184 = vector.shape_cast %183 : vector<1x8x8x8xf32> to vector<8x8x8xf32>
    %185 = vector.shape_cast %184 : vector<8x8x8xf32> to vector<64x8xf32>
    %186 = arith.truncf %185 : vector<64x8xf32> to vector<64x8xbf16>
    %c0_193 = arith.constant 0 : index
    %c16_194 = arith.constant 16 : index
    %187 = vector.load %arg14[%c0_193, %c16_194] : memref<128x72xbf16, #tpu.memory_space<vmem>>, vector<64x8xbf16>
    tpu.vector_store %arg14[%c0_193, %c16_194], %186 {strides = array<i32>} : memref<128x72xbf16, #tpu.memory_space<vmem>>, vector<64x8xbf16>,
    %c0_195 = arith.constant 0 : index
    %c1_196 = arith.constant 1 : index
    %c0_197 = arith.constant 0 : index
    %c0_198 = arith.constant 0 : index
    %188 = vector.load %arg13[%c0_195, %c1_196, %c0_197, %c0_198] : memref<2x10x10x8xf32, #tpu.memory_space<vmem>>, vector<1x8x8x8xf32>
    %189 = vector.shape_cast %188 : vector<1x8x8x8xf32> to vector<8x8x8xf32>
    %190 = vector.shape_cast %189 : vector<8x8x8xf32> to vector<64x8xf32>
    %191 = arith.truncf %190 : vector<64x8xf32> to vector<64x8xbf16>
    %c0_199 = arith.constant 0 : index
    %c24_200 = arith.constant 24 : index
    %192 = vector.load %arg14[%c0_199, %c24_200] : memref<128x72xbf16, #tpu.memory_space<vmem>>, vector<64x8xbf16>
    tpu.vector_store %arg14[%c0_199, %c24_200], %191 {strides = array<i32>} : memref<128x72xbf16, #tpu.memory_space<vmem>>, vector<64x8xbf16>,
    %c0_201 = arith.constant 0 : index
    %c1_202 = arith.constant 1 : index
    %c1_203 = arith.constant 1 : index
    %c0_204 = arith.constant 0 : index
    %193 = vector.load %arg13[%c0_201, %c1_202, %c1_203, %c0_204] : memref<2x10x10x8xf32, #tpu.memory_space<vmem>>, vector<1x8x8x8xf32>
    %194 = vector.shape_cast %193 : vector<1x8x8x8xf32> to vector<8x8x8xf32>
    %195 = vector.shape_cast %194 : vector<8x8x8xf32> to vector<64x8xf32>
    %196 = arith.truncf %195 : vector<64x8xf32> to vector<64x8xbf16>
    %c0_205 = arith.constant 0 : index
    %c32_206 = arith.constant 32 : index
    %197 = vector.load %arg14[%c0_205, %c32_206] : memref<128x72xbf16, #tpu.memory_space<vmem>>, vector<64x8xbf16>
    tpu.vector_store %arg14[%c0_205, %c32_206], %196 {strides = array<i32>} : memref<128x72xbf16, #tpu.memory_space<vmem>>, vector<64x8xbf16>,
    %c0_207 = arith.constant 0 : index
    %c1_208 = arith.constant 1 : index
    %c2_209 = arith.constant 2 : index
    %c0_210 = arith.constant 0 : index
    %198 = vector.load %arg13[%c0_207, %c1_208, %c2_209, %c0_210] : memref<2x10x10x8xf32, #tpu.memory_space<vmem>>, vector<1x8x8x8xf32>
    %199 = vector.shape_cast %198 : vector<1x8x8x8xf32> to vector<8x8x8xf32>
    %200 = vector.shape_cast %199 : vector<8x8x8xf32> to vector<64x8xf32>
    %201 = arith.truncf %200 : vector<64x8xf32> to vector<64x8xbf16>
    %c0_211 = arith.constant 0 : index
    %c40 = arith.constant 40 : index
    %202 = vector.load %arg14[%c0_211, %c40] : memref<128x72xbf16, #tpu.memory_space<vmem>>, vector<64x8xbf16>
    tpu.vector_store %arg14[%c0_211, %c40], %201 {strides = array<i32>} : memref<128x72xbf16, #tpu.memory_space<vmem>>, vector<64x8xbf16>,
    %c0_212 = arith.constant 0 : index
    %c2_213 = arith.constant 2 : index
    %c0_214 = arith.constant 0 : index
    %c0_215 = arith.constant 0 : index
    %203 = vector.load %arg13[%c0_212, %c2_213, %c0_214, %c0_215] : memref<2x10x10x8xf32, #tpu.memory_space<vmem>>, vector<1x8x8x8xf32>
    %204 = vector.shape_cast %203 : vector<1x8x8x8xf32> to vector<8x8x8xf32>
    %205 = vector.shape_cast %204 : vector<8x8x8xf32> to vector<64x8xf32>
    %206 = arith.truncf %205 : vector<64x8xf32> to vector<64x8xbf16>
    %c0_216 = arith.constant 0 : index
    %c48 = arith.constant 48 : index
    %207 = vector.load %arg14[%c0_216, %c48] : memref<128x72xbf16, #tpu.memory_space<vmem>>, vector<64x8xbf16>
    tpu.vector_store %arg14[%c0_216, %c48], %206 {strides = array<i32>} : memref<128x72xbf16, #tpu.memory_space<vmem>>, vector<64x8xbf16>,
    %c0_217 = arith.constant 0 : index
    %c2_218 = arith.constant 2 : index
    %c1_219 = arith.constant 1 : index
    %c0_220 = arith.constant 0 : index
    %208 = vector.load %arg13[%c0_217, %c2_218, %c1_219, %c0_220] : memref<2x10x10x8xf32, #tpu.memory_space<vmem>>, vector<1x8x8x8xf32>
    %209 = vector.shape_cast %208 : vector<1x8x8x8xf32> to vector<8x8x8xf32>
    %210 = vector.shape_cast %209 : vector<8x8x8xf32> to vector<64x8xf32>
    %211 = arith.truncf %210 : vector<64x8xf32> to vector<64x8xbf16>
    %c0_221 = arith.constant 0 : index
    %c56 = arith.constant 56 : index
    %212 = vector.load %arg14[%c0_221, %c56] : memref<128x72xbf16, #tpu.memory_space<vmem>>, vector<64x8xbf16>
    tpu.vector_store %arg14[%c0_221, %c56], %211 {strides = array<i32>} : memref<128x72xbf16, #tpu.memory_space<vmem>>, vector<64x8xbf16>,
    %c0_222 = arith.constant 0 : index
    %c2_223 = arith.constant 2 : index
    %c2_224 = arith.constant 2 : index
    %c0_225 = arith.constant 0 : index
    %213 = vector.load %arg13[%c0_222, %c2_223, %c2_224, %c0_225] : memref<2x10x10x8xf32, #tpu.memory_space<vmem>>, vector<1x8x8x8xf32>
    %214 = vector.shape_cast %213 : vector<1x8x8x8xf32> to vector<8x8x8xf32>
    %215 = vector.shape_cast %214 : vector<8x8x8xf32> to vector<64x8xf32>
    %216 = arith.truncf %215 : vector<64x8xf32> to vector<64x8xbf16>
    %c0_226 = arith.constant 0 : index
    %c64_227 = arith.constant 64 : index
    %217 = vector.load %arg14[%c0_226, %c64_227] : memref<128x72xbf16, #tpu.memory_space<vmem>>, vector<64x8xbf16>
    tpu.vector_store %arg14[%c0_226, %c64_227], %216 {strides = array<i32>} : memref<128x72xbf16, #tpu.memory_space<vmem>>, vector<64x8xbf16>,
    %c1_228 = arith.constant 1 : index
    %c0_229 = arith.constant 0 : index
    %c0_230 = arith.constant 0 : index
    %c0_231 = arith.constant 0 : index
    %218 = vector.load %arg13[%c1_228, %c0_229, %c0_230, %c0_231] : memref<2x10x10x8xf32, #tpu.memory_space<vmem>>, vector<1x8x8x8xf32>
    %219 = vector.shape_cast %218 : vector<1x8x8x8xf32> to vector<8x8x8xf32>
    %220 = vector.shape_cast %219 : vector<8x8x8xf32> to vector<64x8xf32>
    %221 = arith.truncf %220 : vector<64x8xf32> to vector<64x8xbf16>
    %c64_232 = arith.constant 64 : index
    %c0_233 = arith.constant 0 : index
    %222 = vector.load %arg14[%c64_232, %c0_233] : memref<128x72xbf16, #tpu.memory_space<vmem>>, vector<64x8xbf16>
    tpu.vector_store %arg14[%c64_232, %c0_233], %221 {strides = array<i32>} : memref<128x72xbf16, #tpu.memory_space<vmem>>, vector<64x8xbf16>,
    %c1_234 = arith.constant 1 : index
    %c0_235 = arith.constant 0 : index
    %c1_236 = arith.constant 1 : index
    %c0_237 = arith.constant 0 : index
    %223 = vector.load %arg13[%c1_234, %c0_235, %c1_236, %c0_237] : memref<2x10x10x8xf32, #tpu.memory_space<vmem>>, vector<1x8x8x8xf32>
    %224 = vector.shape_cast %223 : vector<1x8x8x8xf32> to vector<8x8x8xf32>
    %225 = vector.shape_cast %224 : vector<8x8x8xf32> to vector<64x8xf32>
    %226 = arith.truncf %225 : vector<64x8xf32> to vector<64x8xbf16>
    %c64_238 = arith.constant 64 : index
    %c8_239 = arith.constant 8 : index
    %227 = vector.load %arg14[%c64_238, %c8_239] : memref<128x72xbf16, #tpu.memory_space<vmem>>, vector<64x8xbf16>
    tpu.vector_store %arg14[%c64_238, %c8_239], %226 {strides = array<i32>} : memref<128x72xbf16, #tpu.memory_space<vmem>>, vector<64x8xbf16>,
    %c1_240 = arith.constant 1 : index
    %c0_241 = arith.constant 0 : index
    %c2_242 = arith.constant 2 : index
    %c0_243 = arith.constant 0 : index
    %228 = vector.load %arg13[%c1_240, %c0_241, %c2_242, %c0_243] : memref<2x10x10x8xf32, #tpu.memory_space<vmem>>, vector<1x8x8x8xf32>
    %229 = vector.shape_cast %228 : vector<1x8x8x8xf32> to vector<8x8x8xf32>
    %230 = vector.shape_cast %229 : vector<8x8x8xf32> to vector<64x8xf32>
    %231 = arith.truncf %230 : vector<64x8xf32> to vector<64x8xbf16>
    %c64_244 = arith.constant 64 : index
    %c16_245 = arith.constant 16 : index
    %232 = vector.load %arg14[%c64_244, %c16_245] : memref<128x72xbf16, #tpu.memory_space<vmem>>, vector<64x8xbf16>
    tpu.vector_store %arg14[%c64_244, %c16_245], %231 {strides = array<i32>} : memref<128x72xbf16, #tpu.memory_space<vmem>>, vector<64x8xbf16>,
    %c1_246 = arith.constant 1 : index
    %c1_247 = arith.constant 1 : index
    %c0_248 = arith.constant 0 : index
    %c0_249 = arith.constant 0 : index
    %233 = vector.load %arg13[%c1_246, %c1_247, %c0_248, %c0_249] : memref<2x10x10x8xf32, #tpu.memory_space<vmem>>, vector<1x8x8x8xf32>
    %234 = vector.shape_cast %233 : vector<1x8x8x8xf32> to vector<8x8x8xf32>
    %235 = vector.shape_cast %234 : vector<8x8x8xf32> to vector<64x8xf32>
    %236 = arith.truncf %235 : vector<64x8xf32> to vector<64x8xbf16>
    %c64_250 = arith.constant 64 : index
    %c24_251 = arith.constant 24 : index
    %237 = vector.load %arg14[%c64_250, %c24_251] : memref<128x72xbf16, #tpu.memory_space<vmem>>, vector<64x8xbf16>
    tpu.vector_store %arg14[%c64_250, %c24_251], %236 {strides = array<i32>} : memref<128x72xbf16, #tpu.memory_space<vmem>>, vector<64x8xbf16>,
    %c1_252 = arith.constant 1 : index
    %c1_253 = arith.constant 1 : index
    %c1_254 = arith.constant 1 : index
    %c0_255 = arith.constant 0 : index
    %238 = vector.load %arg13[%c1_252, %c1_253, %c1_254, %c0_255] : memref<2x10x10x8xf32, #tpu.memory_space<vmem>>, vector<1x8x8x8xf32>
    %239 = vector.shape_cast %238 : vector<1x8x8x8xf32> to vector<8x8x8xf32>
    %240 = vector.shape_cast %239 : vector<8x8x8xf32> to vector<64x8xf32>
    %241 = arith.truncf %240 : vector<64x8xf32> to vector<64x8xbf16>
    %c64_256 = arith.constant 64 : index
    %c32_257 = arith.constant 32 : index
    %242 = vector.load %arg14[%c64_256, %c32_257] : memref<128x72xbf16, #tpu.memory_space<vmem>>, vector<64x8xbf16>
    tpu.vector_store %arg14[%c64_256, %c32_257], %241 {strides = array<i32>} : memref<128x72xbf16, #tpu.memory_space<vmem>>, vector<64x8xbf16>,
    %c1_258 = arith.constant 1 : index
    %c1_259 = arith.constant 1 : index
    %c2_260 = arith.constant 2 : index
    %c0_261 = arith.constant 0 : index
    %243 = vector.load %arg13[%c1_258, %c1_259, %c2_260, %c0_261] : memref<2x10x10x8xf32, #tpu.memory_space<vmem>>, vector<1x8x8x8xf32>
    %244 = vector.shape_cast %243 : vector<1x8x8x8xf32> to vector<8x8x8xf32>
    %245 = vector.shape_cast %244 : vector<8x8x8xf32> to vector<64x8xf32>
    %246 = arith.truncf %245 : vector<64x8xf32> to vector<64x8xbf16>
    %c64_262 = arith.constant 64 : index
    %c40_263 = arith.constant 40 : index
    %247 = vector.load %arg14[%c64_262, %c40_263] : memref<128x72xbf16, #tpu.memory_space<vmem>>, vector<64x8xbf16>
    tpu.vector_store %arg14[%c64_262, %c40_263], %246 {strides = array<i32>} : memref<128x72xbf16, #tpu.memory_space<vmem>>, vector<64x8xbf16>,
    %c1_264 = arith.constant 1 : index
    %c2_265 = arith.constant 2 : index
    %c0_266 = arith.constant 0 : index
    %c0_267 = arith.constant 0 : index
    %248 = vector.load %arg13[%c1_264, %c2_265, %c0_266, %c0_267] : memref<2x10x10x8xf32, #tpu.memory_space<vmem>>, vector<1x8x8x8xf32>
    %249 = vector.shape_cast %248 : vector<1x8x8x8xf32> to vector<8x8x8xf32>
    %250 = vector.shape_cast %249 : vector<8x8x8xf32> to vector<64x8xf32>
    %251 = arith.truncf %250 : vector<64x8xf32> to vector<64x8xbf16>
    %c64_268 = arith.constant 64 : index
    %c48_269 = arith.constant 48 : index
    %252 = vector.load %arg14[%c64_268, %c48_269] : memref<128x72xbf16, #tpu.memory_space<vmem>>, vector<64x8xbf16>
    tpu.vector_store %arg14[%c64_268, %c48_269], %251 {strides = array<i32>} : memref<128x72xbf16, #tpu.memory_space<vmem>>, vector<64x8xbf16>,
    %c1_270 = arith.constant 1 : index
    %c2_271 = arith.constant 2 : index
    %c1_272 = arith.constant 1 : index
    %c0_273 = arith.constant 0 : index
    %253 = vector.load %arg13[%c1_270, %c2_271, %c1_272, %c0_273] : memref<2x10x10x8xf32, #tpu.memory_space<vmem>>, vector<1x8x8x8xf32>
    %254 = vector.shape_cast %253 : vector<1x8x8x8xf32> to vector<8x8x8xf32>
    %255 = vector.shape_cast %254 : vector<8x8x8xf32> to vector<64x8xf32>
    %256 = arith.truncf %255 : vector<64x8xf32> to vector<64x8xbf16>
    %c64_274 = arith.constant 64 : index
    %c56_275 = arith.constant 56 : index
    %257 = vector.load %arg14[%c64_274, %c56_275] : memref<128x72xbf16, #tpu.memory_space<vmem>>, vector<64x8xbf16>
    tpu.vector_store %arg14[%c64_274, %c56_275], %256 {strides = array<i32>} : memref<128x72xbf16, #tpu.memory_space<vmem>>, vector<64x8xbf16>,
    %c1_276 = arith.constant 1 : index
    %c2_277 = arith.constant 2 : index
    %c2_278 = arith.constant 2 : index
    %c0_279 = arith.constant 0 : index
    %258 = vector.load %arg13[%c1_276, %c2_277, %c2_278, %c0_279] : memref<2x10x10x8xf32, #tpu.memory_space<vmem>>, vector<1x8x8x8xf32>
    %259 = vector.shape_cast %258 : vector<1x8x8x8xf32> to vector<8x8x8xf32>
    %260 = vector.shape_cast %259 : vector<8x8x8xf32> to vector<64x8xf32>
    %261 = arith.truncf %260 : vector<64x8xf32> to vector<64x8xbf16>
    %c64_280 = arith.constant 64 : index
    %c64_281 = arith.constant 64 : index
    %262 = vector.load %arg14[%c64_280, %c64_281] : memref<128x72xbf16, #tpu.memory_space<vmem>>, vector<64x8xbf16>
    tpu.vector_store %arg14[%c64_280, %c64_281], %261 {strides = array<i32>} : memref<128x72xbf16, #tpu.memory_space<vmem>>, vector<64x8xbf16>,
    %c0_282 = arith.constant 0 : index
    %c0_283 = arith.constant 0 : index
    %263 = vector.load %arg14[%c0_282, %c0_283] : memref<128x72xbf16, #tpu.memory_space<vmem>>, vector<128x72xbf16>
    %c0_284 = arith.constant 0 : index
    %c0_285 = arith.constant 0 : index
    %264 = vector.load %arg6[%c0_284, %c0_285] : memref<72x8xbf16, #tpu.memory_space<vmem>>, vector<72x8xbf16>
    %cst_286 = arith.constant dense<0.000000e+00> : vector<128x8xf32>
    %265 = tpu.matmul %263, %264, %cst_286 {dimension_numbers = #tpu.dot_dimension_numbers<[1], [0], [0], [1], [0, 0, 1, 1], [], []>} : vector<128x72xbf16>, vector<72x8xbf16>, vector<128x8xf32> -> vector<128x8xf32>
    %c0_287 = arith.constant 0 : index
    %c0_288 = arith.constant 0 : index
    %266 = vector.load %arg7[%c0_287, %c0_288] : memref<1x8xf32, #tpu.memory_space<vmem>>, vector<1x8xf32>
    %267 = vector.broadcast %266 : vector<1x8xf32> to vector<128x8xf32>
    %268 = arith.addf %265, %267 : vector<128x8xf32>
    %c0_289 = arith.constant 0 : index
    %c0_290 = arith.constant 0 : index
    %269 = vector.load %arg8[%c0_289, %c0_290] : memref<1x8xf32, #tpu.memory_space<vmem>>, vector<1x8xf32>
    %c0_291 = arith.constant 0 : index
    %c0_292 = arith.constant 0 : index
    %270 = vector.load %arg9[%c0_291, %c0_292] : memref<1x8xf32, #tpu.memory_space<vmem>>, vector<1x8xf32>
    %cst_293 = arith.constant dense<0.000000e+00> : vector<8xf32>
    %271 = vector.multi_reduction <add>, %268, %cst_293 [0] : vector<128x8xf32> to vector<8xf32>
    %272 = vector.shape_cast %271 : vector<8xf32> to vector<1x8xf32>
    %cst_294 = arith.constant 7.812500e-03 : f32
    %273 = vector.broadcast %cst_294 : f32 to vector<1x8xf32>
    %274 = arith.mulf %272, %273 : vector<1x8xf32>
    %275 = vector.broadcast %274 : vector<1x8xf32> to vector<128x8xf32>
    %276 = arith.subf %268, %275 : vector<128x8xf32>
    %277 = arith.mulf %276, %276 : vector<128x8xf32>
    %cst_295 = arith.constant dense<0.000000e+00> : vector<8xf32>
    %278 = vector.multi_reduction <add>, %277, %cst_295 [0] : vector<128x8xf32> to vector<8xf32>
    %279 = vector.shape_cast %278 : vector<8xf32> to vector<1x8xf32>
    %cst_296 = arith.constant 7.812500e-03 : f32
    %280 = vector.broadcast %cst_296 : f32 to vector<1x8xf32>
    %281 = arith.mulf %279, %280 : vector<1x8xf32>
    %cst_297 = arith.constant 9.99999974E-6 : f32
    %282 = vector.broadcast %cst_297 : f32 to vector<1x8xf32>
    %283 = arith.addf %281, %282 : vector<1x8xf32>
    %284 = math.rsqrt %283 : vector<1x8xf32>
    %285 = arith.mulf %269, %284 : vector<1x8xf32>
    %286 = arith.mulf %274, %285 : vector<1x8xf32>
    %287 = arith.subf %270, %286 : vector<1x8xf32>
    %288 = vector.broadcast %285 : vector<1x8xf32> to vector<128x8xf32>
    %289 = arith.mulf %268, %288 : vector<128x8xf32>
    %290 = vector.broadcast %287 : vector<1x8xf32> to vector<128x8xf32>
    %291 = arith.addf %289, %290 : vector<128x8xf32>
    %cst_298 = arith.constant 0.000000e+00 : f32
    %292 = vector.broadcast %cst_298 : f32 to vector<128x8xf32>
    %293 = arith.maximumf %291, %292 : vector<128x8xf32>
    %c0_299 = arith.constant 0 : index
    %c0_300 = arith.constant 0 : index
    %294 = vector.load %arg10[%c0_299, %c0_300] : memref<128x8xf32, #tpu.memory_space<vmem>>, vector<128x8xf32>
    tpu.vector_store %arg10[%c0_299, %c0_300], %293 {strides = array<i32>} : memref<128x8xf32, #tpu.memory_space<vmem>>, vector<128x8xf32>,
    return
  }
  func.func @transform_0(%arg0: i32) -> (i32, i32, i32, i32, i32) {
    %c0_i32 = arith.constant 0 : i32
    %c0_i32_0 = arith.constant 0 : i32
    %c0_i32_1 = arith.constant 0 : i32
    %c0_i32_2 = arith.constant 0 : i32
    %c0_i32_3 = arith.constant 0 : i32
    %c0_i32_4 = arith.constant 0 : i32
    return %c0_i32, %c0_i32_0, %c0_i32_1, %c0_i32_2, %c0_i32_3 : i32, i32, i32, i32, i32
  }
  func.func @transform_1(%arg0: i32) -> (i32, i32) {
    %c0_i32 = arith.constant 0 : i32
    %c0_i32_0 = arith.constant 0 : i32
    %c0_i32_1 = arith.constant 0 : i32
    return %c0_i32, %c0_i32_0 : i32, i32
  }
  func.func @transform_2(%arg0: i32) -> (i32, i32) {
    %c0_i32 = arith.constant 0 : i32
    %c0_i32_0 = arith.constant 0 : i32
    %c0_i32_1 = arith.constant 0 : i32
    return %c0_i32, %c0_i32_0 : i32, i32
  }
  func.func @transform_3(%arg0: i32) -> (i32, i32) {
    %c0_i32 = arith.constant 0 : i32
    %c0_i32_0 = arith.constant 0 : i32
    %c0_i32_1 = arith.constant 0 : i32
    return %c0_i32, %c0_i32_0 : i32, i32
  }
  func.func @transform_4(%arg0: i32) -> (i32, i32) {
    %c0_i32 = arith.constant 0 : i32
    %c0_i32_0 = arith.constant 0 : i32
    %c0_i32_1 = arith.constant 0 : i32
    return %c0_i32, %c0_i32_0 : i32, i32
  }
  func.func @transform_5(%arg0: i32) -> (i32, i32) {
    %c0_i32 = arith.constant 0 : i32
    %c0_i32_0 = arith.constant 0 : i32
    %c0_i32_1 = arith.constant 0 : i32
    return %c0_i32, %c0_i32_0 : i32, i32
  }
  func.func @transform_6(%arg0: i32) -> (i32, i32) {
    %c0_i32 = arith.constant 0 : i32
    %c0_i32_0 = arith.constant 0 : i32
    %c0_i32_1 = arith.constant 0 : i32
    return %c0_i32, %c0_i32_0 : i32, i32
  }
  func.func @transform_7(%arg0: i32) -> (i32, i32) {
    %c0_i32 = arith.constant 0 : i32
    %c0_i32_0 = arith.constant 0 : i32
    %c0_i32_1 = arith.constant 0 : i32
    return %c0_i32, %c0_i32_0 : i32, i32
  }
  func.func @transform_8(%arg0: i32) -> (i32, i32) {
    %c0_i32 = arith.constant 0 : i32
    %c0_i32_0 = arith.constant 0 : i32
    %c0_i32_1 = arith.constant 0 : i32
    return %c0_i32, %c0_i32_0 : i32, i32
  }
  func.func @transform_9(%arg0: i32) -> (i32, i32) {
    %c0_i32 = arith.constant 0 : i32
    %c0_i32_0 = arith.constant 0 : i32
    %c0_i32_1 = arith.constant 0 : i32
    return %c0_i32, %c0_i32_0 : i32, i32
  }
}

</mosaic_0001>

<llo_original>
// kernel: down_forward.1
$region0: #{down_forward.1}
  #allocation0 [shape = 'u32[]', space=smem, size = 0x4, offset = 0x4, fixed_abs, tag = 'smem constant byte address 0x4 - core index']
  #allocation1 [shape = 'u32[72,128]{1,0:T(1,128)}', space=vmem, size = 0x9000, scoped, tag = 'internal scratch']
  #allocation2 [shape = 'f32[2,10,10,4]{3,2,1,0:T(8,128)}', space=vmem, size = 0x28000, scoped, tag = 'scratch operand']
  #allocation3 [shape = 'bf16[128,36]{1,0:T(8,128)(2,1)}', space=vmem, size = 0x8000, scoped, tag = 'scratch operand']
  #allocation4 [shape = 'f32[2,10,10,8]{3,2,1,0:T(8,128)}', space=vmem, size = 0x28000, scoped, tag = 'scratch operand']
  #allocation5 [shape = 'bf16[128,72]{1,0:T(8,128)(2,1)}', space=vmem, size = 0x8000, scoped, tag = 'scratch operand']
  %s0 = inlined_call_operand.vmem [shape: f32[2,8,2,8,8], index: 0, kind: input, shape index: {}]
  %s1 = inlined_call_operand.vmem [shape: bf16[36,8], index: 1, kind: input, shape index: {}]
  %s2 = inlined_call_operand.vmem [shape: f32[1,8], index: 2, kind: input, shape index: {}]
  %s3 = inlined_call_operand.vmem [shape: f32[1,8], index: 3, kind: input, shape index: {}]
  %s4 = inlined_call_operand.vmem [shape: f32[1,8], index: 4, kind: input, shape index: {}]
  %s5 = inlined_call_operand.vmem [shape: bf16[72,8], index: 5, kind: input, shape index: {}]
  %s6 = inlined_call_operand.vmem [shape: f32[1,8], index: 6, kind: input, shape index: {}]
  %s7 = inlined_call_operand.vmem [shape: f32[1,8], index: 7, kind: input, shape index: {}]
  %s8 = inlined_call_operand.vmem [shape: f32[1,8], index: 8, kind: input, shape index: {}]
  %s9 = inlined_call_operand.vmem [shape: f32[128,8], index: 9, kind: output, shape index: {}]
  %s10 = sld [smem:[#allocation0]]
  $region46: #{down_forward.1} parent=0
    _
  %s12 = ssub.s32 1, %s10
  %s13 = scalar_select 0, %s12, %s10
  // Predicated region
  $region2: #{down_forward.1} parent=0 // pred_check
    _
  $region3: #{down_forward.1} parent=0 // pred_check_branch
    %15 = sbr.rel (0) target = $region5
  $region4: #{down_forward.1} parent=0 // pred_region
    _
  $region5: #{down_forward.1} parent=0 // pred_fallthru
    _
  // Predicated region
  $region6: #{down_forward.1} parent=0 // pred_check
    _
  $region7: #{down_forward.1} parent=0 // pred_check_branch
    %17 = sbr.rel (0) target = $region9
  $region8: #{down_forward.1} parent=0 // pred_region
    _
  $region9: #{down_forward.1} parent=0 // pred_fallthru
    _
  // Predicated region
  $region10: #{down_forward.1} parent=0 // pred_check
    _
  $region11: #{down_forward.1} parent=0 // pred_check_branch
    %19 = sbr.rel (0) target = $region13
  $region12: #{down_forward.1} parent=0 // pred_region
    _
  $region13: #{down_forward.1} parent=0 // pred_fallthru
    _
  // Predicated region
  $region14: #{down_forward.1} parent=0 // pred_check
    _
  $region15: #{down_forward.1} parent=0 // pred_check_branch
    %21 = sbr.rel (0) target = $region17
  $region16: #{down_forward.1} parent=0 // pred_region
    _
  $region17: #{down_forward.1} parent=0 // pred_fallthru
    _
  // Predicated region
  $region18: #{down_forward.1} parent=0 // pred_check
    _
  $region19: #{down_forward.1} parent=0 // pred_check_branch
    %23 = sbr.rel (0) target = $region21
  $region20: #{down_forward.1} parent=0 // pred_region
    _
  $region21: #{down_forward.1} parent=0 // pred_fallthru
    _
  // Predicated region
  $region22: #{down_forward.1} parent=0 // pred_check
    _
  $region23: #{down_forward.1} parent=0 // pred_check_branch
    %25 = sbr.rel (0) target = $region25
  $region24: #{down_forward.1} parent=0 // pred_region
    _
  $region25: #{down_forward.1} parent=0 // pred_fallthru
    _
  // Predicated region
  $region26: #{down_forward.1} parent=0 // pred_check
    _
  $region27: #{down_forward.1} parent=0 // pred_check_branch
    %27 = sbr.rel (0) target = $region29
  $region28: #{down_forward.1} parent=0 // pred_region
    _
  $region29: #{down_forward.1} parent=0 // pred_fallthru
    _
  // Predicated region
  $region30: #{down_forward.1} parent=0 // pred_check
    _
  $region31: #{down_forward.1} parent=0 // pred_check_branch
    %29 = sbr.rel (0) target = $region33
  $region32: #{down_forward.1} parent=0 // pred_region
    _
  $region33: #{down_forward.1} parent=0 // pred_fallthru
    _
  // Predicated region
  $region34: #{down_forward.1} parent=0 // pred_check
    _
  $region35: #{down_forward.1} parent=0 // pred_check_branch
    %31 = sbr.rel (0) target = $region37
  $region36: #{down_forward.1} parent=0 // pred_region
    _
  $region37: #{down_forward.1} parent=0 // pred_fallthru
    _
  %vm33 = vcmask 31744
  %34 = vst.msk [vmem:[#allocation2] sm:$0xff] %vm33, 0.0
  %vm35 = vcmask 25600
  %36 = vst.msk [vmem:[#allocation2 + $0x8] sm:$0x3] %vm35, 0.0
  %37 = vst.msk [vmem:[#allocation2 + $0xa0] sm:$0xff] %vm33, 0.0
  %38 = vst.msk [vmem:[#allocation2 + $0xa8] sm:$0x3] %vm35, 0.0
  %s39 = scalar_lea.vmem [#allocation2], 144
  %40 = vst.msk [vmem:[%s39] sm:$0xff] %vm33, 0.0
  %41 = vst.msk [vmem:[%s39 + $0x8] sm:$0x3] %vm35, 0.0
  %42 = vst.msk [vmem:[%s39 + $0xa0] sm:$0xff] %vm33, 0.0
  %43 = vst.msk [vmem:[%s39 + $0xa8] sm:$0x3] %vm35, 0.0
  %vm44 = vcmask 24576
  %45 = vst.msk [vmem:[#allocation2] sm:$0x1] %vm44, 0.0
  %46 = vst.msk [vmem:[#allocation2 + $0x10] sm:$0x1] %vm44, 0.0
  %47 = vst.msk [vmem:[#allocation2 + $0x20] sm:$0x1] %vm44, 0.0
  %48 = vst.msk [vmem:[#allocation2 + $0x30] sm:$0x1] %vm44, 0.0
  %49 = vst.msk [vmem:[#allocation2 + $0x40] sm:$0x1] %vm44, 0.0
  %50 = vst.msk [vmem:[#allocation2 + $0x50] sm:$0x1] %vm44, 0.0
  %51 = vst.msk [vmem:[#allocation2 + $0x60] sm:$0x1] %vm44, 0.0
  %52 = vst.msk [vmem:[#allocation2 + $0x70] sm:$0x1] %vm44, 0.0
  %53 = vst.msk [vmem:[#allocation2 + $0x80] sm:$0x1] %vm44, 0.0
  %54 = vst.msk [vmem:[#allocation2 + $0x90] sm:$0x1] %vm44, 0.0
  %55 = vst.msk [vmem:[#allocation2 + $0xa0] sm:$0x1] %vm44, 0.0
  %56 = vst.msk [vmem:[#allocation2 + $0xb0] sm:$0x1] %vm44, 0.0
  %57 = vst.msk [vmem:[#allocation2 + $0xc0] sm:$0x1] %vm44, 0.0
  %58 = vst.msk [vmem:[#allocation2 + $0xd0] sm:$0x1] %vm44, 0.0
  %59 = vst.msk [vmem:[#allocation2 + $0xe0] sm:$0x1] %vm44, 0.0
  %60 = vst.msk [vmem:[#allocation2 + $0xf0] sm:$0x1] %vm44, 0.0
  %61 = vst.msk [vmem:[#allocation2 + $0x100] sm:$0x1] %vm44, 0.0
  %62 = vst.msk [vmem:[#allocation2 + $0x110] sm:$0x1] %vm44, 0.0
  %63 = vst.msk [vmem:[#allocation2 + $0x120] sm:$0x1] %vm44, 0.0
  %64 = vst.msk [vmem:[#allocation2 + $0x130] sm:$0x1] %vm44, 0.0
  %65 = vst.msk [vmem:[#allocation2 + $0x9] sm:$0x1] %vm44, 0.0
  %66 = vst.msk [vmem:[#allocation2 + $0x19] sm:$0x1] %vm44, 0.0
  %67 = vst.msk [vmem:[#allocation2 + $0x29] sm:$0x1] %vm44, 0.0
  %68 = vst.msk [vmem:[#allocation2 + $0x39] sm:$0x1] %vm44, 0.0
  %69 = vst.msk [vmem:[#allocation2 + $0x49] sm:$0x1] %vm44, 0.0
  %70 = vst.msk [vmem:[#allocation2 + $0x59] sm:$0x1] %vm44, 0.0
  %71 = vst.msk [vmem:[#allocation2 + $0x69] sm:$0x1] %vm44, 0.0
  %72 = vst.msk [vmem:[#allocation2 + $0x79] sm:$0x1] %vm44, 0.0
  %73 = vst.msk [vmem:[#allocation2 + $0x89] sm:$0x1] %vm44, 0.0
  %74 = vst.msk [vmem:[#allocation2 + $0x99] sm:$0x1] %vm44, 0.0
  %75 = vst.msk [vmem:[#allocation2 + $0xa9] sm:$0x1] %vm44, 0.0
  %76 = vst.msk [vmem:[#allocation2 + $0xb9] sm:$0x1] %vm44, 0.0
  %77 = vst.msk [vmem:[#allocation2 + $0xc9] sm:$0x1] %vm44, 0.0
  %78 = vst.msk [vmem:[#allocation2 + $0xd9] sm:$0x1] %vm44, 0.0
  %79 = vst.msk [vmem:[#allocation2 + $0xe9] sm:$0x1] %vm44, 0.0
  %80 = vst.msk [vmem:[#allocation2 + $0xf9] sm:$0x1] %vm44, 0.0
  %81 = vst.msk [vmem:[#allocation2 + $0x109] sm:$0x1] %vm44, 0.0
  %82 = vst.msk [vmem:[#allocation2 + $0x119] sm:$0x1] %vm44, 0.0
  %83 = vst.msk [vmem:[#allocation2 + $0x129] sm:$0x1] %vm44, 0.0
  %84 = vst.msk [vmem:[#allocation2 + $0x139] sm:$0x1] %vm44, 0.0
  %vm85 = vcmask 64512
  %86 = vst.msk [vmem:[#allocation4] sm:$0xff] %vm85, 0.0
  %vm87 = vcmask 58368
  %88 = vst.msk [vmem:[#allocation4 + $0x8] sm:$0x3] %vm87, 0.0
  %89 = vst.msk [vmem:[#allocation4 + $0xa0] sm:$0xff] %vm85, 0.0
  %90 = vst.msk [vmem:[#allocation4 + $0xa8] sm:$0x3] %vm87, 0.0
  %s91 = scalar_lea.vmem [#allocation4], 144
  %92 = vst.msk [vmem:[%s91] sm:$0xff] %vm85, 0.0
  %93 = vst.msk [vmem:[%s91 + $0x8] sm:$0x3] %vm87, 0.0
  %94 = vst.msk [vmem:[%s91 + $0xa0] sm:$0xff] %vm85, 0.0
  %95 = vst.msk [vmem:[%s91 + $0xa8] sm:$0x3] %vm87, 0.0
  %vm96 = vcmask 57344
  %97 = vst.msk [vmem:[#allocation4] sm:$0x1] %vm96, 0.0
  %98 = vst.msk [vmem:[#allocation4 + $0x10] sm:$0x1] %vm96, 0.0
  %99 = vst.msk [vmem:[#allocation4 + $0x20] sm:$0x1] %vm96, 0.0
  %100 = vst.msk [vmem:[#allocation4 + $0x30] sm:$0x1] %vm96, 0.0
  %101 = vst.msk [vmem:[#allocation4 + $0x40] sm:$0x1] %vm96, 0.0
  %102 = vst.msk [vmem:[#allocation4 + $0x50] sm:$0x1] %vm96, 0.0
  %103 = vst.msk [vmem:[#allocation4 + $0x60] sm:$0x1] %vm96, 0.0
  %104 = vst.msk [vmem:[#allocation4 + $0x70] sm:$0x1] %vm96, 0.0
  %105 = vst.msk [vmem:[#allocation4 + $0x80] sm:$0x1] %vm96, 0.0
  %106 = vst.msk [vmem:[#allocation4 + $0x90] sm:$0x1] %vm96, 0.0
  %107 = vst.msk [vmem:[#allocation4 + $0xa0] sm:$0x1] %vm96, 0.0
  %108 = vst.msk [vmem:[#allocation4 + $0xb0] sm:$0x1] %vm96, 0.0
  %109 = vst.msk [vmem:[#allocation4 + $0xc0] sm:$0x1] %vm96, 0.0
  %110 = vst.msk [vmem:[#allocation4 + $0xd0] sm:$0x1] %vm96, 0.0
  %111 = vst.msk [vmem:[#allocation4 + $0xe0] sm:$0x1] %vm96, 0.0
  %112 = vst.msk [vmem:[#allocation4 + $0xf0] sm:$0x1] %vm96, 0.0
  %113 = vst.msk [vmem:[#allocation4 + $0x100] sm:$0x1] %vm96, 0.0
  %114 = vst.msk [vmem:[#allocation4 + $0x110] sm:$0x1] %vm96, 0.0
  %115 = vst.msk [vmem:[#allocation4 + $0x120] sm:$0x1] %vm96, 0.0
  %116 = vst.msk [vmem:[#allocation4 + $0x130] sm:$0x1] %vm96, 0.0
  %117 = vst.msk [vmem:[#allocation4 + $0x9] sm:$0x1] %vm96, 0.0
  %118 = vst.msk [vmem:[#allocation4 + $0x19] sm:$0x1] %vm96, 0.0
  %119 = vst.msk [vmem:[#allocation4 + $0x29] sm:$0x1] %vm96, 0.0
  %120 = vst.msk [vmem:[#allocation4 + $0x39] sm:$0x1] %vm96, 0.0
  %121 = vst.msk [vmem:[#allocation4 + $0x49] sm:$0x1] %vm96, 0.0
  %122 = vst.msk [vmem:[#allocation4 + $0x59] sm:$0x1] %vm96, 0.0
  %123 = vst.msk [vmem:[#allocation4 + $0x69] sm:$0x1] %vm96, 0.0
  %124 = vst.msk [vmem:[#allocation4 + $0x79] sm:$0x1] %vm96, 0.0
  %125 = vst.msk [vmem:[#allocation4 + $0x89] sm:$0x1] %vm96, 0.0
  %126 = vst.msk [vmem:[#allocation4 + $0x99] sm:$0x1] %vm96, 0.0
  %127 = vst.msk [vmem:[#allocation4 + $0xa9] sm:$0x1] %vm96, 0.0
  %128 = vst.msk [vmem:[#allocation4 + $0xb9] sm:$0x1] %vm96, 0.0
  %129 = vst.msk [vmem:[#allocation4 + $0xc9] sm:$0x1] %vm96, 0.0
  %130 = vst.msk [vmem:[#allocation4 + $0xd9] sm:$0x1] %vm96, 0.0
  %131 = vst.msk [vmem:[#allocation4 + $0xe9] sm:$0x1] %vm96, 0.0
  %132 = vst.msk [vmem:[#allocation4 + $0xf9] sm:$0x1] %vm96, 0.0
  %133 = vst.msk [vmem:[#allocation4 + $0x109] sm:$0x1] %vm96, 0.0
  %134 = vst.msk [vmem:[#allocation4 + $0x119] sm:$0x1] %vm96, 0.0
  %135 = vst.msk [vmem:[#allocation4 + $0x129] sm:$0x1] %vm96, 0.0
  %136 = vst.msk [vmem:[#allocation4 + $0x139] sm:$0x1] %vm96, 0.0
  %v137 = vld [vmem:[%s0] sm:$0xff]
  %v138 = vld [vmem:[%s0 + $0x8] sm:$0xff]
  %v139 = vld [vmem:[%s0 + $0x10] sm:$0xff]
  %v140 = vld [vmem:[%s0 + $0x18] sm:$0xff]
  %v141 = vld [vmem:[%s0 + $0x20] sm:$0xff]
  %v142 = vld [vmem:[%s0 + $0x28] sm:$0xff]
  %v143 = vld [vmem:[%s0 + $0x30] sm:$0xff]
  %v144 = vld [vmem:[%s0 + $0x38] sm:$0xff]
  %v145 = vld [vmem:[%s0 + $0x40] sm:$0xff]
  %v146 = vld [vmem:[%s0 + $0x48] sm:$0xff]
  %v147 = vld [vmem:[%s0 + $0x50] sm:$0xff]
  %v148 = vld [vmem:[%s0 + $0x58] sm:$0xff]
  %v149 = vld [vmem:[%s0 + $0x60] sm:$0xff]
  %v150 = vld [vmem:[%s0 + $0x68] sm:$0xff]
  %v151 = vld [vmem:[%s0 + $0x70] sm:$0xff]
  %v152 = vld [vmem:[%s0 + $0x78] sm:$0xff]
  %v153 = vmax.f32 %v137, %v138
  %v154 = vmax.f32 %v139, %v140
  %v155 = vmax.f32 %v141, %v142
  %v156 = vmax.f32 %v143, %v144
  %v157 = vmax.f32 %v145, %v146
  %v158 = vmax.f32 %v147, %v148
  %v159 = vmax.f32 %v149, %v150
  %v160 = vmax.f32 %v151, %v152
  %169 = vrot.lane.b32.xlu0 %v153, 124
  %v170 = vpop.permute.xlu0 %169
  %171 = vrot.lane.b32.xlu0 %v154, 124
  %v172 = vpop.permute.xlu0 %171
  %173 = vrot.lane.b32.xlu0 %v155, 124
  %v174 = vpop.permute.xlu0 %173
  %175 = vrot.lane.b32.xlu0 %v156, 124
  %v176 = vpop.permute.xlu0 %175
  %177 = vrot.lane.b32.xlu0 %v157, 124
  %v178 = vpop.permute.xlu0 %177
  %179 = vrot.lane.b32.xlu0 %v158, 124
  %v180 = vpop.permute.xlu0 %179
  %181 = vrot.lane.b32.xlu0 %v159, 124
  %v182 = vpop.permute.xlu0 %181
  %183 = vrot.lane.b32.xlu0 %v160, 124
  %v184 = vpop.permute.xlu0 %183
  %v193 = vmax.f32 %v153, %v170
  %v194 = vmax.f32 %v154, %v172
  %v195 = vmax.f32 %v155, %v174
  %v196 = vmax.f32 %v156, %v176
  %v197 = vmax.f32 %v157, %v178
  %v198 = vmax.f32 %v158, %v180
  %v199 = vmax.f32 %v159, %v182
  %v200 = vmax.f32 %v160, %v184
  %s201 = scalar_lea.vmem [#allocation2], 16
  %202 = vst.msk [vmem:[%s201 + $0x1] sm:$0xff] %vm33, %v193
  %203 = vst.msk [vmem:[%s201 + $0x11] sm:$0xff] %vm33, %v194
  %204 = vst.msk [vmem:[%s201 + $0x21] sm:$0xff] %vm33, %v195
  %205 = vst.msk [vmem:[%s201 + $0x31] sm:$0xff] %vm33, %v196
  %206 = vst.msk [vmem:[%s201 + $0x41] sm:$0xff] %vm33, %v197
  %207 = vst.msk [vmem:[%s201 + $0x51] sm:$0xff] %vm33, %v198
  %208 = vst.msk [vmem:[%s201 + $0x61] sm:$0xff] %vm33, %v199
  %209 = vst.msk [vmem:[%s201 + $0x71] sm:$0xff] %vm33, %v200
  %s210 = scalar_lea.vmem %s0, 128
  %v211 = vld [vmem:[%s210] sm:$0xff]
  %v212 = vld [vmem:[%s210 + $0x8] sm:$0xff]
  %v213 = vld [vmem:[%s210 + $0x10] sm:$0xff]
  %v214 = vld [vmem:[%s210 + $0x18] sm:$0xff]
  %v215 = vld [vmem:[%s210 + $0x20] sm:$0xff]
  %v216 = vld [vmem:[%s210 + $0x28] sm:$0xff]
  %v217 = vld [vmem:[%s210 + $0x30] sm:$0xff]
  %v218 = vld [vmem:[%s210 + $0x38] sm:$0xff]
  %v219 = vld [vmem:[%s210 + $0x40] sm:$0xff]
  %v220 = vld [vmem:[%s210 + $0x48] sm:$0xff]
  %v221 = vld [vmem:[%s210 + $0x50] sm:$0xff]
  %v222 = vld [vmem:[%s210 + $0x58] sm:$0xff]
  %v223 = vld [vmem:[%s210 + $0x60] sm:$0xff]
  %v224 = vld [vmem:[%s210 + $0x68] sm:$0xff]
  %v225 = vld [vmem:[%s210 + $0x70] sm:$0xff]
  %v226 = vld [vmem:[%s210 + $0x78] sm:$0xff]
  %v227 = vmax.f32 %v211, %v212
  %v228 = vmax.f32 %v213, %v214
  %v229 = vmax.f32 %v215, %v216
  %v230 = vmax.f32 %v217, %v218
  %v231 = vmax.f32 %v219, %v220
  %v232 = vmax.f32 %v221, %v222
  %v233 = vmax.f32 %v223, %v224
  %v234 = vmax.f32 %v225, %v226
  %243 = vrot.lane.b32.xlu0 %v227, 124
  %v244 = vpop.permute.xlu0 %243
  %245 = vrot.lane.b32.xlu0 %v228, 124
  %v246 = vpop.permute.xlu0 %245
  %247 = vrot.lane.b32.xlu0 %v229, 124
  %v248 = vpop.permute.xlu0 %247
  %249 = vrot.lane.b32.xlu0 %v230, 124
  %v250 = vpop.permute.xlu0 %249
  %251 = vrot.lane.b32.xlu0 %v231, 124
  %v252 = vpop.permute.xlu0 %251
  %253 = vrot.lane.b32.xlu0 %v232, 124
  %v254 = vpop.permute.xlu0 %253
  %255 = vrot.lane.b32.xlu0 %v233, 124
  %v256 = vpop.permute.xlu0 %255
  %257 = vrot.lane.b32.xlu0 %v234, 124
  %v258 = vpop.permute.xlu0 %257
  %v267 = vmax.f32 %v227, %v244
  %v268 = vmax.f32 %v228, %v246
  %v269 = vmax.f32 %v229, %v248
  %v270 = vmax.f32 %v230, %v250
  %v271 = vmax.f32 %v231, %v252
  %v272 = vmax.f32 %v232, %v254
  %v273 = vmax.f32 %v233, %v256
  %v274 = vmax.f32 %v234, %v258
  %s275 = scalar_lea.vmem [#allocation2], 176
  %276 = vst.msk [vmem:[%s275 + $0x1] sm:$0xff] %vm33, %v267
  %277 = vst.msk [vmem:[%s275 + $0x11] sm:$0xff] %vm33, %v268
  %278 = vst.msk [vmem:[%s275 + $0x21] sm:$0xff] %vm33, %v269
  %279 = vst.msk [vmem:[%s275 + $0x31] sm:$0xff] %vm33, %v270
  %280 = vst.msk [vmem:[%s275 + $0x41] sm:$0xff] %vm33, %v271
  %281 = vst.msk [vmem:[%s275 + $0x51] sm:$0xff] %vm33, %v272
  %282 = vst.msk [vmem:[%s275 + $0x61] sm:$0xff] %vm33, %v273
  %283 = vst.msk [vmem:[%s275 + $0x71] sm:$0xff] %vm33, %v274
  %v284 = vld [vmem:[#allocation2] sm:$0xff]
  %v285 = vld [vmem:[#allocation2 + $0x10] sm:$0xff]
  %v286 = vld [vmem:[#allocation2 + $0x20] sm:$0xff]
  %v287 = vld [vmem:[#allocation2 + $0x30] sm:$0xff]
  %v288 = vld [vmem:[#allocation2 + $0x40] sm:$0xff]
  %v289 = vld [vmem:[#allocation2 + $0x50] sm:$0xff]
  %v290 = vld [vmem:[#allocation2 + $0x60] sm:$0xff]
  %v291 = vld [vmem:[#allocation2 + $0x70] sm:$0xff]
  %v292 = vpack.c.bf16 %v284, %v284
  %v293 = vpack.c.bf16 %v285, %v285
  %v294 = vpack.c.bf16 %v286, %v286
  %v295 = vpack.c.bf16 %v287, %v287
  %v296 = vpack.c.bf16 %v288, %v288
  %v297 = vpack.c.bf16 %v289, %v289
  %v298 = vpack.c.bf16 %v290, %v290
  %v299 = vpack.c.bf16 %v291, %v291
  %vm300 = vcmask 27648
  %301 = vst.msk [vmem:[#allocation3] sm:$0xf] %vm300, %v292
  %302 = vst.msk [vmem:[#allocation3 + $0x4] sm:$0xf] %vm300, %v293
  %303 = vst.msk [vmem:[#allocation3 + $0x8] sm:$0xf] %vm300, %v294
  %304 = vst.msk [vmem:[#allocation3 + $0xc] sm:$0xf] %vm300, %v295
  %305 = vst.msk [vmem:[#allocation3 + $0x10] sm:$0xf] %vm300, %v296
  %306 = vst.msk [vmem:[#allocation3 + $0x14] sm:$0xf] %vm300, %v297
  %307 = vst.msk [vmem:[#allocation3 + $0x18] sm:$0xf] %vm300, %v298
  %308 = vst.msk [vmem:[#allocation3 + $0x1c] sm:$0xf] %vm300, %v299
  %v309 = vld [vmem:[#allocation2 + $0x1] sm:$0xff]
  %v310 = vld [vmem:[#allocation2 + $0x11] sm:$0xff]
  %v311 = vld [vmem:[#allocation2 + $0x21] sm:$0xff]
  %v312 = vld [vmem:[#allocation2 + $0x31] sm:$0xff]
  %v313 = vld [vmem:[#allocation2 + $0x41] sm:$0xff]
  %v314 = vld [vmem:[#allocation2 + $0x51] sm:$0xff]
  %v315 = vld [vmem:[#allocation2 + $0x61] sm:$0xff]
  %v316 = vld [vmem:[#allocation2 + $0x71] sm:$0xff]
  %v317 = vpack.c.bf16 %v309, %v309
  %v318 = vpack.c.bf16 %v310, %v310
  %v319 = vpack.c.bf16 %v311, %v311
  %v320 = vpack.c.bf16 %v312, %v312
  %v321 = vpack.c.bf16 %v313, %v313
  %v322 = vpack.c.bf16 %v314, %v314
  %v323 = vpack.c.bf16 %v315, %v315
  %v324 = vpack.c.bf16 %v316, %v316
  %333 = vrot.lane.b32.xlu0 %v317, 4
  %v334 = vpop.permute.xlu0 %333
  %335 = vrot.lane.b32.xlu0 %v318, 4
  %v336 = vpop.permute.xlu0 %335
  %337 = vrot.lane.b32.xlu0 %v319, 4
  %v338 = vpop.permute.xlu0 %337
  %339 = vrot.lane.b32.xlu0 %v320, 4
  %v340 = vpop.permute.xlu0 %339
  %341 = vrot.lane.b32.xlu0 %v321, 4
  %v342 = vpop.permute.xlu0 %341
  %343 = vrot.lane.b32.xlu0 %v322, 4
  %v344 = vpop.permute.xlu0 %343
  %345 = vrot.lane.b32.xlu0 %v323, 4
  %v346 = vpop.permute.xlu0 %345
  %347 = vrot.lane.b32.xlu0 %v324, 4
  %v348 = vpop.permute.xlu0 %347
  %vm357 = vcmask 60448
  %358 = vst.msk [vmem:[#allocation3] sm:$0xf] %vm357, %v334
  %359 = vst.msk [vmem:[#allocation3 + $0x4] sm:$0xf] %vm357, %v336
  %360 = vst.msk [vmem:[#allocation3 + $0x8] sm:$0xf] %vm357, %v338
  %361 = vst.msk [vmem:[#allocation3 + $0xc] sm:$0xf] %vm357, %v340
  %362 = vst.msk [vmem:[#allocation3 + $0x10] sm:$0xf] %vm357, %v342
  %363 = vst.msk [vmem:[#allocation3 + $0x14] sm:$0xf] %vm357, %v344
  %364 = vst.msk [vmem:[#allocation3 + $0x18] sm:$0xf] %vm357, %v346
  %365 = vst.msk [vmem:[#allocation3 + $0x1c] sm:$0xf] %vm357, %v348
  %v366 = vld [vmem:[#allocation2 + $0x2] sm:$0xff]
  %v367 = vld [vmem:[#allocation2 + $0x12] sm:$0xff]
  %v368 = vld [vmem:[#allocation2 + $0x22] sm:$0xff]
  %v369 = vld [vmem:[#allocation2 + $0x32] sm:$0xff]
  %v370 = vld [vmem:[#allocation2 + $0x42] sm:$0xff]
  %v371 = vld [vmem:[#allocation2 + $0x52] sm:$0xff]
  %v372 = vld [vmem:[#allocation2 + $0x62] sm:$0xff]
  %v373 = vld [vmem:[#allocation2 + $0x72] sm:$0xff]
  %v374 = vpack.c.bf16 %v366, %v366
  %v375 = vpack.c.bf16 %v367, %v367
  %v376 = vpack.c.bf16 %v368, %v368
  %v377 = vpack.c.bf16 %v369, %v369
  %v378 = vpack.c.bf16 %v370, %v370
  %v379 = vpack.c.bf16 %v371, %v371
  %v380 = vpack.c.bf16 %v372, %v372
  %v381 = vpack.c.bf16 %v373, %v373
  %390 = vrot.lane.b32.xlu0 %v374, 8
  %v391 = vpop.permute.xlu0 %390
  %392 = vrot.lane.b32.xlu0 %v375, 8
  %v393 = vpop.permute.xlu0 %392
  %394 = vrot.lane.b32.xlu0 %v376, 8
  %v395 = vpop.permute.xlu0 %394
  %396 = vrot.lane.b32.xlu0 %v377, 8
  %v397 = vpop.permute.xlu0 %396
  %398 = vrot.lane.b32.xlu0 %v378, 8
  %v399 = vpop.permute.xlu0 %398
  %400 = vrot.lane.b32.xlu0 %v379, 8
  %v401 = vpop.permute.xlu0 %400
  %402 = vrot.lane.b32.xlu0 %v380, 8
  %v403 = vpop.permute.xlu0 %402
  %404 = vrot.lane.b32.xlu0 %v381, 8
  %v405 = vpop.permute.xlu0 %404
  %vm414 = vcmask 93248
  %415 = vst.msk [vmem:[#allocation3] sm:$0xf] %vm414, %v391
  %416 = vst.msk [vmem:[#allocation3 + $0x4] sm:$0xf] %vm414, %v393
  %417 = vst.msk [vmem:[#allocation3 + $0x8] sm:$0xf] %vm414, %v395
  %418 = vst.msk [vmem:[#allocation3 + $0xc] sm:$0xf] %vm414, %v397
  %419 = vst.msk [vmem:[#allocation3 + $0x10] sm:$0xf] %vm414, %v399
  %420 = vst.msk [vmem:[#allocation3 + $0x14] sm:$0xf] %vm414, %v401
  %421 = vst.msk [vmem:[#allocation3 + $0x18] sm:$0xf] %vm414, %v403
  %422 = vst.msk [vmem:[#allocation3 + $0x1c] sm:$0xf] %vm414, %v405
  %v423 = vld [vmem:[%s201] sm:$0xff]
  %v424 = vld [vmem:[%s201 + $0x10] sm:$0xff]
  %v425 = vld [vmem:[%s201 + $0x20] sm:$0xff]
  %v426 = vld [vmem:[%s201 + $0x30] sm:$0xff]
  %v427 = vld [vmem:[%s201 + $0x40] sm:$0xff]
  %v428 = vld [vmem:[%s201 + $0x50] sm:$0xff]
  %v429 = vld [vmem:[%s201 + $0x60] sm:$0xff]
  %v430 = vld [vmem:[%s201 + $0x70] sm:$0xff]
  %v431 = vpack.c.bf16 %v423, %v423
  %v432 = vpack.c.bf16 %v424, %v424
  %v433 = vpack.c.bf16 %v425, %v425
  %v434 = vpack.c.bf16 %v426, %v426
  %v435 = vpack.c.bf16 %v427, %v427
  %v436 = vpack.c.bf16 %v428, %v428
  %v437 = vpack.c.bf16 %v429, %v429
  %v438 = vpack.c.bf16 %v430, %v430
  %447 = vrot.lane.b32.xlu0 %v431, 12
  %v448 = vpop.permute.xlu0 %447
  %449 = vrot.lane.b32.xlu0 %v432, 12
  %v450 = vpop.permute.xlu0 %449
  %451 = vrot.lane.b32.xlu0 %v433, 12
  %v452 = vpop.permute.xlu0 %451
  %453 = vrot.lane.b32.xlu0 %v434, 12
  %v454 = vpop.permute.xlu0 %453
  %455 = vrot.lane.b32.xlu0 %v435, 12
  %v456 = vpop.permute.xlu0 %455
  %457 = vrot.lane.b32.xlu0 %v436, 12
  %v458 = vpop.permute.xlu0 %457
  %459 = vrot.lane.b32.xlu0 %v437, 12
  %v460 = vpop.permute.xlu0 %459
  %461 = vrot.lane.b32.xlu0 %v438, 12
  %v462 = vpop.permute.xlu0 %461
  %vm471 = vcmask 126048
  %472 = vst.msk [vmem:[#allocation3] sm:$0xf] %vm471, %v448
  %473 = vst.msk [vmem:[#allocation3 + $0x4] sm:$0xf] %vm471, %v450
  %474 = vst.msk [vmem:[#allocation3 + $0x8] sm:$0xf] %vm471, %v452
  %475 = vst.msk [vmem:[#allocation3 + $0xc] sm:$0xf] %vm471, %v454
  %476 = vst.msk [vmem:[#allocation3 + $0x10] sm:$0xf] %vm471, %v456
  %477 = vst.msk [vmem:[#allocation3 + $0x14] sm:$0xf] %vm471, %v458
  %478 = vst.msk [vmem:[#allocation3 + $0x18] sm:$0xf] %vm471, %v460
  %479 = vst.msk [vmem:[#allocation3 + $0x1c] sm:$0xf] %vm471, %v462
  %v480 = vld [vmem:[%s201 + $0x1] sm:$0xff]
  %v481 = vld [vmem:[%s201 + $0x11] sm:$0xff]
  %v482 = vld [vmem:[%s201 + $0x21] sm:$0xff]
  %v483 = vld [vmem:[%s201 + $0x31] sm:$0xff]
  %v484 = vld [vmem:[%s201 + $0x41] sm:$0xff]
  %v485 = vld [vmem:[%s201 + $0x51] sm:$0xff]
  %v486 = vld [vmem:[%s201 + $0x61] sm:$0xff]
  %v487 = vld [vmem:[%s201 + $0x71] sm:$0xff]
  %v488 = vpack.c.bf16 %v480, %v480
  %v489 = vpack.c.bf16 %v481, %v481
  %v490 = vpack.c.bf16 %v482, %v482
  %v491 = vpack.c.bf16 %v483, %v483
  %v492 = vpack.c.bf16 %v484, %v484
  %v493 = vpack.c.bf16 %v485, %v485
  %v494 = vpack.c.bf16 %v486, %v486
  %v495 = vpack.c.bf16 %v487, %v487
  %504 = vrot.lane.b32.xlu0 %v488, 16
  %v505 = vpop.permute.xlu0 %504
  %506 = vrot.lane.b32.xlu0 %v489, 16
  %v507 = vpop.permute.xlu0 %506
  %508 = vrot.lane.b32.xlu0 %v490, 16
  %v509 = vpop.permute.xlu0 %508
  %510 = vrot.lane.b32.xlu0 %v491, 16
  %v511 = vpop.permute.xlu0 %510
  %512 = vrot.lane.b32.xlu0 %v492, 16
  %v513 = vpop.permute.xlu0 %512
  %514 = vrot.lane.b32.xlu0 %v493, 16
  %v515 = vpop.permute.xlu0 %514
  %516 = vrot.lane.b32.xlu0 %v494, 16
  %v517 = vpop.permute.xlu0 %516
  %518 = vrot.lane.b32.xlu0 %v495, 16
  %v519 = vpop.permute.xlu0 %518
  %vm528 = vcmask 158848
  %529 = vst.msk [vmem:[#allocation3] sm:$0xf] %vm528, %v505
  %530 = vst.msk [vmem:[#allocation3 + $0x4] sm:$0xf] %vm528, %v507
  %531 = vst.msk [vmem:[#allocation3 + $0x8] sm:$0xf] %vm528, %v509
  %532 = vst.msk [vmem:[#allocation3 + $0xc] sm:$0xf] %vm528, %v511
  %533 = vst.msk [vmem:[#allocation3 + $0x10] sm:$0xf] %vm528, %v513
  %534 = vst.msk [vmem:[#allocation3 + $0x14] sm:$0xf] %vm528, %v515
  %535 = vst.msk [vmem:[#allocation3 + $0x18] sm:$0xf] %vm528, %v517
  %536 = vst.msk [vmem:[#allocation3 + $0x1c] sm:$0xf] %vm528, %v519
  %v537 = vld [vmem:[%s201 + $0x2] sm:$0xff]
  %v538 = vld [vmem:[%s201 + $0x12] sm:$0xff]
  %v539 = vld [vmem:[%s201 + $0x22] sm:$0xff]
  %v540 = vld [vmem:[%s201 + $0x32] sm:$0xff]
  %v541 = vld [vmem:[%s201 + $0x42] sm:$0xff]
  %v542 = vld [vmem:[%s201 + $0x52] sm:$0xff]
  %v543 = vld [vmem:[%s201 + $0x62] sm:$0xff]
  %v544 = vld [vmem:[%s201 + $0x72] sm:$0xff]
  %v545 = vpack.c.bf16 %v537, %v537
  %v546 = vpack.c.bf16 %v538, %v538
  %v547 = vpack.c.bf16 %v539, %v539
  %v548 = vpack.c.bf16 %v540, %v540
  %v549 = vpack.c.bf16 %v541, %v541
  %v550 = vpack.c.bf16 %v542, %v542
  %v551 = vpack.c.bf16 %v543, %v543
  %v552 = vpack.c.bf16 %v544, %v544
  %561 = vrot.lane.b32.xlu0 %v545, 20
  %v562 = vpop.permute.xlu0 %561
  %563 = vrot.lane.b32.xlu0 %v546, 20
  %v564 = vpop.permute.xlu0 %563
  %565 = vrot.lane.b32.xlu0 %v547, 20
  %v566 = vpop.permute.xlu0 %565
  %567 = vrot.lane.b32.xlu0 %v548, 20
  %v568 = vpop.permute.xlu0 %567
  %569 = vrot.lane.b32.xlu0 %v549, 20
  %v570 = vpop.permute.xlu0 %569
  %571 = vrot.lane.b32.xlu0 %v550, 20
  %v572 = vpop.permute.xlu0 %571
  %573 = vrot.lane.b32.xlu0 %v551, 20
  %v574 = vpop.permute.xlu0 %573
  %575 = vrot.lane.b32.xlu0 %v552, 20
  %v576 = vpop.permute.xlu0 %575
  %vm585 = vcmask 191648
  %586 = vst.msk [vmem:[#allocation3] sm:$0xf] %vm585, %v562
  %587 = vst.msk [vmem:[#allocation3 + $0x4] sm:$0xf] %vm585, %v564
  %588 = vst.msk [vmem:[#allocation3 + $0x8] sm:$0xf] %vm585, %v566
  %589 = vst.msk [vmem:[#allocation3 + $0xc] sm:$0xf] %vm585, %v568
  %590 = vst.msk [vmem:[#allocation3 + $0x10] sm:$0xf] %vm585, %v570
  %591 = vst.msk [vmem:[#allocation3 + $0x14] sm:$0xf] %vm585, %v572
  %592 = vst.msk [vmem:[#allocation3 + $0x18] sm:$0xf] %vm585, %v574
  %593 = vst.msk [vmem:[#allocation3 + $0x1c] sm:$0xf] %vm585, %v576
  %s594 = scalar_lea.vmem [#allocation2], 32
  %v595 = vld [vmem:[%s594] sm:$0xff]
  %v596 = vld [vmem:[%s594 + $0x10] sm:$0xff]
  %v597 = vld [vmem:[%s594 + $0x20] sm:$0xff]
  %v598 = vld [vmem:[%s594 + $0x30] sm:$0xff]
  %v599 = vld [vmem:[%s594 + $0x40] sm:$0xff]
  %v600 = vld [vmem:[%s594 + $0x50] sm:$0xff]
  %v601 = vld [vmem:[%s594 + $0x60] sm:$0xff]
  %v602 = vld [vmem:[%s594 + $0x70] sm:$0xff]
  %v603 = vpack.c.bf16 %v595, %v595
  %v604 = vpack.c.bf16 %v596, %v596
  %v605 = vpack.c.bf16 %v597, %v597
  %v606 = vpack.c.bf16 %v598, %v598
  %v607 = vpack.c.bf16 %v599, %v599
  %v608 = vpack.c.bf16 %v600, %v600
  %v609 = vpack.c.bf16 %v601, %v601
  %v610 = vpack.c.bf16 %v602, %v602
  %619 = vrot.lane.b32.xlu0 %v603, 24
  %v620 = vpop.permute.xlu0 %619
  %621 = vrot.lane.b32.xlu0 %v604, 24
  %v622 = vpop.permute.xlu0 %621
  %623 = vrot.lane.b32.xlu0 %v605, 24
  %v624 = vpop.permute.xlu0 %623
  %625 = vrot.lane.b32.xlu0 %v606, 24
  %v626 = vpop.permute.xlu0 %625
  %627 = vrot.lane.b32.xlu0 %v607, 24
  %v628 = vpop.permute.xlu0 %627
  %629 = vrot.lane.b32.xlu0 %v608, 24
  %v630 = vpop.permute.xlu0 %629
  %631 = vrot.lane.b32.xlu0 %v609, 24
  %v632 = vpop.permute.xlu0 %631
  %633 = vrot.lane.b32.xlu0 %v610, 24
  %v634 = vpop.permute.xlu0 %633
  %vm643 = vcmask 224448
  %644 = vst.msk [vmem:[#allocation3] sm:$0xf] %vm643, %v620
  %645 = vst.msk [vmem:[#allocation3 + $0x4] sm:$0xf] %vm643, %v622
  %646 = vst.msk [vmem:[#allocation3 + $0x8] sm:$0xf] %vm643, %v624
  %647 = vst.msk [vmem:[#allocation3 + $0xc] sm:$0xf] %vm643, %v626
  %648 = vst.msk [vmem:[#allocation3 + $0x10] sm:$0xf] %vm643, %v628
  %649 = vst.msk [vmem:[#allocation3 + $0x14] sm:$0xf] %vm643, %v630
  %650 = vst.msk [vmem:[#allocation3 + $0x18] sm:$0xf] %vm643, %v632
  %651 = vst.msk [vmem:[#allocation3 + $0x1c] sm:$0xf] %vm643, %v634
  %v652 = vld [vmem:[%s594 + $0x1] sm:$0xff]
  %v653 = vld [vmem:[%s594 + $0x11] sm:$0xff]
  %v654 = vld [vmem:[%s594 + $0x21] sm:$0xff]
  %v655 = vld [vmem:[%s594 + $0x31] sm:$0xff]
  %v656 = vld [vmem:[%s594 + $0x41] sm:$0xff]
  %v657 = vld [vmem:[%s594 + $0x51] sm:$0xff]
  %v658 = vld [vmem:[%s594 + $0x61] sm:$0xff]
  %v659 = vld [vmem:[%s594 + $0x71] sm:$0xff]
  %v660 = vpack.c.bf16 %v652, %v652
  %v661 = vpack.c.bf16 %v653, %v653
  %v662 = vpack.c.bf16 %v654, %v654
  %v663 = vpack.c.bf16 %v655, %v655
  %v664 = vpack.c.bf16 %v656, %v656
  %v665 = vpack.c.bf16 %v657, %v657
  %v666 = vpack.c.bf16 %v658, %v658
  %v667 = vpack.c.bf16 %v659, %v659
  %676 = vrot.lane.b32.xlu0 %v660, 28
  %v677 = vpop.permute.xlu0 %676
  %678 = vrot.lane.b32.xlu0 %v661, 28
  %v679 = vpop.permute.xlu0 %678
  %680 = vrot.lane.b32.xlu0 %v662, 28
  %v681 = vpop.permute.xlu0 %680
  %682 = vrot.lane.b32.xlu0 %v663, 28
  %v683 = vpop.permute.xlu0 %682
  %684 = vrot.lane.b32.xlu0 %v664, 28
  %v685 = vpop.permute.xlu0 %684
  %686 = vrot.lane.b32.xlu0 %v665, 28
  %v687 = vpop.permute.xlu0 %686
  %688 = vrot.lane.b32.xlu0 %v666, 28
  %v689 = vpop.permute.xlu0 %688
  %690 = vrot.lane.b32.xlu0 %v667, 28
  %v691 = vpop.permute.xlu0 %690
  %vm700 = vcmask 257248
  %701 = vst.msk [vmem:[#allocation3] sm:$0xf] %vm700, %v677
  %702 = vst.msk [vmem:[#allocation3 + $0x4] sm:$0xf] %vm700, %v679
  %703 = vst.msk [vmem:[#allocation3 + $0x8] sm:$0xf] %vm700, %v681
  %704 = vst.msk [vmem:[#allocation3 + $0xc] sm:$0xf] %vm700, %v683
  %705 = vst.msk [vmem:[#allocation3 + $0x10] sm:$0xf] %vm700, %v685
  %706 = vst.msk [vmem:[#allocation3 + $0x14] sm:$0xf] %vm700, %v687
  %707 = vst.msk [vmem:[#allocation3 + $0x18] sm:$0xf] %vm700, %v689
  %708 = vst.msk [vmem:[#allocation3 + $0x1c] sm:$0xf] %vm700, %v691
  %v709 = vld [vmem:[%s594 + $0x2] sm:$0xff]
  %v710 = vld [vmem:[%s594 + $0x12] sm:$0xff]
  %v711 = vld [vmem:[%s594 + $0x22] sm:$0xff]
  %v712 = vld [vmem:[%s594 + $0x32] sm:$0xff]
  %v713 = vld [vmem:[%s594 + $0x42] sm:$0xff]
  %v714 = vld [vmem:[%s594 + $0x52] sm:$0xff]
  %v715 = vld [vmem:[%s594 + $0x62] sm:$0xff]
  %v716 = vld [vmem:[%s594 + $0x72] sm:$0xff]
  %v717 = vpack.c.bf16 %v709, %v709
  %v718 = vpack.c.bf16 %v710, %v710
  %v719 = vpack.c.bf16 %v711, %v711
  %v720 = vpack.c.bf16 %v712, %v712
  %v721 = vpack.c.bf16 %v713, %v713
  %v722 = vpack.c.bf16 %v714, %v714
  %v723 = vpack.c.bf16 %v715, %v715
  %v724 = vpack.c.bf16 %v716, %v716
  %733 = vrot.lane.b32.xlu0 %v717, 32
  %v734 = vpop.permute.xlu0 %733
  %735 = vrot.lane.b32.xlu0 %v718, 32
  %v736 = vpop.permute.xlu0 %735
  %737 = vrot.lane.b32.xlu0 %v719, 32
  %v738 = vpop.permute.xlu0 %737
  %739 = vrot.lane.b32.xlu0 %v720, 32
  %v740 = vpop.permute.xlu0 %739
  %741 = vrot.lane.b32.xlu0 %v721, 32
  %v742 = vpop.permute.xlu0 %741
  %743 = vrot.lane.b32.xlu0 %v722, 32
  %v744 = vpop.permute.xlu0 %743
  %745 = vrot.lane.b32.xlu0 %v723, 32
  %v746 = vpop.permute.xlu0 %745
  %747 = vrot.lane.b32.xlu0 %v724, 32
  %v748 = vpop.permute.xlu0 %747
  %vm757 = vcmask 290048
  %758 = vst.msk [vmem:[#allocation3] sm:$0xf] %vm757, %v734
  %759 = vst.msk [vmem:[#allocation3 + $0x4] sm:$0xf] %vm757, %v736
  %760 = vst.msk [vmem:[#allocation3 + $0x8] sm:$0xf] %vm757, %v738
  %761 = vst.msk [vmem:[#allocation3 + $0xc] sm:$0xf] %vm757, %v740
  %762 = vst.msk [vmem:[#allocation3 + $0x10] sm:$0xf] %vm757, %v742
  %763 = vst.msk [vmem:[#allocation3 + $0x14] sm:$0xf] %vm757, %v744
  %764 = vst.msk [vmem:[#allocation3 + $0x18] sm:$0xf] %vm757, %v746
  %765 = vst.msk [vmem:[#allocation3 + $0x1c] sm:$0xf] %vm757, %v748
  %s766 = scalar_lea.vmem [#allocation2], 160
  %v767 = vld [vmem:[%s766] sm:$0xff]
  %v768 = vld [vmem:[%s766 + $0x10] sm:$0xff]
  %v769 = vld [vmem:[%s766 + $0x20] sm:$0xff]
  %v770 = vld [vmem:[%s766 + $0x30] sm:$0xff]
  %v771 = vld [vmem:[%s766 + $0x40] sm:$0xff]
  %v772 = vld [vmem:[%s766 + $0x50] sm:$0xff]
  %v773 = vld [vmem:[%s766 + $0x60] sm:$0xff]
  %v774 = vld [vmem:[%s766 + $0x70] sm:$0xff]
  %v775 = vpack.c.bf16 %v767, %v767
  %v776 = vpack.c.bf16 %v768, %v768
  %v777 = vpack.c.bf16 %v769, %v769
  %v778 = vpack.c.bf16 %v770, %v770
  %v779 = vpack.c.bf16 %v771, %v771
  %v780 = vpack.c.bf16 %v772, %v772
  %v781 = vpack.c.bf16 %v773, %v773
  %v782 = vpack.c.bf16 %v774, %v774
  %783 = vst.msk [vmem:[#allocation3 + $0x20] sm:$0xf] %vm300, %v775
  %784 = vst.msk [vmem:[#allocation3 + $0x24] sm:$0xf] %vm300, %v776
  %785 = vst.msk [vmem:[#allocation3 + $0x28] sm:$0xf] %vm300, %v777
  %786 = vst.msk [vmem:[#allocation3 + $0x2c] sm:$0xf] %vm300, %v778
  %787 = vst.msk [vmem:[#allocation3 + $0x30] sm:$0xf] %vm300, %v779
  %788 = vst.msk [vmem:[#allocation3 + $0x34] sm:$0xf] %vm300, %v780
  %789 = vst.msk [vmem:[#allocation3 + $0x38] sm:$0xf] %vm300, %v781
  %790 = vst.msk [vmem:[#allocation3 + $0x3c] sm:$0xf] %vm300, %v782
  %v791 = vld [vmem:[%s766 + $0x1] sm:$0xff]
  %v792 = vld [vmem:[%s766 + $0x11] sm:$0xff]
  %v793 = vld [vmem:[%s766 + $0x21] sm:$0xff]
  %v794 = vld [vmem:[%s766 + $0x31] sm:$0xff]
  %v795 = vld [vmem:[%s766 + $0x41] sm:$0xff]
  %v796 = vld [vmem:[%s766 + $0x51] sm:$0xff]
  %v797 = vld [vmem:[%s766 + $0x61] sm:$0xff]
  %v798 = vld [vmem:[%s766 + $0x71] sm:$0xff]
  %v799 = vpack.c.bf16 %v791, %v791
  %v800 = vpack.c.bf16 %v792, %v792
  %v801 = vpack.c.bf16 %v793, %v793
  %v802 = vpack.c.bf16 %v794, %v794
  %v803 = vpack.c.bf16 %v795, %v795
  %v804 = vpack.c.bf16 %v796, %v796
  %v805 = vpack.c.bf16 %v797, %v797
  %v806 = vpack.c.bf16 %v798, %v798
  %815 = vrot.lane.b32.xlu0 %v799, 4
  %v816 = vpop.permute.xlu0 %815
  %817 = vrot.lane.b32.xlu0 %v800, 4
  %v818 = vpop.permute.xlu0 %817
  %819 = vrot.lane.b32.xlu0 %v801, 4
  %v820 = vpop.permute.xlu0 %819
  %821 = vrot.lane.b32.xlu0 %v802, 4
  %v822 = vpop.permute.xlu0 %821
  %823 = vrot.lane.b32.xlu0 %v803, 4
  %v824 = vpop.permute.xlu0 %823
  %825 = vrot.lane.b32.xlu0 %v804, 4
  %v826 = vpop.permute.xlu0 %825
  %827 = vrot.lane.b32.xlu0 %v805, 4
  %v828 = vpop.permute.xlu0 %827
  %829 = vrot.lane.b32.xlu0 %v806, 4
  %v830 = vpop.permute.xlu0 %829
  %839 = vst.msk [vmem:[#allocation3 + $0x20] sm:$0xf] %vm357, %v816
  %840 = vst.msk [vmem:[#allocation3 + $0x24] sm:$0xf] %vm357, %v818
  %841 = vst.msk [vmem:[#allocation3 + $0x28] sm:$0xf] %vm357, %v820
  %842 = vst.msk [vmem:[#allocation3 + $0x2c] sm:$0xf] %vm357, %v822
  %843 = vst.msk [vmem:[#allocation3 + $0x30] sm:$0xf] %vm357, %v824
  %844 = vst.msk [vmem:[#allocation3 + $0x34] sm:$0xf] %vm357, %v826
  %845 = vst.msk [vmem:[#allocation3 + $0x38] sm:$0xf] %vm357, %v828
  %846 = vst.msk [vmem:[#allocation3 + $0x3c] sm:$0xf] %vm357, %v830
  %v847 = vld [vmem:[%s766 + $0x2] sm:$0xff]
  %v848 = vld [vmem:[%s766 + $0x12] sm:$0xff]
  %v849 = vld [vmem:[%s766 + $0x22] sm:$0xff]
  %v850 = vld [vmem:[%s766 + $0x32] sm:$0xff]
  %v851 = vld [vmem:[%s766 + $0x42] sm:$0xff]
  %v852 = vld [vmem:[%s766 + $0x52] sm:$0xff]
  %v853 = vld [vmem:[%s766 + $0x62] sm:$0xff]
  %v854 = vld [vmem:[%s766 + $0x72] sm:$0xff]
  %v855 = vpack.c.bf16 %v847, %v847
  %v856 = vpack.c.bf16 %v848, %v848
  %v857 = vpack.c.bf16 %v849, %v849
  %v858 = vpack.c.bf16 %v850, %v850
  %v859 = vpack.c.bf16 %v851, %v851
  %v860 = vpack.c.bf16 %v852, %v852
  %v861 = vpack.c.bf16 %v853, %v853
  %v862 = vpack.c.bf16 %v854, %v854
  %871 = vrot.lane.b32.xlu0 %v855, 8
  %v872 = vpop.permute.xlu0 %871
  %873 = vrot.lane.b32.xlu0 %v856, 8
  %v874 = vpop.permute.xlu0 %873
  %875 = vrot.lane.b32.xlu0 %v857, 8
  %v876 = vpop.permute.xlu0 %875
  %877 = vrot.lane.b32.xlu0 %v858, 8
  %v878 = vpop.permute.xlu0 %877
  %879 = vrot.lane.b32.xlu0 %v859, 8
  %v880 = vpop.permute.xlu0 %879
  %881 = vrot.lane.b32.xlu0 %v860, 8
  %v882 = vpop.permute.xlu0 %881
  %883 = vrot.lane.b32.xlu0 %v861, 8
  %v884 = vpop.permute.xlu0 %883
  %885 = vrot.lane.b32.xlu0 %v862, 8
  %v886 = vpop.permute.xlu0 %885
  %895 = vst.msk [vmem:[#allocation3 + $0x20] sm:$0xf] %vm414, %v872
  %896 = vst.msk [vmem:[#allocation3 + $0x24] sm:$0xf] %vm414, %v874
  %897 = vst.msk [vmem:[#allocation3 + $0x28] sm:$0xf] %vm414, %v876
  %898 = vst.msk [vmem:[#allocation3 + $0x2c] sm:$0xf] %vm414, %v878
  %899 = vst.msk [vmem:[#allocation3 + $0x30] sm:$0xf] %vm414, %v880
  %900 = vst.msk [vmem:[#allocation3 + $0x34] sm:$0xf] %vm414, %v882
  %901 = vst.msk [vmem:[#allocation3 + $0x38] sm:$0xf] %vm414, %v884
  %902 = vst.msk [vmem:[#allocation3 + $0x3c] sm:$0xf] %vm414, %v886
  %v903 = vld [vmem:[%s275] sm:$0xff]
  %v904 = vld [vmem:[%s275 + $0x10] sm:$0xff]
  %v905 = vld [vmem:[%s275 + $0x20] sm:$0xff]
  %v906 = vld [vmem:[%s275 + $0x30] sm:$0xff]
  %v907 = vld [vmem:[%s275 + $0x40] sm:$0xff]
  %v908 = vld [vmem:[%s275 + $0x50] sm:$0xff]
  %v909 = vld [vmem:[%s275 + $0x60] sm:$0xff]
  %v910 = vld [vmem:[%s275 + $0x70] sm:$0xff]
  %v911 = vpack.c.bf16 %v903, %v903
  %v912 = vpack.c.bf16 %v904, %v904
  %v913 = vpack.c.bf16 %v905, %v905
  %v914 = vpack.c.bf16 %v906, %v906
  %v915 = vpack.c.bf16 %v907, %v907
  %v916 = vpack.c.bf16 %v908, %v908
  %v917 = vpack.c.bf16 %v909, %v909
  %v918 = vpack.c.bf16 %v910, %v910
  %927 = vrot.lane.b32.xlu0 %v911, 12
  %v928 = vpop.permute.xlu0 %927
  %929 = vrot.lane.b32.xlu0 %v912, 12
  %v930 = vpop.permute.xlu0 %929
  %931 = vrot.lane.b32.xlu0 %v913, 12
  %v932 = vpop.permute.xlu0 %931
  %933 = vrot.lane.b32.xlu0 %v914, 12
  %v934 = vpop.permute.xlu0 %933
  %935 = vrot.lane.b32.xlu0 %v915, 12
  %v936 = vpop.permute.xlu0 %935
  %937 = vrot.lane.b32.xlu0 %v916, 12
  %v938 = vpop.permute.xlu0 %937
  %939 = vrot.lane.b32.xlu0 %v917, 12
  %v940 = vpop.permute.xlu0 %939
  %941 = vrot.lane.b32.xlu0 %v918, 12
  %v942 = vpop.permute.xlu0 %941
  %951 = vst.msk [vmem:[#allocation3 + $0x20] sm:$0xf] %vm471, %v928
  %952 = vst.msk [vmem:[#allocation3 + $0x24] sm:$0xf] %vm471, %v930
  %953 = vst.msk [vmem:[#allocation3 + $0x28] sm:$0xf] %vm471, %v932
  %954 = vst.msk [vmem:[#allocation3 + $0x2c] sm:$0xf] %vm471, %v934
  %955 = vst.msk [vmem:[#allocation3 + $0x30] sm:$0xf] %vm471, %v936
  %956 = vst.msk [vmem:[#allocation3 + $0x34] sm:$0xf] %vm471, %v938
  %957 = vst.msk [vmem:[#allocation3 + $0x38] sm:$0xf] %vm471, %v940
  %958 = vst.msk [vmem:[#allocation3 + $0x3c] sm:$0xf] %vm471, %v942
  %v959 = vld [vmem:[%s275 + $0x1] sm:$0xff]
  %v960 = vld [vmem:[%s275 + $0x11] sm:$0xff]
  %v961 = vld [vmem:[%s275 + $0x21] sm:$0xff]
  %v962 = vld [vmem:[%s275 + $0x31] sm:$0xff]
  %v963 = vld [vmem:[%s275 + $0x41] sm:$0xff]
  %v964 = vld [vmem:[%s275 + $0x51] sm:$0xff]
  %v965 = vld [vmem:[%s275 + $0x61] sm:$0xff]
  %v966 = vld [vmem:[%s275 + $0x71] sm:$0xff]
  %v967 = vpack.c.bf16 %v959, %v959
  %v968 = vpack.c.bf16 %v960, %v960
  %v969 = vpack.c.bf16 %v961, %v961
  %v970 = vpack.c.bf16 %v962, %v962
  %v971 = vpack.c.bf16 %v963, %v963
  %v972 = vpack.c.bf16 %v964, %v964
  %v973 = vpack.c.bf16 %v965, %v965
  %v974 = vpack.c.bf16 %v966, %v966
  %983 = vrot.lane.b32.xlu0 %v967, 16
  %v984 = vpop.permute.xlu0 %983
  %985 = vrot.lane.b32.xlu0 %v968, 16
  %v986 = vpop.permute.xlu0 %985
  %987 = vrot.lane.b32.xlu0 %v969, 16
  %v988 = vpop.permute.xlu0 %987
  %989 = vrot.lane.b32.xlu0 %v970, 16
  %v990 = vpop.permute.xlu0 %989
  %991 = vrot.lane.b32.xlu0 %v971, 16
  %v992 = vpop.permute.xlu0 %991
  %993 = vrot.lane.b32.xlu0 %v972, 16
  %v994 = vpop.permute.xlu0 %993
  %995 = vrot.lane.b32.xlu0 %v973, 16
  %v996 = vpop.permute.xlu0 %995
  %997 = vrot.lane.b32.xlu0 %v974, 16
  %v998 = vpop.permute.xlu0 %997
  %1007 = vst.msk [vmem:[#allocation3 + $0x20] sm:$0xf] %vm528, %v984
  %1008 = vst.msk [vmem:[#allocation3 + $0x24] sm:$0xf] %vm528, %v986
  %1009 = vst.msk [vmem:[#allocation3 + $0x28] sm:$0xf] %vm528, %v988
  %1010 = vst.msk [vmem:[#allocation3 + $0x2c] sm:$0xf] %vm528, %v990
  %1011 = vst.msk [vmem:[#allocation3 + $0x30] sm:$0xf] %vm528, %v992
  %1012 = vst.msk [vmem:[#allocation3 + $0x34] sm:$0xf] %vm528, %v994
  %1013 = vst.msk [vmem:[#allocation3 + $0x38] sm:$0xf] %vm528, %v996
  %1014 = vst.msk [vmem:[#allocation3 + $0x3c] sm:$0xf] %vm528, %v998
  %v1015 = vld [vmem:[%s275 + $0x2] sm:$0xff]
  %v1016 = vld [vmem:[%s275 + $0x12] sm:$0xff]
  %v1017 = vld [vmem:[%s275 + $0x22] sm:$0xff]
  %v1018 = vld [vmem:[%s275 + $0x32] sm:$0xff]
  %v1019 = vld [vmem:[%s275 + $0x42] sm:$0xff]
  %v1020 = vld [vmem:[%s275 + $0x52] sm:$0xff]
  %v1021 = vld [vmem:[%s275 + $0x62] sm:$0xff]
  %v1022 = vld [vmem:[%s275 + $0x72] sm:$0xff]
  %v1023 = vpack.c.bf16 %v1015, %v1015
  %v1024 = vpack.c.bf16 %v1016, %v1016
  %v1025 = vpack.c.bf16 %v1017, %v1017
  %v1026 = vpack.c.bf16 %v1018, %v1018
  %v1027 = vpack.c.bf16 %v1019, %v1019
  %v1028 = vpack.c.bf16 %v1020, %v1020
  %v1029 = vpack.c.bf16 %v1021, %v1021
  %v1030 = vpack.c.bf16 %v1022, %v1022
  %1039 = vrot.lane.b32.xlu0 %v1023, 20
  %v1040 = vpop.permute.xlu0 %1039
  %1041 = vrot.lane.b32.xlu0 %v1024, 20
  %v1042 = vpop.permute.xlu0 %1041
  %1043 = vrot.lane.b32.xlu0 %v1025, 20
  %v1044 = vpop.permute.xlu0 %1043
  %1045 = vrot.lane.b32.xlu0 %v1026, 20
  %v1046 = vpop.permute.xlu0 %1045
  %1047 = vrot.lane.b32.xlu0 %v1027, 20
  %v1048 = vpop.permute.xlu0 %1047
  %1049 = vrot.lane.b32.xlu0 %v1028, 20
  %v1050 = vpop.permute.xlu0 %1049
  %1051 = vrot.lane.b32.xlu0 %v1029, 20
  %v1052 = vpop.permute.xlu0 %1051
  %1053 = vrot.lane.b32.xlu0 %v1030, 20
  %v1054 = vpop.permute.xlu0 %1053
  %1063 = vst.msk [vmem:[#allocation3 + $0x20] sm:$0xf] %vm585, %v1040
  %1064 = vst.msk [vmem:[#allocation3 + $0x24] sm:$0xf] %vm585, %v1042
  %1065 = vst.msk [vmem:[#allocation3 + $0x28] sm:$0xf] %vm585, %v1044
  %1066 = vst.msk [vmem:[#allocation3 + $0x2c] sm:$0xf] %vm585, %v1046
  %1067 = vst.msk [vmem:[#allocation3 + $0x30] sm:$0xf] %vm585, %v1048
  %1068 = vst.msk [vmem:[#allocation3 + $0x34] sm:$0xf] %vm585, %v1050
  %1069 = vst.msk [vmem:[#allocation3 + $0x38] sm:$0xf] %vm585, %v1052
  %1070 = vst.msk [vmem:[#allocation3 + $0x3c] sm:$0xf] %vm585, %v1054
  %s1071 = scalar_lea.vmem [#allocation2], 192
  %v1072 = vld [vmem:[%s1071] sm:$0xff]
  %v1073 = vld [vmem:[%s1071 + $0x10] sm:$0xff]
  %v1074 = vld [vmem:[%s1071 + $0x20] sm:$0xff]
  %v1075 = vld [vmem:[%s1071 + $0x30] sm:$0xff]
  %v1076 = vld [vmem:[%s1071 + $0x40] sm:$0xff]
  %v1077 = vld [vmem:[%s1071 + $0x50] sm:$0xff]
  %v1078 = vld [vmem:[%s1071 + $0x60] sm:$0xff]
  %v1079 = vld [vmem:[%s1071 + $0x70] sm:$0xff]
  %v1080 = vpack.c.bf16 %v1072, %v1072
  %v1081 = vpack.c.bf16 %v1073, %v1073
  %v1082 = vpack.c.bf16 %v1074, %v1074
  %v1083 = vpack.c.bf16 %v1075, %v1075
  %v1084 = vpack.c.bf16 %v1076, %v1076
  %v1085 = vpack.c.bf16 %v1077, %v1077
  %v1086 = vpack.c.bf16 %v1078, %v1078
  %v1087 = vpack.c.bf16 %v1079, %v1079
  %1096 = vrot.lane.b32.xlu0 %v1080, 24
  %v1097 = vpop.permute.xlu0 %1096
  %1098 = vrot.lane.b32.xlu0 %v1081, 24
  %v1099 = vpop.permute.xlu0 %1098
  %1100 = vrot.lane.b32.xlu0 %v1082, 24
  %v1101 = vpop.permute.xlu0 %1100
  %1102 = vrot.lane.b32.xlu0 %v1083, 24
  %v1103 = vpop.permute.xlu0 %1102
  %1104 = vrot.lane.b32.xlu0 %v1084, 24
  %v1105 = vpop.permute.xlu0 %1104
  %1106 = vrot.lane.b32.xlu0 %v1085, 24
  %v1107 = vpop.permute.xlu0 %1106
  %1108 = vrot.lane.b32.xlu0 %v1086, 24
  %v1109 = vpop.permute.xlu0 %1108
  %1110 = vrot.lane.b32.xlu0 %v1087, 24
  %v1111 = vpop.permute.xlu0 %1110
  %1120 = vst.msk [vmem:[#allocation3 + $0x20] sm:$0xf] %vm643, %v1097
  %1121 = vst.msk [vmem:[#allocation3 + $0x24] sm:$0xf] %vm643, %v1099
  %1122 = vst.msk [vmem:[#allocation3 + $0x28] sm:$0xf] %vm643, %v1101
  %1123 = vst.msk [vmem:[#allocation3 + $0x2c] sm:$0xf] %vm643, %v1103
  %1124 = vst.msk [vmem:[#allocation3 + $0x30] sm:$0xf] %vm643, %v1105
  %1125 = vst.msk [vmem:[#allocation3 + $0x34] sm:$0xf] %vm643, %v1107
  %1126 = vst.msk [vmem:[#allocation3 + $0x38] sm:$0xf] %vm643, %v1109
  %1127 = vst.msk [vmem:[#allocation3 + $0x3c] sm:$0xf] %vm643, %v1111
  %v1128 = vld [vmem:[%s1071 + $0x1] sm:$0xff]
  %v1129 = vld [vmem:[%s1071 + $0x11] sm:$0xff]
  %v1130 = vld [vmem:[%s1071 + $0x21] sm:$0xff]
  %v1131 = vld [vmem:[%s1071 + $0x31] sm:$0xff]
  %v1132 = vld [vmem:[%s1071 + $0x41] sm:$0xff]
  %v1133 = vld [vmem:[%s1071 + $0x51] sm:$0xff]
  %v1134 = vld [vmem:[%s1071 + $0x61] sm:$0xff]
  %v1135 = vld [vmem:[%s1071 + $0x71] sm:$0xff]
  %v1136 = vpack.c.bf16 %v1128, %v1128
  %v1137 = vpack.c.bf16 %v1129, %v1129
  %v1138 = vpack.c.bf16 %v1130, %v1130
  %v1139 = vpack.c.bf16 %v1131, %v1131
  %v1140 = vpack.c.bf16 %v1132, %v1132
  %v1141 = vpack.c.bf16 %v1133, %v1133
  %v1142 = vpack.c.bf16 %v1134, %v1134
  %v1143 = vpack.c.bf16 %v1135, %v1135
  %1152 = vrot.lane.b32.xlu0 %v1136, 28
  %v1153 = vpop.permute.xlu0 %1152
  %1154 = vrot.lane.b32.xlu0 %v1137, 28
  %v1155 = vpop.permute.xlu0 %1154
  %1156 = vrot.lane.b32.xlu0 %v1138, 28
  %v1157 = vpop.permute.xlu0 %1156
  %1158 = vrot.lane.b32.xlu0 %v1139, 28
  %v1159 = vpop.permute.xlu0 %1158
  %1160 = vrot.lane.b32.xlu0 %v1140, 28
  %v1161 = vpop.permute.xlu0 %1160
  %1162 = vrot.lane.b32.xlu0 %v1141, 28
  %v1163 = vpop.permute.xlu0 %1162
  %1164 = vrot.lane.b32.xlu0 %v1142, 28
  %v1165 = vpop.permute.xlu0 %1164
  %1166 = vrot.lane.b32.xlu0 %v1143, 28
  %v1167 = vpop.permute.xlu0 %1166
  %1176 = vst.msk [vmem:[#allocation3 + $0x20] sm:$0xf] %vm700, %v1153
  %1177 = vst.msk [vmem:[#allocation3 + $0x24] sm:$0xf] %vm700, %v1155
  %1178 = vst.msk [vmem:[#allocation3 + $0x28] sm:$0xf] %vm700, %v1157
  %1179 = vst.msk [vmem:[#allocation3 + $0x2c] sm:$0xf] %vm700, %v1159
  %1180 = vst.msk [vmem:[#allocation3 + $0x30] sm:$0xf] %vm700, %v1161
  %1181 = vst.msk [vmem:[#allocation3 + $0x34] sm:$0xf] %vm700, %v1163
  %1182 = vst.msk [vmem:[#allocation3 + $0x38] sm:$0xf] %vm700, %v1165
  %1183 = vst.msk [vmem:[#allocation3 + $0x3c] sm:$0xf] %vm700, %v1167
  %v1184 = vld [vmem:[%s1071 + $0x2] sm:$0xff]
  %v1185 = vld [vmem:[%s1071 + $0x12] sm:$0xff]
  %v1186 = vld [vmem:[%s1071 + $0x22] sm:$0xff]
  %v1187 = vld [vmem:[%s1071 + $0x32] sm:$0xff]
  %v1188 = vld [vmem:[%s1071 + $0x42] sm:$0xff]
  %v1189 = vld [vmem:[%s1071 + $0x52] sm:$0xff]
  %v1190 = vld [vmem:[%s1071 + $0x62] sm:$0xff]
  %v1191 = vld [vmem:[%s1071 + $0x72] sm:$0xff]
  %v1192 = vpack.c.bf16 %v1184, %v1184
  %v1193 = vpack.c.bf16 %v1185, %v1185
  %v1194 = vpack.c.bf16 %v1186, %v1186
  %v1195 = vpack.c.bf16 %v1187, %v1187
  %v1196 = vpack.c.bf16 %v1188, %v1188
  %v1197 = vpack.c.bf16 %v1189, %v1189
  %v1198 = vpack.c.bf16 %v1190, %v1190
  %v1199 = vpack.c.bf16 %v1191, %v1191
  %1208 = vrot.lane.b32.xlu0 %v1192, 32
  %v1209 = vpop.permute.xlu0 %1208
  %1210 = vrot.lane.b32.xlu0 %v1193, 32
  %v1211 = vpop.permute.xlu0 %1210
  %1212 = vrot.lane.b32.xlu0 %v1194, 32
  %v1213 = vpop.permute.xlu0 %1212
  %1214 = vrot.lane.b32.xlu0 %v1195, 32
  %v1215 = vpop.permute.xlu0 %1214
  %1216 = vrot.lane.b32.xlu0 %v1196, 32
  %v1217 = vpop.permute.xlu0 %1216
  %1218 = vrot.lane.b32.xlu0 %v1197, 32
  %v1219 = vpop.permute.xlu0 %1218
  %1220 = vrot.lane.b32.xlu0 %v1198, 32
  %v1221 = vpop.permute.xlu0 %1220
  %1222 = vrot.lane.b32.xlu0 %v1199, 32
  %v1223 = vpop.permute.xlu0 %1222
  %1232 = vst.msk [vmem:[#allocation3 + $0x20] sm:$0xf] %vm757, %v1209
  %1233 = vst.msk [vmem:[#allocation3 + $0x24] sm:$0xf] %vm757, %v1211
  %1234 = vst.msk [vmem:[#allocation3 + $0x28] sm:$0xf] %vm757, %v1213
  %1235 = vst.msk [vmem:[#allocation3 + $0x2c] sm:$0xf] %vm757, %v1215
  %1236 = vst.msk [vmem:[#allocation3 + $0x30] sm:$0xf] %vm757, %v1217
  %1237 = vst.msk [vmem:[#allocation3 + $0x34] sm:$0xf] %vm757, %v1219
  %1238 = vst.msk [vmem:[#allocation3 + $0x38] sm:$0xf] %vm757, %v1221
  %1239 = vst.msk [vmem:[#allocation3 + $0x3c] sm:$0xf] %vm757, %v1223
  %v1240 = vld [vmem:[#allocation3] sm:$0xf]
  %v1241 = vld [vmem:[#allocation3 + $0x4] sm:$0xf]
  %v1242 = vld [vmem:[#allocation3 + $0x8] sm:$0xf]
  %v1243 = vld [vmem:[#allocation3 + $0xc] sm:$0xf]
  %v1244 = vld [vmem:[#allocation3 + $0x10] sm:$0xf]
  %v1245 = vld [vmem:[#allocation3 + $0x14] sm:$0xf]
  %v1246 = vld [vmem:[#allocation3 + $0x18] sm:$0xf]
  %v1247 = vld [vmem:[#allocation3 + $0x1c] sm:$0xf]
  %v1248 = vld [vmem:[#allocation3 + $0x20] sm:$0xf]
  %v1249 = vld [vmem:[#allocation3 + $0x24] sm:$0xf]
  %v1250 = vld [vmem:[#allocation3 + $0x28] sm:$0xf]
  %v1251 = vld [vmem:[#allocation3 + $0x2c] sm:$0xf]
  %v1252 = vld [vmem:[#allocation3 + $0x30] sm:$0xf]
  %v1253 = vld [vmem:[#allocation3 + $0x34] sm:$0xf]
  %v1254 = vld [vmem:[#allocation3 + $0x38] sm:$0xf]
  %v1255 = vld [vmem:[#allocation3 + $0x3c] sm:$0xf]
  %v1256 = vld [vmem:[%s1] sm:$0xf]
  %v1257 = vld [vmem:[%s1 + $0x4] sm:$0xf]
  %v1258 = vld [vmem:[%s1 + $0x8] sm:$0xf]
  %v1259 = vld [vmem:[%s1 + $0xc] sm:$0xf]
  %v1260 = vld [vmem:[%s1 + $0x10] sm:$0x3]
  %v1261 = vld [vmem:[%s2] sm:$0x1]
  %v1263 = vperm.slane %v1261, 0
  %v1281 = vunpack.c.l.b16 %v1240
  %v1282 = vunpack.c.l.b16 %v1241
  %v1283 = vunpack.c.l.b16 %v1242
  %v1284 = vunpack.c.l.b16 %v1243
  %v1285 = vunpack.c.l.b16 %v1244
  %v1286 = vunpack.c.l.b16 %v1245
  %v1287 = vunpack.c.l.b16 %v1246
  %v1288 = vunpack.c.l.b16 %v1247
  %v1289 = vunpack.c.l.b16 %v1248
  %v1290 = vunpack.c.l.b16 %v1249
  %v1291 = vunpack.c.l.b16 %v1250
  %v1292 = vunpack.c.l.b16 %v1251
  %v1293 = vunpack.c.l.b16 %v1252
  %v1294 = vunpack.c.l.b16 %v1253
  %v1295 = vunpack.c.l.b16 %v1254
  %v1296 = vunpack.c.l.b16 %v1255
  %v1297 = vpack.c.b16 %v1282, %v1281
  %v1298 = vpack.c.b16 %v1284, %v1283
  %v1299 = vpack.c.b16 %v1286, %v1285
  %v1300 = vpack.c.b16 %v1288, %v1287
  %v1301 = vpack.c.b16 %v1290, %v1289
  %v1302 = vpack.c.b16 %v1292, %v1291
  %v1303 = vpack.c.b16 %v1294, %v1293
  %v1304 = vpack.c.b16 %v1296, %v1295
  %v1310 = vunpack.c.l.b16 %v1256
  %v1311 = vunpack.c.l.b16 %v1257
  %v1312 = vunpack.c.l.b16 %v1258
  %v1313 = vunpack.c.l.b16 %v1259
  %v1314 = vunpack.c.l.b16 %v1260
  %v1315 = vpack.c.b16 %v1311, %v1310
  %v1316 = vpack.c.b16 %v1313, %v1312
  %v1317 = vpack.c.b16 %v1314, %v1314
  %vm1320 = vcmask 293888
  %v1322 = vsel %vm1320, %v1297, 0
  %v1325 = vsel %vm1320, %v1298, 0
  %v1328 = vsel %vm1320, %v1299, 0
  %v1331 = vsel %vm1320, %v1300, 0
  %v1334 = vsel %vm1320, %v1301, 0
  %v1337 = vsel %vm1320, %v1302, 0
  %v1340 = vsel %vm1320, %v1303, 0
  %v1343 = vsel %vm1320, %v1304, 0
  %vm1345 = vcmask 1041408
  %v1347 = vsel %vm1345, %v1317, 0
  %1349 = vmatpush.bf16.msra.mxu0 0
  %1350 = vmatpush.bf16.msra.mxu0 0
  %1351 = vmatpush.bf16.msra.mxu0 0
  %1352 = vmatpush.bf16.msra.mxu0 0
  %1353 = vmatpush.bf16.msra.mxu0 0
  %1354 = vmatpush.bf16.msra.mxu0 %v1347
  %1355 = vmatpush.bf16.msra.mxu0 %v1316
  %1356 = vmatpush.bf16.msra.mxu0 %v1315
  %1357 = vmatmul.bf16.gmra.mxu0 %v1322
  %v1358 = vpop.f32.mrf.mxu0
  %v1359 = vadd.f32 %v1263, %v1358
  %v1360 = vpop.f32.mrf.mxu0
  %v1361 = vadd.f32 %v1263, %v1360
  %1362 = vmatmul.bf16.gmra.mxu0 %v1325
  %v1363 = vpop.f32.mrf.mxu0
  %v1364 = vadd.f32 %v1263, %v1363
  %v1365 = vpop.f32.mrf.mxu0
  %v1366 = vadd.f32 %v1263, %v1365
  %1367 = vmatmul.bf16.gmra.mxu0 %v1328
  %v1368 = vpop.f32.mrf.mxu0
  %v1369 = vadd.f32 %v1263, %v1368
  %v1370 = vpop.f32.mrf.mxu0
  %v1371 = vadd.f32 %v1263, %v1370
  %1372 = vmatmul.bf16.gmra.mxu0 %v1331
  %v1373 = vpop.f32.mrf.mxu0
  %v1374 = vadd.f32 %v1263, %v1373
  %v1375 = vpop.f32.mrf.mxu0
  %v1376 = vadd.f32 %v1263, %v1375
  %1377 = vmatmul.bf16.gmra.mxu0 %v1334
  %v1378 = vpop.f32.mrf.mxu0
  %v1379 = vadd.f32 %v1263, %v1378
  %v1380 = vpop.f32.mrf.mxu0
  %v1381 = vadd.f32 %v1263, %v1380
  %1382 = vmatmul.bf16.gmra.mxu0 %v1337
  %v1383 = vpop.f32.mrf.mxu0
  %v1384 = vadd.f32 %v1263, %v1383
  %v1385 = vpop.f32.mrf.mxu0
  %v1386 = vadd.f32 %v1263, %v1385
  %1387 = vmatmul.bf16.gmra.mxu0 %v1340
  %v1388 = vpop.f32.mrf.mxu0
  %v1389 = vadd.f32 %v1263, %v1388
  %v1390 = vpop.f32.mrf.mxu0
  %v1391 = vadd.f32 %v1263, %v1390
  %1392 = vmatmul.bf16.gmra.mxu0 %v1343
  %v1393 = vpop.f32.mrf.mxu0
  %v1394 = vadd.f32 %v1263, %v1393
  %v1395 = vpop.f32.mrf.mxu0
  %v1396 = vadd.f32 %v1263, %v1395
  %1397 = vdwg.mxu0
  %v1398 = vld [vmem:[%s3] sm:$0x1]
  %v1399 = vld [vmem:[%s4] sm:$0x1]
  %v1400 = vsel %vm85, %v1359, 0.0
  %v1401 = vsel %vm85, %v1361, 0.0
  %v1402 = vadd.f32 %v1400, %v1401
  %v1403 = vsel %vm85, %v1364, 0.0
  %v1404 = vadd.f32 %v1402, %v1403
  %v1405 = vsel %vm85, %v1366, 0.0
  %v1406 = vadd.f32 %v1404, %v1405
  %v1407 = vsel %vm85, %v1369, 0.0
  %v1408 = vadd.f32 %v1406, %v1407
  %v1409 = vsel %vm85, %v1371, 0.0
  %v1410 = vadd.f32 %v1408, %v1409
  %v1411 = vsel %vm85, %v1374, 0.0
  %v1412 = vadd.f32 %v1410, %v1411
  %v1413 = vsel %vm85, %v1376, 0.0
  %v1414 = vadd.f32 %v1412, %v1413
  %v1415 = vsel %vm85, %v1379, 0.0
  %v1416 = vadd.f32 %v1414, %v1415
  %v1417 = vsel %vm85, %v1381, 0.0
  %v1418 = vadd.f32 %v1416, %v1417
  %v1419 = vsel %vm85, %v1384, 0.0
  %v1420 = vadd.f32 %v1418, %v1419
  %v1421 = vsel %vm85, %v1386, 0.0
  %v1422 = vadd.f32 %v1420, %v1421
  %v1423 = vsel %vm85, %v1389, 0.0
  %v1424 = vadd.f32 %v1422, %v1423
  %v1425 = vsel %vm85, %v1391, 0.0
  %v1426 = vadd.f32 %v1424, %v1425
  %v1427 = vsel %vm85, %v1394, 0.0
  %v1428 = vadd.f32 %v1426, %v1427
  %v1429 = vsel %vm85, %v1396, 0.0
  %v1430 = vadd.f32 %v1428, %v1429
  %v1431 = vrot.slane %v1430, 4
  %v1432 = vadd.f32 %v1430, %v1431
  %v1433 = vrot.slane %v1432, 2
  %v1434 = vadd.f32 %v1432, %v1433
  %v1435 = vrot.slane %v1434, 1
  %v1436 = vadd.f32 %v1434, %v1435
  %v1437 = vmul.f32 %v1436, 0.0078125
  %v1438 = vsub.f32 %v1359, %v1437
  %v1439 = vsub.f32 %v1361, %v1437
  %v1440 = vsub.f32 %v1364, %v1437
  %v1441 = vsub.f32 %v1366, %v1437
  %v1442 = vsub.f32 %v1369, %v1437
  %v1443 = vsub.f32 %v1371, %v1437
  %v1444 = vsub.f32 %v1374, %v1437
  %v1445 = vsub.f32 %v1376, %v1437
  %v1446 = vsub.f32 %v1379, %v1437
  %v1447 = vsub.f32 %v1381, %v1437
  %v1448 = vsub.f32 %v1384, %v1437
  %v1449 = vsub.f32 %v1386, %v1437
  %v1450 = vsub.f32 %v1389, %v1437
  %v1451 = vsub.f32 %v1391, %v1437
  %v1452 = vsub.f32 %v1394, %v1437
  %v1453 = vsub.f32 %v1396, %v1437
  %v1454 = vmul.f32 %v1438, %v1438
  %v1455 = vmul.f32 %v1439, %v1439
  %v1456 = vmul.f32 %v1440, %v1440
  %v1457 = vmul.f32 %v1441, %v1441
  %v1458 = vmul.f32 %v1442, %v1442
  %v1459 = vmul.f32 %v1443, %v1443
  %v1460 = vmul.f32 %v1444, %v1444
  %v1461 = vmul.f32 %v1445, %v1445
  %v1462 = vmul.f32 %v1446, %v1446
  %v1463 = vmul.f32 %v1447, %v1447
  %v1464 = vmul.f32 %v1448, %v1448
  %v1465 = vmul.f32 %v1449, %v1449
  %v1466 = vmul.f32 %v1450, %v1450
  %v1467 = vmul.f32 %v1451, %v1451
  %v1468 = vmul.f32 %v1452, %v1452
  %v1469 = vmul.f32 %v1453, %v1453
  %v1470 = vsel %vm85, %v1454, 0.0
  %v1471 = vsel %vm85, %v1455, 0.0
  %v1472 = vadd.f32 %v1470, %v1471
  %v1473 = vsel %vm85, %v1456, 0.0
  %v1474 = vadd.f32 %v1472, %v1473
  %v1475 = vsel %vm85, %v1457, 0.0
  %v1476 = vadd.f32 %v1474, %v1475
  %v1477 = vsel %vm85, %v1458, 0.0
  %v1478 = vadd.f32 %v1476, %v1477
  %v1479 = vsel %vm85, %v1459, 0.0
  %v1480 = vadd.f32 %v1478, %v1479
  %v1481 = vsel %vm85, %v1460, 0.0
  %v1482 = vadd.f32 %v1480, %v1481
  %v1483 = vsel %vm85, %v1461, 0.0
  %v1484 = vadd.f32 %v1482, %v1483
  %v1485 = vsel %vm85, %v1462, 0.0
  %v1486 = vadd.f32 %v1484, %v1485
  %v1487 = vsel %vm85, %v1463, 0.0
  %v1488 = vadd.f32 %v1486, %v1487
  %v1489 = vsel %vm85, %v1464, 0.0
  %v1490 = vadd.f32 %v1488, %v1489
  %v1491 = vsel %vm85, %v1465, 0.0
  %v1492 = vadd.f32 %v1490, %v1491
  %v1493 = vsel %vm85, %v1466, 0.0
  %v1494 = vadd.f32 %v1492, %v1493
  %v1495 = vsel %vm85, %v1467, 0.0
  %v1496 = vadd.f32 %v1494, %v1495
  %v1497 = vsel %vm85, %v1468, 0.0
  %v1498 = vadd.f32 %v1496, %v1497
  %v1499 = vsel %vm85, %v1469, 0.0
  %v1500 = vadd.f32 %v1498, %v1499
  %v1501 = vrot.slane %v1500, 4
  %v1502 = vadd.f32 %v1500, %v1501
  %v1503 = vrot.slane %v1502, 2
  %v1504 = vadd.f32 %v1502, %v1503
  %v1505 = vrot.slane %v1504, 1
  %v1506 = vadd.f32 %v1504, %v1505
  %v1507 = vmul.f32 %v1506, 0.0078125
  %v1508 = vadd.f32 %v1507, 1e-05
  %v1509 = vrsqrt.pop %v1508
  %v1510 = vmul.f32 %v1509, %v1508
  %v1511 = vmul.f32 %v1510, %v1509
  %v1512 = vmul.f32 0.5, %v1511
  %v1513 = vsub.f32 1.5, %v1512
  %v1514 = vmul.f32 %v1509, %v1513
  %vm1515 = vweird.f32 %v1508
  %vm1516 = vweird.f32 %v1509
  %vm1517 = vmor %vm1515, %vm1516
  %v1518 = vsel %vm1517, %v1509, %v1514
  %v1519 = vmul.f32 %v1398, %v1518
  %v1520 = vmul.f32 %v1437, %v1519
  %v1521 = vsub.f32 %v1399, %v1520
  %v1523 = vperm.slane %v1519, 0
  %v1525 = vmul.f32 %v1359, %v1523
  %v1526 = vmul.f32 %v1361, %v1523
  %v1527 = vmul.f32 %v1364, %v1523
  %v1528 = vmul.f32 %v1366, %v1523
  %v1529 = vmul.f32 %v1369, %v1523
  %v1530 = vmul.f32 %v1371, %v1523
  %v1531 = vmul.f32 %v1374, %v1523
  %v1532 = vmul.f32 %v1376, %v1523
  %v1533 = vmul.f32 %v1379, %v1523
  %v1534 = vmul.f32 %v1381, %v1523
  %v1535 = vmul.f32 %v1384, %v1523
  %v1536 = vmul.f32 %v1386, %v1523
  %v1537 = vmul.f32 %v1389, %v1523
  %v1538 = vmul.f32 %v1391, %v1523
  %v1539 = vmul.f32 %v1394, %v1523
  %v1540 = vmul.f32 %v1396, %v1523
  %v1542 = vperm.slane %v1521, 0
  %v1544 = vadd.f32 %v1525, %v1542
  %v1545 = vadd.f32 %v1526, %v1542
  %v1546 = vadd.f32 %v1527, %v1542
  %v1547 = vadd.f32 %v1528, %v1542
  %v1548 = vadd.f32 %v1529, %v1542
  %v1549 = vadd.f32 %v1530, %v1542
  %v1550 = vadd.f32 %v1531, %v1542
  %v1551 = vadd.f32 %v1532, %v1542
  %v1552 = vadd.f32 %v1533, %v1542
  %v1553 = vadd.f32 %v1534, %v1542
  %v1554 = vadd.f32 %v1535, %v1542
  %v1555 = vadd.f32 %v1536, %v1542
  %v1556 = vadd.f32 %v1537, %v1542
  %v1557 = vadd.f32 %v1538, %v1542
  %v1558 = vadd.f32 %v1539, %v1542
  %v1559 = vadd.f32 %v1540, %v1542
  %v1560 = vmax.f32 %v1544, 0.0
  %v1561 = vmax.f32 %v1545, 0.0
  %v1562 = vmax.f32 %v1546, 0.0
  %v1563 = vmax.f32 %v1547, 0.0
  %v1564 = vmax.f32 %v1548, 0.0
  %v1565 = vmax.f32 %v1549, 0.0
  %v1566 = vmax.f32 %v1550, 0.0
  %v1567 = vmax.f32 %v1551, 0.0
  %v1568 = vmax.f32 %v1552, 0.0
  %v1569 = vmax.f32 %v1553, 0.0
  %v1570 = vmax.f32 %v1554, 0.0
  %v1571 = vmax.f32 %v1555, 0.0
  %v1572 = vmax.f32 %v1556, 0.0
  %v1573 = vmax.f32 %v1557, 0.0
  %v1574 = vmax.f32 %v1558, 0.0
  %v1575 = vmax.f32 %v1559, 0.0
  %s1576 = scalar_lea.vmem [#allocation4], 16
  %1577 = vst.msk [vmem:[%s1576 + $0x1] sm:$0xff] %vm85, %v1560
  %1578 = vst.msk [vmem:[%s1576 + $0x11] sm:$0xff] %vm85, %v1561
  %1579 = vst.msk [vmem:[%s1576 + $0x21] sm:$0xff] %vm85, %v1562
  %1580 = vst.msk [vmem:[%s1576 + $0x31] sm:$0xff] %vm85, %v1563
  %1581 = vst.msk [vmem:[%s1576 + $0x41] sm:$0xff] %vm85, %v1564
  %1582 = vst.msk [vmem:[%s1576 + $0x51] sm:$0xff] %vm85, %v1565
  %1583 = vst.msk [vmem:[%s1576 + $0x61] sm:$0xff] %vm85, %v1566
  %1584 = vst.msk [vmem:[%s1576 + $0x71] sm:$0xff] %vm85, %v1567
  %s1585 = scalar_lea.vmem [#allocation4], 176
  %1586 = vst.msk [vmem:[%s1585 + $0x1] sm:$0xff] %vm85, %v1568
  %1587 = vst.msk [vmem:[%s1585 + $0x11] sm:$0xff] %vm85, %v1569
  %1588 = vst.msk [vmem:[%s1585 + $0x21] sm:$0xff] %vm85, %v1570
  %1589 = vst.msk [vmem:[%s1585 + $0x31] sm:$0xff] %vm85, %v1571
  %1590 = vst.msk [vmem:[%s1585 + $0x41] sm:$0xff] %vm85, %v1572
  %1591 = vst.msk [vmem:[%s1585 + $0x51] sm:$0xff] %vm85, %v1573
  %1592 = vst.msk [vmem:[%s1585 + $0x61] sm:$0xff] %vm85, %v1574
  %1593 = vst.msk [vmem:[%s1585 + $0x71] sm:$0xff] %vm85, %v1575
  %v1594 = vld [vmem:[#allocation4] sm:$0xff]
  %v1595 = vld [vmem:[#allocation4 + $0x10] sm:$0xff]
  %v1596 = vld [vmem:[#allocation4 + $0x20] sm:$0xff]
  %v1597 = vld [vmem:[#allocation4 + $0x30] sm:$0xff]
  %v1598 = vld [vmem:[#allocation4 + $0x40] sm:$0xff]
  %v1599 = vld [vmem:[#allocation4 + $0x50] sm:$0xff]
  %v1600 = vld [vmem:[#allocation4 + $0x60] sm:$0xff]
  %v1601 = vld [vmem:[#allocation4 + $0x70] sm:$0xff]
  %v1602 = vpack.c.bf16 %v1594, %v1594
  %v1603 = vpack.c.bf16 %v1595, %v1595
  %v1604 = vpack.c.bf16 %v1596, %v1596
  %v1605 = vpack.c.bf16 %v1597, %v1597
  %v1606 = vpack.c.bf16 %v1598, %v1598
  %v1607 = vpack.c.bf16 %v1599, %v1599
  %v1608 = vpack.c.bf16 %v1600, %v1600
  %v1609 = vpack.c.bf16 %v1601, %v1601
  %vm1610 = vcmask 60416
  %1611 = vst.msk [vmem:[#allocation5] sm:$0xf] %vm1610, %v1602
  %1612 = vst.msk [vmem:[#allocation5 + $0x4] sm:$0xf] %vm1610, %v1603
  %1613 = vst.msk [vmem:[#allocation5 + $0x8] sm:$0xf] %vm1610, %v1604
  %1614 = vst.msk [vmem:[#allocation5 + $0xc] sm:$0xf] %vm1610, %v1605
  %1615 = vst.msk [vmem:[#allocation5 + $0x10] sm:$0xf] %vm1610, %v1606
  %1616 = vst.msk [vmem:[#allocation5 + $0x14] sm:$0xf] %vm1610, %v1607
  %1617 = vst.msk [vmem:[#allocation5 + $0x18] sm:$0xf] %vm1610, %v1608
  %1618 = vst.msk [vmem:[#allocation5 + $0x1c] sm:$0xf] %vm1610, %v1609
  %v1619 = vld [vmem:[#allocation4 + $0x1] sm:$0xff]
  %v1620 = vld [vmem:[#allocation4 + $0x11] sm:$0xff]
  %v1621 = vld [vmem:[#allocation4 + $0x21] sm:$0xff]
  %v1622 = vld [vmem:[#allocation4 + $0x31] sm:$0xff]
  %v1623 = vld [vmem:[#allocation4 + $0x41] sm:$0xff]
  %v1624 = vld [vmem:[#allocation4 + $0x51] sm:$0xff]
  %v1625 = vld [vmem:[#allocation4 + $0x61] sm:$0xff]
  %v1626 = vld [vmem:[#allocation4 + $0x71] sm:$0xff]
  %v1627 = vpack.c.bf16 %v1619, %v1619
  %v1628 = vpack.c.bf16 %v1620, %v1620
  %v1629 = vpack.c.bf16 %v1621, %v1621
  %v1630 = vpack.c.bf16 %v1622, %v1622
  %v1631 = vpack.c.bf16 %v1623, %v1623
  %v1632 = vpack.c.bf16 %v1624, %v1624
  %v1633 = vpack.c.bf16 %v1625, %v1625
  %v1634 = vpack.c.bf16 %v1626, %v1626
  %1643 = vrot.lane.b32.xlu0 %v1627, 8
  %v1644 = vpop.permute.xlu0 %1643
  %1645 = vrot.lane.b32.xlu0 %v1628, 8
  %v1646 = vpop.permute.xlu0 %1645
  %1647 = vrot.lane.b32.xlu0 %v1629, 8
  %v1648 = vpop.permute.xlu0 %1647
  %1649 = vrot.lane.b32.xlu0 %v1630, 8
  %v1650 = vpop.permute.xlu0 %1649
  %1651 = vrot.lane.b32.xlu0 %v1631, 8
  %v1652 = vpop.permute.xlu0 %1651
  %1653 = vrot.lane.b32.xlu0 %v1632, 8
  %v1654 = vpop.permute.xlu0 %1653
  %1655 = vrot.lane.b32.xlu0 %v1633, 8
  %v1656 = vpop.permute.xlu0 %1655
  %1657 = vrot.lane.b32.xlu0 %v1634, 8
  %v1658 = vpop.permute.xlu0 %1657
  %vm1667 = vcmask 126016
  %1668 = vst.msk [vmem:[#allocation5] sm:$0xf] %vm1667, %v1644
  %1669 = vst.msk [vmem:[#allocation5 + $0x4] sm:$0xf] %vm1667, %v1646
  %1670 = vst.msk [vmem:[#allocation5 + $0x8] sm:$0xf] %vm1667, %v1648
  %1671 = vst.msk [vmem:[#allocation5 + $0xc] sm:$0xf] %vm1667, %v1650
  %1672 = vst.msk [vmem:[#allocation5 + $0x10] sm:$0xf] %vm1667, %v1652
  %1673 = vst.msk [vmem:[#allocation5 + $0x14] sm:$0xf] %vm1667, %v1654
  %1674 = vst.msk [vmem:[#allocation5 + $0x18] sm:$0xf] %vm1667, %v1656
  %1675 = vst.msk [vmem:[#allocation5 + $0x1c] sm:$0xf] %vm1667, %v1658
  %v1676 = vld [vmem:[#allocation4 + $0x2] sm:$0xff]
  %v1677 = vld [vmem:[#allocation4 + $0x12] sm:$0xff]
  %v1678 = vld [vmem:[#allocation4 + $0x22] sm:$0xff]
  %v1679 = vld [vmem:[#allocation4 + $0x32] sm:$0xff]
  %v1680 = vld [vmem:[#allocation4 + $0x42] sm:$0xff]
  %v1681 = vld [vmem:[#allocation4 + $0x52] sm:$0xff]
  %v1682 = vld [vmem:[#allocation4 + $0x62] sm:$0xff]
  %v1683 = vld [vmem:[#allocation4 + $0x72] sm:$0xff]
  %v1684 = vpack.c.bf16 %v1676, %v1676
  %v1685 = vpack.c.bf16 %v1677, %v1677
  %v1686 = vpack.c.bf16 %v1678, %v1678
  %v1687 = vpack.c.bf16 %v1679, %v1679
  %v1688 = vpack.c.bf16 %v1680, %v1680
  %v1689 = vpack.c.bf16 %v1681, %v1681
  %v1690 = vpack.c.bf16 %v1682, %v1682
  %v1691 = vpack.c.bf16 %v1683, %v1683
  %1700 = vrot.lane.b32.xlu0 %v1684, 16
  %v1701 = vpop.permute.xlu0 %1700
  %1702 = vrot.lane.b32.xlu0 %v1685, 16
  %v1703 = vpop.permute.xlu0 %1702
  %1704 = vrot.lane.b32.xlu0 %v1686, 16
  %v1705 = vpop.permute.xlu0 %1704
  %1706 = vrot.lane.b32.xlu0 %v1687, 16
  %v1707 = vpop.permute.xlu0 %1706
  %1708 = vrot.lane.b32.xlu0 %v1688, 16
  %v1709 = vpop.permute.xlu0 %1708
  %1710 = vrot.lane.b32.xlu0 %v1689, 16
  %v1711 = vpop.permute.xlu0 %1710
  %1712 = vrot.lane.b32.xlu0 %v1690, 16
  %v1713 = vpop.permute.xlu0 %1712
  %1714 = vrot.lane.b32.xlu0 %v1691, 16
  %v1715 = vpop.permute.xlu0 %1714
  %vm1724 = vcmask 191616
  %1725 = vst.msk [vmem:[#allocation5] sm:$0xf] %vm1724, %v1701
  %1726 = vst.msk [vmem:[#allocation5 + $0x4] sm:$0xf] %vm1724, %v1703
  %1727 = vst.msk [vmem:[#allocation5 + $0x8] sm:$0xf] %vm1724, %v1705
  %1728 = vst.msk [vmem:[#allocation5 + $0xc] sm:$0xf] %vm1724, %v1707
  %1729 = vst.msk [vmem:[#allocation5 + $0x10] sm:$0xf] %vm1724, %v1709
  %1730 = vst.msk [vmem:[#allocation5 + $0x14] sm:$0xf] %vm1724, %v1711
  %1731 = vst.msk [vmem:[#allocation5 + $0x18] sm:$0xf] %vm1724, %v1713
  %1732 = vst.msk [vmem:[#allocation5 + $0x1c] sm:$0xf] %vm1724, %v1715
  %v1733 = vld [vmem:[%s1576] sm:$0xff]
  %v1734 = vld [vmem:[%s1576 + $0x10] sm:$0xff]
  %v1735 = vld [vmem:[%s1576 + $0x20] sm:$0xff]
  %v1736 = vld [vmem:[%s1576 + $0x30] sm:$0xff]
  %v1737 = vld [vmem:[%s1576 + $0x40] sm:$0xff]
  %v1738 = vld [vmem:[%s1576 + $0x50] sm:$0xff]
  %v1739 = vld [vmem:[%s1576 + $0x60] sm:$0xff]
  %v1740 = vld [vmem:[%s1576 + $0x70] sm:$0xff]
  %v1741 = vpack.c.bf16 %v1733, %v1733
  %v1742 = vpack.c.bf16 %v1734, %v1734
  %v1743 = vpack.c.bf16 %v1735, %v1735
  %v1744 = vpack.c.bf16 %v1736, %v1736
  %v1745 = vpack.c.bf16 %v1737, %v1737
  %v1746 = vpack.c.bf16 %v1738, %v1738
  %v1747 = vpack.c.bf16 %v1739, %v1739
  %v1748 = vpack.c.bf16 %v1740, %v1740
  %1757 = vrot.lane.b32.xlu0 %v1741, 24
  %v1758 = vpop.permute.xlu0 %1757
  %1759 = vrot.lane.b32.xlu0 %v1742, 24
  %v1760 = vpop.permute.xlu0 %1759
  %1761 = vrot.lane.b32.xlu0 %v1743, 24
  %v1762 = vpop.permute.xlu0 %1761
  %1763 = vrot.lane.b32.xlu0 %v1744, 24
  %v1764 = vpop.permute.xlu0 %1763
  %1765 = vrot.lane.b32.xlu0 %v1745, 24
  %v1766 = vpop.permute.xlu0 %1765
  %1767 = vrot.lane.b32.xlu0 %v1746, 24
  %v1768 = vpop.permute.xlu0 %1767
  %1769 = vrot.lane.b32.xlu0 %v1747, 24
  %v1770 = vpop.permute.xlu0 %1769
  %1771 = vrot.lane.b32.xlu0 %v1748, 24
  %v1772 = vpop.permute.xlu0 %1771
  %vm1781 = vcmask 257216
  %1782 = vst.msk [vmem:[#allocation5] sm:$0xf] %vm1781, %v1758
  %1783 = vst.msk [vmem:[#allocation5 + $0x4] sm:$0xf] %vm1781, %v1760
  %1784 = vst.msk [vmem:[#allocation5 + $0x8] sm:$0xf] %vm1781, %v1762
  %1785 = vst.msk [vmem:[#allocation5 + $0xc] sm:$0xf] %vm1781, %v1764
  %1786 = vst.msk [vmem:[#allocation5 + $0x10] sm:$0xf] %vm1781, %v1766
  %1787 = vst.msk [vmem:[#allocation5 + $0x14] sm:$0xf] %vm1781, %v1768
  %1788 = vst.msk [vmem:[#allocation5 + $0x18] sm:$0xf] %vm1781, %v1770
  %1789 = vst.msk [vmem:[#allocation5 + $0x1c] sm:$0xf] %vm1781, %v1772
  %v1790 = vld [vmem:[%s1576 + $0x1] sm:$0xff]
  %v1791 = vld [vmem:[%s1576 + $0x11] sm:$0xff]
  %v1792 = vld [vmem:[%s1576 + $0x21] sm:$0xff]
  %v1793 = vld [vmem:[%s1576 + $0x31] sm:$0xff]
  %v1794 = vld [vmem:[%s1576 + $0x41] sm:$0xff]
  %v1795 = vld [vmem:[%s1576 + $0x51] sm:$0xff]
  %v1796 = vld [vmem:[%s1576 + $0x61] sm:$0xff]
  %v1797 = vld [vmem:[%s1576 + $0x71] sm:$0xff]
  %v1798 = vpack.c.bf16 %v1790, %v1790
  %v1799 = vpack.c.bf16 %v1791, %v1791
  %v1800 = vpack.c.bf16 %v1792, %v1792
  %v1801 = vpack.c.bf16 %v1793, %v1793
  %v1802 = vpack.c.bf16 %v1794, %v1794
  %v1803 = vpack.c.bf16 %v1795, %v1795
  %v1804 = vpack.c.bf16 %v1796, %v1796
  %v1805 = vpack.c.bf16 %v1797, %v1797
  %1814 = vrot.lane.b32.xlu0 %v1798, 32
  %v1815 = vpop.permute.xlu0 %1814
  %1816 = vrot.lane.b32.xlu0 %v1799, 32
  %v1817 = vpop.permute.xlu0 %1816
  %1818 = vrot.lane.b32.xlu0 %v1800, 32
  %v1819 = vpop.permute.xlu0 %1818
  %1820 = vrot.lane.b32.xlu0 %v1801, 32
  %v1821 = vpop.permute.xlu0 %1820
  %1822 = vrot.lane.b32.xlu0 %v1802, 32
  %v1823 = vpop.permute.xlu0 %1822
  %1824 = vrot.lane.b32.xlu0 %v1803, 32
  %v1825 = vpop.permute.xlu0 %1824
  %1826 = vrot.lane.b32.xlu0 %v1804, 32
  %v1827 = vpop.permute.xlu0 %1826
  %1828 = vrot.lane.b32.xlu0 %v1805, 32
  %v1829 = vpop.permute.xlu0 %1828
  %vm1838 = vcmask 322816
  %1839 = vst.msk [vmem:[#allocation5] sm:$0xf] %vm1838, %v1815
  %1840 = vst.msk [vmem:[#allocation5 + $0x4] sm:$0xf] %vm1838, %v1817
  %1841 = vst.msk [vmem:[#allocation5 + $0x8] sm:$0xf] %vm1838, %v1819
  %1842 = vst.msk [vmem:[#allocation5 + $0xc] sm:$0xf] %vm1838, %v1821
  %1843 = vst.msk [vmem:[#allocation5 + $0x10] sm:$0xf] %vm1838, %v1823
  %1844 = vst.msk [vmem:[#allocation5 + $0x14] sm:$0xf] %vm1838, %v1825
  %1845 = vst.msk [vmem:[#allocation5 + $0x18] sm:$0xf] %vm1838, %v1827
  %1846 = vst.msk [vmem:[#allocation5 + $0x1c] sm:$0xf] %vm1838, %v1829
  %v1847 = vld [vmem:[%s1576 + $0x2] sm:$0xff]
  %v1848 = vld [vmem:[%s1576 + $0x12] sm:$0xff]
  %v1849 = vld [vmem:[%s1576 + $0x22] sm:$0xff]
  %v1850 = vld [vmem:[%s1576 + $0x32] sm:$0xff]
  %v1851 = vld [vmem:[%s1576 + $0x42] sm:$0xff]
  %v1852 = vld [vmem:[%s1576 + $0x52] sm:$0xff]
  %v1853 = vld [vmem:[%s1576 + $0x62] sm:$0xff]
  %v1854 = vld [vmem:[%s1576 + $0x72] sm:$0xff]
  %v1855 = vpack.c.bf16 %v1847, %v1847
  %v1856 = vpack.c.bf16 %v1848, %v1848
  %v1857 = vpack.c.bf16 %v1849, %v1849
  %v1858 = vpack.c.bf16 %v1850, %v1850
  %v1859 = vpack.c.bf16 %v1851, %v1851
  %v1860 = vpack.c.bf16 %v1852, %v1852
  %v1861 = vpack.c.bf16 %v1853, %v1853
  %v1862 = vpack.c.bf16 %v1854, %v1854
  %1871 = vrot.lane.b32.xlu0 %v1855, 40
  %v1872 = vpop.permute.xlu0 %1871
  %1873 = vrot.lane.b32.xlu0 %v1856, 40
  %v1874 = vpop.permute.xlu0 %1873
  %1875 = vrot.lane.b32.xlu0 %v1857, 40
  %v1876 = vpop.permute.xlu0 %1875
  %1877 = vrot.lane.b32.xlu0 %v1858, 40
  %v1878 = vpop.permute.xlu0 %1877
  %1879 = vrot.lane.b32.xlu0 %v1859, 40
  %v1880 = vpop.permute.xlu0 %1879
  %1881 = vrot.lane.b32.xlu0 %v1860, 40
  %v1882 = vpop.permute.xlu0 %1881
  %1883 = vrot.lane.b32.xlu0 %v1861, 40
  %v1884 = vpop.permute.xlu0 %1883
  %1885 = vrot.lane.b32.xlu0 %v1862, 40
  %v1886 = vpop.permute.xlu0 %1885
  %vm1895 = vcmask 388416
  %1896 = vst.msk [vmem:[#allocation5] sm:$0xf] %vm1895, %v1872
  %1897 = vst.msk [vmem:[#allocation5 + $0x4] sm:$0xf] %vm1895, %v1874
  %1898 = vst.msk [vmem:[#allocation5 + $0x8] sm:$0xf] %vm1895, %v1876
  %1899 = vst.msk [vmem:[#allocation5 + $0xc] sm:$0xf] %vm1895, %v1878
  %1900 = vst.msk [vmem:[#allocation5 + $0x10] sm:$0xf] %vm1895, %v1880
  %1901 = vst.msk [vmem:[#allocation5 + $0x14] sm:$0xf] %vm1895, %v1882
  %1902 = vst.msk [vmem:[#allocation5 + $0x18] sm:$0xf] %vm1895, %v1884
  %1903 = vst.msk [vmem:[#allocation5 + $0x1c] sm:$0xf] %vm1895, %v1886
  %s1904 = scalar_lea.vmem [#allocation4], 32
  %v1905 = vld [vmem:[%s1904] sm:$0xff]
  %v1906 = vld [vmem:[%s1904 + $0x10] sm:$0xff]
  %v1907 = vld [vmem:[%s1904 + $0x20] sm:$0xff]
  %v1908 = vld [vmem:[%s1904 + $0x30] sm:$0xff]
  %v1909 = vld [vmem:[%s1904 + $0x40] sm:$0xff]
  %v1910 = vld [vmem:[%s1904 + $0x50] sm:$0xff]
  %v1911 = vld [vmem:[%s1904 + $0x60] sm:$0xff]
  %v1912 = vld [vmem:[%s1904 + $0x70] sm:$0xff]
  %v1913 = vpack.c.bf16 %v1905, %v1905
  %v1914 = vpack.c.bf16 %v1906, %v1906
  %v1915 = vpack.c.bf16 %v1907, %v1907
  %v1916 = vpack.c.bf16 %v1908, %v1908
  %v1917 = vpack.c.bf16 %v1909, %v1909
  %v1918 = vpack.c.bf16 %v1910, %v1910
  %v1919 = vpack.c.bf16 %v1911, %v1911
  %v1920 = vpack.c.bf16 %v1912, %v1912
  %1929 = vrot.lane.b32.xlu0 %v1913, 48
  %v1930 = vpop.permute.xlu0 %1929
  %1931 = vrot.lane.b32.xlu0 %v1914, 48
  %v1932 = vpop.permute.xlu0 %1931
  %1933 = vrot.lane.b32.xlu0 %v1915, 48
  %v1934 = vpop.permute.xlu0 %1933
  %1935 = vrot.lane.b32.xlu0 %v1916, 48
  %v1936 = vpop.permute.xlu0 %1935
  %1937 = vrot.lane.b32.xlu0 %v1917, 48
  %v1938 = vpop.permute.xlu0 %1937
  %1939 = vrot.lane.b32.xlu0 %v1918, 48
  %v1940 = vpop.permute.xlu0 %1939
  %1941 = vrot.lane.b32.xlu0 %v1919, 48
  %v1942 = vpop.permute.xlu0 %1941
  %1943 = vrot.lane.b32.xlu0 %v1920, 48
  %v1944 = vpop.permute.xlu0 %1943
  %vm1953 = vcmask 454016
  %1954 = vst.msk [vmem:[#allocation5] sm:$0xf] %vm1953, %v1930
  %1955 = vst.msk [vmem:[#allocation5 + $0x4] sm:$0xf] %vm1953, %v1932
  %1956 = vst.msk [vmem:[#allocation5 + $0x8] sm:$0xf] %vm1953, %v1934
  %1957 = vst.msk [vmem:[#allocation5 + $0xc] sm:$0xf] %vm1953, %v1936
  %1958 = vst.msk [vmem:[#allocation5 + $0x10] sm:$0xf] %vm1953, %v1938
  %1959 = vst.msk [vmem:[#allocation5 + $0x14] sm:$0xf] %vm1953, %v1940
  %1960 = vst.msk [vmem:[#allocation5 + $0x18] sm:$0xf] %vm1953, %v1942
  %1961 = vst.msk [vmem:[#allocation5 + $0x1c] sm:$0xf] %vm1953, %v1944
  %v1962 = vld [vmem:[%s1904 + $0x1] sm:$0xff]
  %v1963 = vld [vmem:[%s1904 + $0x11] sm:$0xff]
  %v1964 = vld [vmem:[%s1904 + $0x21] sm:$0xff]
  %v1965 = vld [vmem:[%s1904 + $0x31] sm:$0xff]
  %v1966 = vld [vmem:[%s1904 + $0x41] sm:$0xff]
  %v1967 = vld [vmem:[%s1904 + $0x51] sm:$0xff]
  %v1968 = vld [vmem:[%s1904 + $0x61] sm:$0xff]
  %v1969 = vld [vmem:[%s1904 + $0x71] sm:$0xff]
  %v1970 = vpack.c.bf16 %v1962, %v1962
  %v1971 = vpack.c.bf16 %v1963, %v1963
  %v1972 = vpack.c.bf16 %v1964, %v1964
  %v1973 = vpack.c.bf16 %v1965, %v1965
  %v1974 = vpack.c.bf16 %v1966, %v1966
  %v1975 = vpack.c.bf16 %v1967, %v1967
  %v1976 = vpack.c.bf16 %v1968, %v1968
  %v1977 = vpack.c.bf16 %v1969, %v1969
  %1986 = vrot.lane.b32.xlu0 %v1970, 56
  %v1987 = vpop.permute.xlu0 %1986
  %1988 = vrot.lane.b32.xlu0 %v1971, 56
  %v1989 = vpop.permute.xlu0 %1988
  %1990 = vrot.lane.b32.xlu0 %v1972, 56
  %v1991 = vpop.permute.xlu0 %1990
  %1992 = vrot.lane.b32.xlu0 %v1973, 56
  %v1993 = vpop.permute.xlu0 %1992
  %1994 = vrot.lane.b32.xlu0 %v1974, 56
  %v1995 = vpop.permute.xlu0 %1994
  %1996 = vrot.lane.b32.xlu0 %v1975, 56
  %v1997 = vpop.permute.xlu0 %1996
  %1998 = vrot.lane.b32.xlu0 %v1976, 56
  %v1999 = vpop.permute.xlu0 %1998
  %2000 = vrot.lane.b32.xlu0 %v1977, 56
  %v2001 = vpop.permute.xlu0 %2000
  %vm2010 = vcmask 519616
  %2011 = vst.msk [vmem:[#allocation5] sm:$0xf] %vm2010, %v1987
  %2012 = vst.msk [vmem:[#allocation5 + $0x4] sm:$0xf] %vm2010, %v1989
  %2013 = vst.msk [vmem:[#allocation5 + $0x8] sm:$0xf] %vm2010, %v1991
  %2014 = vst.msk [vmem:[#allocation5 + $0xc] sm:$0xf] %vm2010, %v1993
  %2015 = vst.msk [vmem:[#allocation5 + $0x10] sm:$0xf] %vm2010, %v1995
  %2016 = vst.msk [vmem:[#allocation5 + $0x14] sm:$0xf] %vm2010, %v1997
  %2017 = vst.msk [vmem:[#allocation5 + $0x18] sm:$0xf] %vm2010, %v1999
  %2018 = vst.msk [vmem:[#allocation5 + $0x1c] sm:$0xf] %vm2010, %v2001
  %v2019 = vld [vmem:[%s1904 + $0x2] sm:$0xff]
  %v2020 = vld [vmem:[%s1904 + $0x12] sm:$0xff]
  %v2021 = vld [vmem:[%s1904 + $0x22] sm:$0xff]
  %v2022 = vld [vmem:[%s1904 + $0x32] sm:$0xff]
  %v2023 = vld [vmem:[%s1904 + $0x42] sm:$0xff]
  %v2024 = vld [vmem:[%s1904 + $0x52] sm:$0xff]
  %v2025 = vld [vmem:[%s1904 + $0x62] sm:$0xff]
  %v2026 = vld [vmem:[%s1904 + $0x72] sm:$0xff]
  %v2027 = vpack.c.bf16 %v2019, %v2019
  %v2028 = vpack.c.bf16 %v2020, %v2020
  %v2029 = vpack.c.bf16 %v2021, %v2021
  %v2030 = vpack.c.bf16 %v2022, %v2022
  %v2031 = vpack.c.bf16 %v2023, %v2023
  %v2032 = vpack.c.bf16 %v2024, %v2024
  %v2033 = vpack.c.bf16 %v2025, %v2025
  %v2034 = vpack.c.bf16 %v2026, %v2026
  %2043 = vrot.lane.b32.xlu0 %v2027, 64
  %v2044 = vpop.permute.xlu0 %2043
  %2045 = vrot.lane.b32.xlu0 %v2028, 64
  %v2046 = vpop.permute.xlu0 %2045
  %2047 = vrot.lane.b32.xlu0 %v2029, 64
  %v2048 = vpop.permute.xlu0 %2047
  %2049 = vrot.lane.b32.xlu0 %v2030, 64
  %v2050 = vpop.permute.xlu0 %2049
  %2051 = vrot.lane.b32.xlu0 %v2031, 64
  %v2052 = vpop.permute.xlu0 %2051
  %2053 = vrot.lane.b32.xlu0 %v2032, 64
  %v2054 = vpop.permute.xlu0 %2053
  %2055 = vrot.lane.b32.xlu0 %v2033, 64
  %v2056 = vpop.permute.xlu0 %2055
  %2057 = vrot.lane.b32.xlu0 %v2034, 64
  %v2058 = vpop.permute.xlu0 %2057
  %vm2067 = vcmask 585216
  %2068 = vst.msk [vmem:[#allocation5] sm:$0xf] %vm2067, %v2044
  %2069 = vst.msk [vmem:[#allocation5 + $0x4] sm:$0xf] %vm2067, %v2046
  %2070 = vst.msk [vmem:[#allocation5 + $0x8] sm:$0xf] %vm2067, %v2048
  %2071 = vst.msk [vmem:[#allocation5 + $0xc] sm:$0xf] %vm2067, %v2050
  %2072 = vst.msk [vmem:[#allocation5 + $0x10] sm:$0xf] %vm2067, %v2052
  %2073 = vst.msk [vmem:[#allocation5 + $0x14] sm:$0xf] %vm2067, %v2054
  %2074 = vst.msk [vmem:[#allocation5 + $0x18] sm:$0xf] %vm2067, %v2056
  %2075 = vst.msk [vmem:[#allocation5 + $0x1c] sm:$0xf] %vm2067, %v2058
  %s2076 = scalar_lea.vmem [#allocation4], 160
  %v2077 = vld [vmem:[%s2076] sm:$0xff]
  %v2078 = vld [vmem:[%s2076 + $0x10] sm:$0xff]
  %v2079 = vld [vmem:[%s2076 + $0x20] sm:$0xff]
  %v2080 = vld [vmem:[%s2076 + $0x30] sm:$0xff]
  %v2081 = vld [vmem:[%s2076 + $0x40] sm:$0xff]
  %v2082 = vld [vmem:[%s2076 + $0x50] sm:$0xff]
  %v2083 = vld [vmem:[%s2076 + $0x60] sm:$0xff]
  %v2084 = vld [vmem:[%s2076 + $0x70] sm:$0xff]
  %v2085 = vpack.c.bf16 %v2077, %v2077
  %v2086 = vpack.c.bf16 %v2078, %v2078
  %v2087 = vpack.c.bf16 %v2079, %v2079
  %v2088 = vpack.c.bf16 %v2080, %v2080
  %v2089 = vpack.c.bf16 %v2081, %v2081
  %v2090 = vpack.c.bf16 %v2082, %v2082
  %v2091 = vpack.c.bf16 %v2083, %v2083
  %v2092 = vpack.c.bf16 %v2084, %v2084
  %2093 = vst.msk [vmem:[#allocation5 + $0x20] sm:$0xf] %vm1610, %v2085
  %2094 = vst.msk [vmem:[#allocation5 + $0x24] sm:$0xf] %vm1610, %v2086
  %2095 = vst.msk [vmem:[#allocation5 + $0x28] sm:$0xf] %vm1610, %v2087
  %2096 = vst.msk [vmem:[#allocation5 + $0x2c] sm:$0xf] %vm1610, %v2088
  %2097 = vst.msk [vmem:[#allocation5 + $0x30] sm:$0xf] %vm1610, %v2089
  %2098 = vst.msk [vmem:[#allocation5 + $0x34] sm:$0xf] %vm1610, %v2090
  %2099 = vst.msk [vmem:[#allocation5 + $0x38] sm:$0xf] %vm1610, %v2091
  %2100 = vst.msk [vmem:[#allocation5 + $0x3c] sm:$0xf] %vm1610, %v2092
  %v2101 = vld [vmem:[%s2076 + $0x1] sm:$0xff]
  %v2102 = vld [vmem:[%s2076 + $0x11] sm:$0xff]
  %v2103 = vld [vmem:[%s2076 + $0x21] sm:$0xff]
  %v2104 = vld [vmem:[%s2076 + $0x31] sm:$0xff]
  %v2105 = vld [vmem:[%s2076 + $0x41] sm:$0xff]
  %v2106 = vld [vmem:[%s2076 + $0x51] sm:$0xff]
  %v2107 = vld [vmem:[%s2076 + $0x61] sm:$0xff]
  %v2108 = vld [vmem:[%s2076 + $0x71] sm:$0xff]
  %v2109 = vpack.c.bf16 %v2101, %v2101
  %v2110 = vpack.c.bf16 %v2102, %v2102
  %v2111 = vpack.c.bf16 %v2103, %v2103
  %v2112 = vpack.c.bf16 %v2104, %v2104
  %v2113 = vpack.c.bf16 %v2105, %v2105
  %v2114 = vpack.c.bf16 %v2106, %v2106
  %v2115 = vpack.c.bf16 %v2107, %v2107
  %v2116 = vpack.c.bf16 %v2108, %v2108
  %2125 = vrot.lane.b32.xlu0 %v2109, 8
  %v2126 = vpop.permute.xlu0 %2125
  %2127 = vrot.lane.b32.xlu0 %v2110, 8
  %v2128 = vpop.permute.xlu0 %2127
  %2129 = vrot.lane.b32.xlu0 %v2111, 8
  %v2130 = vpop.permute.xlu0 %2129
  %2131 = vrot.lane.b32.xlu0 %v2112, 8
  %v2132 = vpop.permute.xlu0 %2131
  %2133 = vrot.lane.b32.xlu0 %v2113, 8
  %v2134 = vpop.permute.xlu0 %2133
  %2135 = vrot.lane.b32.xlu0 %v2114, 8
  %v2136 = vpop.permute.xlu0 %2135
  %2137 = vrot.lane.b32.xlu0 %v2115, 8
  %v2138 = vpop.permute.xlu0 %2137
  %2139 = vrot.lane.b32.xlu0 %v2116, 8
  %v2140 = vpop.permute.xlu0 %2139
  %2149 = vst.msk [vmem:[#allocation5 + $0x20] sm:$0xf] %vm1667, %v2126
  %2150 = vst.msk [vmem:[#allocation5 + $0x24] sm:$0xf] %vm1667, %v2128
  %2151 = vst.msk [vmem:[#allocation5 + $0x28] sm:$0xf] %vm1667, %v2130
  %2152 = vst.msk [vmem:[#allocation5 + $0x2c] sm:$0xf] %vm1667, %v2132
  %2153 = vst.msk [vmem:[#allocation5 + $0x30] sm:$0xf] %vm1667, %v2134
  %2154 = vst.msk [vmem:[#allocation5 + $0x34] sm:$0xf] %vm1667, %v2136
  %2155 = vst.msk [vmem:[#allocation5 + $0x38] sm:$0xf] %vm1667, %v2138
  %2156 = vst.msk [vmem:[#allocation5 + $0x3c] sm:$0xf] %vm1667, %v2140
  %v2157 = vld [vmem:[%s2076 + $0x2] sm:$0xff]
  %v2158 = vld [vmem:[%s2076 + $0x12] sm:$0xff]
  %v2159 = vld [vmem:[%s2076 + $0x22] sm:$0xff]
  %v2160 = vld [vmem:[%s2076 + $0x32] sm:$0xff]
  %v2161 = vld [vmem:[%s2076 + $0x42] sm:$0xff]
  %v2162 = vld [vmem:[%s2076 + $0x52] sm:$0xff]
  %v2163 = vld [vmem:[%s2076 + $0x62] sm:$0xff]
  %v2164 = vld [vmem:[%s2076 + $0x72] sm:$0xff]
  %v2165 = vpack.c.bf16 %v2157, %v2157
  %v2166 = vpack.c.bf16 %v2158, %v2158
  %v2167 = vpack.c.bf16 %v2159, %v2159
  %v2168 = vpack.c.bf16 %v2160, %v2160
  %v2169 = vpack.c.bf16 %v2161, %v2161
  %v2170 = vpack.c.bf16 %v2162, %v2162
  %v2171 = vpack.c.bf16 %v2163, %v2163
  %v2172 = vpack.c.bf16 %v2164, %v2164
  %2181 = vrot.lane.b32.xlu0 %v2165, 16
  %v2182 = vpop.permute.xlu0 %2181
  %2183 = vrot.lane.b32.xlu0 %v2166, 16
  %v2184 = vpop.permute.xlu0 %2183
  %2185 = vrot.lane.b32.xlu0 %v2167, 16
  %v2186 = vpop.permute.xlu0 %2185
  %2187 = vrot.lane.b32.xlu0 %v2168, 16
  %v2188 = vpop.permute.xlu0 %2187
  %2189 = vrot.lane.b32.xlu0 %v2169, 16
  %v2190 = vpop.permute.xlu0 %2189
  %2191 = vrot.lane.b32.xlu0 %v2170, 16
  %v2192 = vpop.permute.xlu0 %2191
  %2193 = vrot.lane.b32.xlu0 %v2171, 16
  %v2194 = vpop.permute.xlu0 %2193
  %2195 = vrot.lane.b32.xlu0 %v2172, 16
  %v2196 = vpop.permute.xlu0 %2195
  %2205 = vst.msk [vmem:[#allocation5 + $0x20] sm:$0xf] %vm1724, %v2182
  %2206 = vst.msk [vmem:[#allocation5 + $0x24] sm:$0xf] %vm1724, %v2184
  %2207 = vst.msk [vmem:[#allocation5 + $0x28] sm:$0xf] %vm1724, %v2186
  %2208 = vst.msk [vmem:[#allocation5 + $0x2c] sm:$0xf] %vm1724, %v2188
  %2209 = vst.msk [vmem:[#allocation5 + $0x30] sm:$0xf] %vm1724, %v2190
  %2210 = vst.msk [vmem:[#allocation5 + $0x34] sm:$0xf] %vm1724, %v2192
  %2211 = vst.msk [vmem:[#allocation5 + $0x38] sm:$0xf] %vm1724, %v2194
  %2212 = vst.msk [vmem:[#allocation5 + $0x3c] sm:$0xf] %vm1724, %v2196
  %v2213 = vld [vmem:[%s1585] sm:$0xff]
  %v2214 = vld [vmem:[%s1585 + $0x10] sm:$0xff]
  %v2215 = vld [vmem:[%s1585 + $0x20] sm:$0xff]
  %v2216 = vld [vmem:[%s1585 + $0x30] sm:$0xff]
  %v2217 = vld [vmem:[%s1585 + $0x40] sm:$0xff]
  %v2218 = vld [vmem:[%s1585 + $0x50] sm:$0xff]
  %v2219 = vld [vmem:[%s1585 + $0x60] sm:$0xff]
  %v2220 = vld [vmem:[%s1585 + $0x70] sm:$0xff]
  %v2221 = vpack.c.bf16 %v2213, %v2213
  %v2222 = vpack.c.bf16 %v2214, %v2214
  %v2223 = vpack.c.bf16 %v2215, %v2215
  %v2224 = vpack.c.bf16 %v2216, %v2216
  %v2225 = vpack.c.bf16 %v2217, %v2217
  %v2226 = vpack.c.bf16 %v2218, %v2218
  %v2227 = vpack.c.bf16 %v2219, %v2219
  %v2228 = vpack.c.bf16 %v2220, %v2220
  %2237 = vrot.lane.b32.xlu0 %v2221, 24
  %v2238 = vpop.permute.xlu0 %2237
  %2239 = vrot.lane.b32.xlu0 %v2222, 24
  %v2240 = vpop.permute.xlu0 %2239
  %2241 = vrot.lane.b32.xlu0 %v2223, 24
  %v2242 = vpop.permute.xlu0 %2241
  %2243 = vrot.lane.b32.xlu0 %v2224, 24
  %v2244 = vpop.permute.xlu0 %2243
  %2245 = vrot.lane.b32.xlu0 %v2225, 24
  %v2246 = vpop.permute.xlu0 %2245
  %2247 = vrot.lane.b32.xlu0 %v2226, 24
  %v2248 = vpop.permute.xlu0 %2247
  %2249 = vrot.lane.b32.xlu0 %v2227, 24
  %v2250 = vpop.permute.xlu0 %2249
  %2251 = vrot.lane.b32.xlu0 %v2228, 24
  %v2252 = vpop.permute.xlu0 %2251
  %2261 = vst.msk [vmem:[#allocation5 + $0x20] sm:$0xf] %vm1781, %v2238
  %2262 = vst.msk [vmem:[#allocation5 + $0x24] sm:$0xf] %vm1781, %v2240
  %2263 = vst.msk [vmem:[#allocation5 + $0x28] sm:$0xf] %vm1781, %v2242
  %2264 = vst.msk [vmem:[#allocation5 + $0x2c] sm:$0xf] %vm1781, %v2244
  %2265 = vst.msk [vmem:[#allocation5 + $0x30] sm:$0xf] %vm1781, %v2246
  %2266 = vst.msk [vmem:[#allocation5 + $0x34] sm:$0xf] %vm1781, %v2248
  %2267 = vst.msk [vmem:[#allocation5 + $0x38] sm:$0xf] %vm1781, %v2250
  %2268 = vst.msk [vmem:[#allocation5 + $0x3c] sm:$0xf] %vm1781, %v2252
  %v2269 = vld [vmem:[%s1585 + $0x1] sm:$0xff]
  %v2270 = vld [vmem:[%s1585 + $0x11] sm:$0xff]
  %v2271 = vld [vmem:[%s1585 + $0x21] sm:$0xff]
  %v2272 = vld [vmem:[%s1585 + $0x31] sm:$0xff]
  %v2273 = vld [vmem:[%s1585 + $0x41] sm:$0xff]
  %v2274 = vld [vmem:[%s1585 + $0x51] sm:$0xff]
  %v2275 = vld [vmem:[%s1585 + $0x61] sm:$0xff]
  %v2276 = vld [vmem:[%s1585 + $0x71] sm:$0xff]
  %v2277 = vpack.c.bf16 %v2269, %v2269
  %v2278 = vpack.c.bf16 %v2270, %v2270
  %v2279 = vpack.c.bf16 %v2271, %v2271
  %v2280 = vpack.c.bf16 %v2272, %v2272
  %v2281 = vpack.c.bf16 %v2273, %v2273
  %v2282 = vpack.c.bf16 %v2274, %v2274
  %v2283 = vpack.c.bf16 %v2275, %v2275
  %v2284 = vpack.c.bf16 %v2276, %v2276
  %2293 = vrot.lane.b32.xlu0 %v2277, 32
  %v2294 = vpop.permute.xlu0 %2293
  %2295 = vrot.lane.b32.xlu0 %v2278, 32
  %v2296 = vpop.permute.xlu0 %2295
  %2297 = vrot.lane.b32.xlu0 %v2279, 32
  %v2298 = vpop.permute.xlu0 %2297
  %2299 = vrot.lane.b32.xlu0 %v2280, 32
  %v2300 = vpop.permute.xlu0 %2299
  %2301 = vrot.lane.b32.xlu0 %v2281, 32
  %v2302 = vpop.permute.xlu0 %2301
  %2303 = vrot.lane.b32.xlu0 %v2282, 32
  %v2304 = vpop.permute.xlu0 %2303
  %2305 = vrot.lane.b32.xlu0 %v2283, 32
  %v2306 = vpop.permute.xlu0 %2305
  %2307 = vrot.lane.b32.xlu0 %v2284, 32
  %v2308 = vpop.permute.xlu0 %2307
  %2317 = vst.msk [vmem:[#allocation5 + $0x20] sm:$0xf] %vm1838, %v2294
  %2318 = vst.msk [vmem:[#allocation5 + $0x24] sm:$0xf] %vm1838, %v2296
  %2319 = vst.msk [vmem:[#allocation5 + $0x28] sm:$0xf] %vm1838, %v2298
  %2320 = vst.msk [vmem:[#allocation5 + $0x2c] sm:$0xf] %vm1838, %v2300
  %2321 = vst.msk [vmem:[#allocation5 + $0x30] sm:$0xf] %vm1838, %v2302
  %2322 = vst.msk [vmem:[#allocation5 + $0x34] sm:$0xf] %vm1838, %v2304
  %2323 = vst.msk [vmem:[#allocation5 + $0x38] sm:$0xf] %vm1838, %v2306
  %2324 = vst.msk [vmem:[#allocation5 + $0x3c] sm:$0xf] %vm1838, %v2308
  %v2325 = vld [vmem:[%s1585 + $0x2] sm:$0xff]
  %v2326 = vld [vmem:[%s1585 + $0x12] sm:$0xff]
  %v2327 = vld [vmem:[%s1585 + $0x22] sm:$0xff]
  %v2328 = vld [vmem:[%s1585 + $0x32] sm:$0xff]
  %v2329 = vld [vmem:[%s1585 + $0x42] sm:$0xff]
  %v2330 = vld [vmem:[%s1585 + $0x52] sm:$0xff]
  %v2331 = vld [vmem:[%s1585 + $0x62] sm:$0xff]
  %v2332 = vld [vmem:[%s1585 + $0x72] sm:$0xff]
  %v2333 = vpack.c.bf16 %v2325, %v2325
  %v2334 = vpack.c.bf16 %v2326, %v2326
  %v2335 = vpack.c.bf16 %v2327, %v2327
  %v2336 = vpack.c.bf16 %v2328, %v2328
  %v2337 = vpack.c.bf16 %v2329, %v2329
  %v2338 = vpack.c.bf16 %v2330, %v2330
  %v2339 = vpack.c.bf16 %v2331, %v2331
  %v2340 = vpack.c.bf16 %v2332, %v2332
  %2349 = vrot.lane.b32.xlu0 %v2333, 40
  %v2350 = vpop.permute.xlu0 %2349
  %2351 = vrot.lane.b32.xlu0 %v2334, 40
  %v2352 = vpop.permute.xlu0 %2351
  %2353 = vrot.lane.b32.xlu0 %v2335, 40
  %v2354 = vpop.permute.xlu0 %2353
  %2355 = vrot.lane.b32.xlu0 %v2336, 40
  %v2356 = vpop.permute.xlu0 %2355
  %2357 = vrot.lane.b32.xlu0 %v2337, 40
  %v2358 = vpop.permute.xlu0 %2357
  %2359 = vrot.lane.b32.xlu0 %v2338, 40
  %v2360 = vpop.permute.xlu0 %2359
  %2361 = vrot.lane.b32.xlu0 %v2339, 40
  %v2362 = vpop.permute.xlu0 %2361
  %2363 = vrot.lane.b32.xlu0 %v2340, 40
  %v2364 = vpop.permute.xlu0 %2363
  %2373 = vst.msk [vmem:[#allocation5 + $0x20] sm:$0xf] %vm1895, %v2350
  %2374 = vst.msk [vmem:[#allocation5 + $0x24] sm:$0xf] %vm1895, %v2352
  %2375 = vst.msk [vmem:[#allocation5 + $0x28] sm:$0xf] %vm1895, %v2354
  %2376 = vst.msk [vmem:[#allocation5 + $0x2c] sm:$0xf] %vm1895, %v2356
  %2377 = vst.msk [vmem:[#allocation5 + $0x30] sm:$0xf] %vm1895, %v2358
  %2378 = vst.msk [vmem:[#allocation5 + $0x34] sm:$0xf] %vm1895, %v2360
  %2379 = vst.msk [vmem:[#allocation5 + $0x38] sm:$0xf] %vm1895, %v2362
  %2380 = vst.msk [vmem:[#allocation5 + $0x3c] sm:$0xf] %vm1895, %v2364
  %s2381 = scalar_lea.vmem [#allocation4], 192
  %v2382 = vld [vmem:[%s2381] sm:$0xff]
  %v2383 = vld [vmem:[%s2381 + $0x10] sm:$0xff]
  %v2384 = vld [vmem:[%s2381 + $0x20] sm:$0xff]
  %v2385 = vld [vmem:[%s2381 + $0x30] sm:$0xff]
  %v2386 = vld [vmem:[%s2381 + $0x40] sm:$0xff]
  %v2387 = vld [vmem:[%s2381 + $0x50] sm:$0xff]
  %v2388 = vld [vmem:[%s2381 + $0x60] sm:$0xff]
  %v2389 = vld [vmem:[%s2381 + $0x70] sm:$0xff]
  %v2390 = vpack.c.bf16 %v2382, %v2382
  %v2391 = vpack.c.bf16 %v2383, %v2383
  %v2392 = vpack.c.bf16 %v2384, %v2384
  %v2393 = vpack.c.bf16 %v2385, %v2385
  %v2394 = vpack.c.bf16 %v2386, %v2386
  %v2395 = vpack.c.bf16 %v2387, %v2387
  %v2396 = vpack.c.bf16 %v2388, %v2388
  %v2397 = vpack.c.bf16 %v2389, %v2389
  %2406 = vrot.lane.b32.xlu0 %v2390, 48
  %v2407 = vpop.permute.xlu0 %2406
  %2408 = vrot.lane.b32.xlu0 %v2391, 48
  %v2409 = vpop.permute.xlu0 %2408
  %2410 = vrot.lane.b32.xlu0 %v2392, 48
  %v2411 = vpop.permute.xlu0 %2410
  %2412 = vrot.lane.b32.xlu0 %v2393, 48
  %v2413 = vpop.permute.xlu0 %2412
  %2414 = vrot.lane.b32.xlu0 %v2394, 48
  %v2415 = vpop.permute.xlu0 %2414
  %2416 = vrot.lane.b32.xlu0 %v2395, 48
  %v2417 = vpop.permute.xlu0 %2416
  %2418 = vrot.lane.b32.xlu0 %v2396, 48
  %v2419 = vpop.permute.xlu0 %2418
  %2420 = vrot.lane.b32.xlu0 %v2397, 48
  %v2421 = vpop.permute.xlu0 %2420
  %2430 = vst.msk [vmem:[#allocation5 + $0x20] sm:$0xf] %vm1953, %v2407
  %2431 = vst.msk [vmem:[#allocation5 + $0x24] sm:$0xf] %vm1953, %v2409
  %2432 = vst.msk [vmem:[#allocation5 + $0x28] sm:$0xf] %vm1953, %v2411
  %2433 = vst.msk [vmem:[#allocation5 + $0x2c] sm:$0xf] %vm1953, %v2413
  %2434 = vst.msk [vmem:[#allocation5 + $0x30] sm:$0xf] %vm1953, %v2415
  %2435 = vst.msk [vmem:[#allocation5 + $0x34] sm:$0xf] %vm1953, %v2417
  %2436 = vst.msk [vmem:[#allocation5 + $0x38] sm:$0xf] %vm1953, %v2419
  %2437 = vst.msk [vmem:[#allocation5 + $0x3c] sm:$0xf] %vm1953, %v2421
  %v2438 = vld [vmem:[%s2381 + $0x1] sm:$0xff]
  %v2439 = vld [vmem:[%s2381 + $0x11] sm:$0xff]
  %v2440 = vld [vmem:[%s2381 + $0x21] sm:$0xff]
  %v2441 = vld [vmem:[%s2381 + $0x31] sm:$0xff]
  %v2442 = vld [vmem:[%s2381 + $0x41] sm:$0xff]
  %v2443 = vld [vmem:[%s2381 + $0x51] sm:$0xff]
  %v2444 = vld [vmem:[%s2381 + $0x61] sm:$0xff]
  %v2445 = vld [vmem:[%s2381 + $0x71] sm:$0xff]
  %v2446 = vpack.c.bf16 %v2438, %v2438
  %v2447 = vpack.c.bf16 %v2439, %v2439
  %v2448 = vpack.c.bf16 %v2440, %v2440
  %v2449 = vpack.c.bf16 %v2441, %v2441
  %v2450 = vpack.c.bf16 %v2442, %v2442
  %v2451 = vpack.c.bf16 %v2443, %v2443
  %v2452 = vpack.c.bf16 %v2444, %v2444
  %v2453 = vpack.c.bf16 %v2445, %v2445
  %2462 = vrot.lane.b32.xlu0 %v2446, 56
  %v2463 = vpop.permute.xlu0 %2462
  %2464 = vrot.lane.b32.xlu0 %v2447, 56
  %v2465 = vpop.permute.xlu0 %2464
  %2466 = vrot.lane.b32.xlu0 %v2448, 56
  %v2467 = vpop.permute.xlu0 %2466
  %2468 = vrot.lane.b32.xlu0 %v2449, 56
  %v2469 = vpop.permute.xlu0 %2468
  %2470 = vrot.lane.b32.xlu0 %v2450, 56
  %v2471 = vpop.permute.xlu0 %2470
  %2472 = vrot.lane.b32.xlu0 %v2451, 56
  %v2473 = vpop.permute.xlu0 %2472
  %2474 = vrot.lane.b32.xlu0 %v2452, 56
  %v2475 = vpop.permute.xlu0 %2474
  %2476 = vrot.lane.b32.xlu0 %v2453, 56
  %v2477 = vpop.permute.xlu0 %2476
  %2486 = vst.msk [vmem:[#allocation5 + $0x20] sm:$0xf] %vm2010, %v2463
  %2487 = vst.msk [vmem:[#allocation5 + $0x24] sm:$0xf] %vm2010, %v2465
  %2488 = vst.msk [vmem:[#allocation5 + $0x28] sm:$0xf] %vm2010, %v2467
  %2489 = vst.msk [vmem:[#allocation5 + $0x2c] sm:$0xf] %vm2010, %v2469
  %2490 = vst.msk [vmem:[#allocation5 + $0x30] sm:$0xf] %vm2010, %v2471
  %2491 = vst.msk [vmem:[#allocation5 + $0x34] sm:$0xf] %vm2010, %v2473
  %2492 = vst.msk [vmem:[#allocation5 + $0x38] sm:$0xf] %vm2010, %v2475
  %2493 = vst.msk [vmem:[#allocation5 + $0x3c] sm:$0xf] %vm2010, %v2477
  %v2494 = vld [vmem:[%s2381 + $0x2] sm:$0xff]
  %v2495 = vld [vmem:[%s2381 + $0x12] sm:$0xff]
  %v2496 = vld [vmem:[%s2381 + $0x22] sm:$0xff]
  %v2497 = vld [vmem:[%s2381 + $0x32] sm:$0xff]
  %v2498 = vld [vmem:[%s2381 + $0x42] sm:$0xff]
  %v2499 = vld [vmem:[%s2381 + $0x52] sm:$0xff]
  %v2500 = vld [vmem:[%s2381 + $0x62] sm:$0xff]
  %v2501 = vld [vmem:[%s2381 + $0x72] sm:$0xff]
  %v2502 = vpack.c.bf16 %v2494, %v2494
  %v2503 = vpack.c.bf16 %v2495, %v2495
  %v2504 = vpack.c.bf16 %v2496, %v2496
  %v2505 = vpack.c.bf16 %v2497, %v2497
  %v2506 = vpack.c.bf16 %v2498, %v2498
  %v2507 = vpack.c.bf16 %v2499, %v2499
  %v2508 = vpack.c.bf16 %v2500, %v2500
  %v2509 = vpack.c.bf16 %v2501, %v2501
  %2518 = vrot.lane.b32.xlu0 %v2502, 64
  %v2519 = vpop.permute.xlu0 %2518
  %2520 = vrot.lane.b32.xlu0 %v2503, 64
  %v2521 = vpop.permute.xlu0 %2520
  %2522 = vrot.lane.b32.xlu0 %v2504, 64
  %v2523 = vpop.permute.xlu0 %2522
  %2524 = vrot.lane.b32.xlu0 %v2505, 64
  %v2525 = vpop.permute.xlu0 %2524
  %2526 = vrot.lane.b32.xlu0 %v2506, 64
  %v2527 = vpop.permute.xlu0 %2526
  %2528 = vrot.lane.b32.xlu0 %v2507, 64
  %v2529 = vpop.permute.xlu0 %2528
  %2530 = vrot.lane.b32.xlu0 %v2508, 64
  %v2531 = vpop.permute.xlu0 %2530
  %2532 = vrot.lane.b32.xlu0 %v2509, 64
  %v2533 = vpop.permute.xlu0 %2532
  %2542 = vst.msk [vmem:[#allocation5 + $0x20] sm:$0xf] %vm2067, %v2519
  %2543 = vst.msk [vmem:[#allocation5 + $0x24] sm:$0xf] %vm2067, %v2521
  %2544 = vst.msk [vmem:[#allocation5 + $0x28] sm:$0xf] %vm2067, %v2523
  %2545 = vst.msk [vmem:[#allocation5 + $0x2c] sm:$0xf] %vm2067, %v2525
  %2546 = vst.msk [vmem:[#allocation5 + $0x30] sm:$0xf] %vm2067, %v2527
  %2547 = vst.msk [vmem:[#allocation5 + $0x34] sm:$0xf] %vm2067, %v2529
  %2548 = vst.msk [vmem:[#allocation5 + $0x38] sm:$0xf] %vm2067, %v2531
  %2549 = vst.msk [vmem:[#allocation5 + $0x3c] sm:$0xf] %vm2067, %v2533
  %v2550 = vld [vmem:[#allocation5] sm:$0xf]
  %v2551 = vld [vmem:[#allocation5 + $0x4] sm:$0xf]
  %v2552 = vld [vmem:[#allocation5 + $0x8] sm:$0xf]
  %v2553 = vld [vmem:[#allocation5 + $0xc] sm:$0xf]
  %v2554 = vld [vmem:[#allocation5 + $0x10] sm:$0xf]
  %v2555 = vld [vmem:[#allocation5 + $0x14] sm:$0xf]
  %v2556 = vld [vmem:[#allocation5 + $0x18] sm:$0xf]
  %v2557 = vld [vmem:[#allocation5 + $0x1c] sm:$0xf]
  %v2558 = vld [vmem:[#allocation5 + $0x20] sm:$0xf]
  %v2559 = vld [vmem:[#allocation5 + $0x24] sm:$0xf]
  %v2560 = vld [vmem:[#allocation5 + $0x28] sm:$0xf]
  %v2561 = vld [vmem:[#allocation5 + $0x2c] sm:$0xf]
  %v2562 = vld [vmem:[#allocation5 + $0x30] sm:$0xf]
  %v2563 = vld [vmem:[#allocation5 + $0x34] sm:$0xf]
  %v2564 = vld [vmem:[#allocation5 + $0x38] sm:$0xf]
  %v2565 = vld [vmem:[#allocation5 + $0x3c] sm:$0xf]
  %v2566 = vld [vmem:[%s5] sm:$0xf]
  %v2567 = vld [vmem:[%s5 + $0x4] sm:$0xf]
  %v2568 = vld [vmem:[%s5 + $0x8] sm:$0xf]
  %v2569 = vld [vmem:[%s5 + $0xc] sm:$0xf]
  %v2570 = vld [vmem:[%s5 + $0x10] sm:$0xf]
  %v2571 = vld [vmem:[%s5 + $0x14] sm:$0xf]
  %v2572 = vld [vmem:[%s5 + $0x18] sm:$0xf]
  %v2573 = vld [vmem:[%s5 + $0x1c] sm:$0xf]
  %v2574 = vld [vmem:[%s5 + $0x20] sm:$0xf]
  %v2575 = vld [vmem:[%s6] sm:$0x1]
  %v2577 = vperm.slane %v2575, 0
  %v2595 = vunpack.c.l.b16 %v2550
  %v2596 = vunpack.c.l.b16 %v2551
  %v2597 = vunpack.c.l.b16 %v2552
  %v2598 = vunpack.c.l.b16 %v2553
  %v2599 = vunpack.c.l.b16 %v2554
  %v2600 = vunpack.c.l.b16 %v2555
  %v2601 = vunpack.c.l.b16 %v2556
  %v2602 = vunpack.c.l.b16 %v2557
  %v2603 = vunpack.c.l.b16 %v2558
  %v2604 = vunpack.c.l.b16 %v2559
  %v2605 = vunpack.c.l.b16 %v2560
  %v2606 = vunpack.c.l.b16 %v2561
  %v2607 = vunpack.c.l.b16 %v2562
  %v2608 = vunpack.c.l.b16 %v2563
  %v2609 = vunpack.c.l.b16 %v2564
  %v2610 = vunpack.c.l.b16 %v2565
  %v2611 = vpack.c.b16 %v2596, %v2595
  %v2612 = vpack.c.b16 %v2598, %v2597
  %v2613 = vpack.c.b16 %v2600, %v2599
  %v2614 = vpack.c.b16 %v2602, %v2601
  %v2615 = vpack.c.b16 %v2604, %v2603
  %v2616 = vpack.c.b16 %v2606, %v2605
  %v2617 = vpack.c.b16 %v2608, %v2607
  %v2618 = vpack.c.b16 %v2610, %v2609
  %v2628 = vunpack.c.l.b16 %v2566
  %v2629 = vunpack.c.l.b16 %v2567
  %v2630 = vunpack.c.l.b16 %v2568
  %v2631 = vunpack.c.l.b16 %v2569
  %v2632 = vunpack.c.l.b16 %v2570
  %v2633 = vunpack.c.l.b16 %v2571
  %v2634 = vunpack.c.l.b16 %v2572
  %v2635 = vunpack.c.l.b16 %v2573
  %v2636 = vunpack.c.l.b16 %v2574
  %v2637 = vpack.c.b16 %v2629, %v2628
  %v2638 = vpack.c.b16 %v2631, %v2630
  %v2639 = vpack.c.b16 %v2633, %v2632
  %v2640 = vpack.c.b16 %v2635, %v2634
  %v2641 = vpack.c.b16 %v2636, %v2636
  %vm2646 = vcmask 588800
  %v2648 = vsel %vm2646, %v2611, 0
  %v2651 = vsel %vm2646, %v2612, 0
  %v2654 = vsel %vm2646, %v2613, 0
  %v2657 = vsel %vm2646, %v2614, 0
  %v2660 = vsel %vm2646, %v2615, 0
  %v2663 = vsel %vm2646, %v2616, 0
  %v2666 = vsel %vm2646, %v2617, 0
  %v2669 = vsel %vm2646, %v2618, 0
  %vm2671 = vcmask 1043456
  %v2673 = vsel %vm2671, %v2641, 0
  %2675 = vmatpush.bf16.msra.mxu0 0
  %2676 = vmatpush.bf16.msra.mxu0 0
  %2677 = vmatpush.bf16.msra.mxu0 0
  %2678 = vmatpush.bf16.msra.mxu0 %v2673
  %2679 = vmatpush.bf16.msra.mxu0 %v2640
  %2680 = vmatpush.bf16.msra.mxu0 %v2639
  %2681 = vmatpush.bf16.msra.mxu0 %v2638
  %2682 = vmatpush.bf16.msra.mxu0 %v2637
  %2683 = vmatmul.bf16.gmra.mxu0 %v2648
  %v2684 = vpop.f32.mrf.mxu0
  %v2685 = vadd.f32 %v2577, %v2684
  %v2686 = vpop.f32.mrf.mxu0
  %v2687 = vadd.f32 %v2577, %v2686
  %2688 = vmatmul.bf16.gmra.mxu0 %v2651
  %v2689 = vpop.f32.mrf.mxu0
  %v2690 = vadd.f32 %v2577, %v2689
  %v2691 = vpop.f32.mrf.mxu0
  %v2692 = vadd.f32 %v2577, %v2691
  %2693 = vmatmul.bf16.gmra.mxu0 %v2654
  %v2694 = vpop.f32.mrf.mxu0
  %v2695 = vadd.f32 %v2577, %v2694
  %v2696 = vpop.f32.mrf.mxu0
  %v2697 = vadd.f32 %v2577, %v2696
  %2698 = vmatmul.bf16.gmra.mxu0 %v2657
  %v2699 = vpop.f32.mrf.mxu0
  %v2700 = vadd.f32 %v2577, %v2699
  %v2701 = vpop.f32.mrf.mxu0
  %v2702 = vadd.f32 %v2577, %v2701
  %2703 = vmatmul.bf16.gmra.mxu0 %v2660
  %v2704 = vpop.f32.mrf.mxu0
  %v2705 = vadd.f32 %v2577, %v2704
  %v2706 = vpop.f32.mrf.mxu0
  %v2707 = vadd.f32 %v2577, %v2706
  %2708 = vmatmul.bf16.gmra.mxu0 %v2663
  %v2709 = vpop.f32.mrf.mxu0
  %v2710 = vadd.f32 %v2577, %v2709
  %v2711 = vpop.f32.mrf.mxu0
  %v2712 = vadd.f32 %v2577, %v2711
  %2713 = vmatmul.bf16.gmra.mxu0 %v2666
  %v2714 = vpop.f32.mrf.mxu0
  %v2715 = vadd.f32 %v2577, %v2714
  %v2716 = vpop.f32.mrf.mxu0
  %v2717 = vadd.f32 %v2577, %v2716
  %2718 = vmatmul.bf16.gmra.mxu0 %v2669
  %v2719 = vpop.f32.mrf.mxu0
  %v2720 = vadd.f32 %v2577, %v2719
  %v2721 = vpop.f32.mrf.mxu0
  %v2722 = vadd.f32 %v2577, %v2721
  %2723 = vdwg.mxu0
  %v2724 = vld [vmem:[%s7] sm:$0x1]
  %v2725 = vld [vmem:[%s8] sm:$0x1]
  %v2726 = vsel %vm85, %v2685, 0.0
  %v2727 = vsel %vm85, %v2687, 0.0
  %v2728 = vadd.f32 %v2726, %v2727
  %v2729 = vsel %vm85, %v2690, 0.0
  %v2730 = vadd.f32 %v2728, %v2729
  %v2731 = vsel %vm85, %v2692, 0.0
  %v2732 = vadd.f32 %v2730, %v2731
  %v2733 = vsel %vm85, %v2695, 0.0
  %v2734 = vadd.f32 %v2732, %v2733
  %v2735 = vsel %vm85, %v2697, 0.0
  %v2736 = vadd.f32 %v2734, %v2735
  %v2737 = vsel %vm85, %v2700, 0.0
  %v2738 = vadd.f32 %v2736, %v2737
  %v2739 = vsel %vm85, %v2702, 0.0
  %v2740 = vadd.f32 %v2738, %v2739
  %v2741 = vsel %vm85, %v2705, 0.0
  %v2742 = vadd.f32 %v2740, %v2741
  %v2743 = vsel %vm85, %v2707, 0.0
  %v2744 = vadd.f32 %v2742, %v2743
  %v2745 = vsel %vm85, %v2710, 0.0
  %v2746 = vadd.f32 %v2744, %v2745
  %v2747 = vsel %vm85, %v2712, 0.0
  %v2748 = vadd.f32 %v2746, %v2747
  %v2749 = vsel %vm85, %v2715, 0.0
  %v2750 = vadd.f32 %v2748, %v2749
  %v2751 = vsel %vm85, %v2717, 0.0
  %v2752 = vadd.f32 %v2750, %v2751
  %v2753 = vsel %vm85, %v2720, 0.0
  %v2754 = vadd.f32 %v2752, %v2753
  %v2755 = vsel %vm85, %v2722, 0.0
  %v2756 = vadd.f32 %v2754, %v2755
  %v2757 = vrot.slane %v2756, 4
  %v2758 = vadd.f32 %v2756, %v2757
  %v2759 = vrot.slane %v2758, 2
  %v2760 = vadd.f32 %v2758, %v2759
  %v2761 = vrot.slane %v2760, 1
  %v2762 = vadd.f32 %v2760, %v2761
  %v2763 = vmul.f32 %v2762, 0.0078125
  %v2764 = vsub.f32 %v2685, %v2763
  %v2765 = vsub.f32 %v2687, %v2763
  %v2766 = vsub.f32 %v2690, %v2763
  %v2767 = vsub.f32 %v2692, %v2763
  %v2768 = vsub.f32 %v2695, %v2763
  %v2769 = vsub.f32 %v2697, %v2763
  %v2770 = vsub.f32 %v2700, %v2763
  %v2771 = vsub.f32 %v2702, %v2763
  %v2772 = vsub.f32 %v2705, %v2763
  %v2773 = vsub.f32 %v2707, %v2763
  %v2774 = vsub.f32 %v2710, %v2763
  %v2775 = vsub.f32 %v2712, %v2763
  %v2776 = vsub.f32 %v2715, %v2763
  %v2777 = vsub.f32 %v2717, %v2763
  %v2778 = vsub.f32 %v2720, %v2763
  %v2779 = vsub.f32 %v2722, %v2763
  %v2780 = vmul.f32 %v2764, %v2764
  %v2781 = vmul.f32 %v2765, %v2765
  %v2782 = vmul.f32 %v2766, %v2766
  %v2783 = vmul.f32 %v2767, %v2767
  %v2784 = vmul.f32 %v2768, %v2768
  %v2785 = vmul.f32 %v2769, %v2769
  %v2786 = vmul.f32 %v2770, %v2770
  %v2787 = vmul.f32 %v2771, %v2771
  %v2788 = vmul.f32 %v2772, %v2772
  %v2789 = vmul.f32 %v2773, %v2773
  %v2790 = vmul.f32 %v2774, %v2774
  %v2791 = vmul.f32 %v2775, %v2775
  %v2792 = vmul.f32 %v2776, %v2776
  %v2793 = vmul.f32 %v2777, %v2777
  %v2794 = vmul.f32 %v2778, %v2778
  %v2795 = vmul.f32 %v2779, %v2779
  %v2796 = vsel %vm85, %v2780, 0.0
  %v2797 = vsel %vm85, %v2781, 0.0
  %v2798 = vadd.f32 %v2796, %v2797
  %v2799 = vsel %vm85, %v2782, 0.0
  %v2800 = vadd.f32 %v2798, %v2799
  %v2801 = vsel %vm85, %v2783, 0.0
  %v2802 = vadd.f32 %v2800, %v2801
  %v2803 = vsel %vm85, %v2784, 0.0
  %v2804 = vadd.f32 %v2802, %v2803
  %v2805 = vsel %vm85, %v2785, 0.0
  %v2806 = vadd.f32 %v2804, %v2805
  %v2807 = vsel %vm85, %v2786, 0.0
  %v2808 = vadd.f32 %v2806, %v2807
  %v2809 = vsel %vm85, %v2787, 0.0
  %v2810 = vadd.f32 %v2808, %v2809
  %v2811 = vsel %vm85, %v2788, 0.0
  %v2812 = vadd.f32 %v2810, %v2811
  %v2813 = vsel %vm85, %v2789, 0.0
  %v2814 = vadd.f32 %v2812, %v2813
  %v2815 = vsel %vm85, %v2790, 0.0
  %v2816 = vadd.f32 %v2814, %v2815
  %v2817 = vsel %vm85, %v2791, 0.0
  %v2818 = vadd.f32 %v2816, %v2817
  %v2819 = vsel %vm85, %v2792, 0.0
  %v2820 = vadd.f32 %v2818, %v2819
  %v2821 = vsel %vm85, %v2793, 0.0
  %v2822 = vadd.f32 %v2820, %v2821
  %v2823 = vsel %vm85, %v2794, 0.0
  %v2824 = vadd.f32 %v2822, %v2823
  %v2825 = vsel %vm85, %v2795, 0.0
  %v2826 = vadd.f32 %v2824, %v2825
  %v2827 = vrot.slane %v2826, 4
  %v2828 = vadd.f32 %v2826, %v2827
  %v2829 = vrot.slane %v2828, 2
  %v2830 = vadd.f32 %v2828, %v2829
  %v2831 = vrot.slane %v2830, 1
  %v2832 = vadd.f32 %v2830, %v2831
  %v2833 = vmul.f32 %v2832, 0.0078125
  %v2834 = vadd.f32 %v2833, 1e-05
  %v2835 = vrsqrt.pop %v2834
  %v2836 = vmul.f32 %v2835, %v2834
  %v2837 = vmul.f32 %v2836, %v2835
  %v2838 = vmul.f32 0.5, %v2837
  %v2839 = vsub.f32 1.5, %v2838
  %v2840 = vmul.f32 %v2835, %v2839
  %vm2841 = vweird.f32 %v2834
  %vm2842 = vweird.f32 %v2835
  %vm2843 = vmor %vm2841, %vm2842
  %v2844 = vsel %vm2843, %v2835, %v2840
  %v2845 = vmul.f32 %v2724, %v2844
  %v2846 = vmul.f32 %v2763, %v2845
  %v2847 = vsub.f32 %v2725, %v2846
  %v2849 = vperm.slane %v2845, 0
  %v2851 = vmul.f32 %v2685, %v2849
  %v2852 = vmul.f32 %v2687, %v2849
  %v2853 = vmul.f32 %v2690, %v2849
  %v2854 = vmul.f32 %v2692, %v2849
  %v2855 = vmul.f32 %v2695, %v2849
  %v2856 = vmul.f32 %v2697, %v2849
  %v2857 = vmul.f32 %v2700, %v2849
  %v2858 = vmul.f32 %v2702, %v2849
  %v2859 = vmul.f32 %v2705, %v2849
  %v2860 = vmul.f32 %v2707, %v2849
  %v2861 = vmul.f32 %v2710, %v2849
  %v2862 = vmul.f32 %v2712, %v2849
  %v2863 = vmul.f32 %v2715, %v2849
  %v2864 = vmul.f32 %v2717, %v2849
  %v2865 = vmul.f32 %v2720, %v2849
  %v2866 = vmul.f32 %v2722, %v2849
  %v2868 = vperm.slane %v2847, 0
  %v2870 = vadd.f32 %v2851, %v2868
  %v2871 = vadd.f32 %v2852, %v2868
  %v2872 = vadd.f32 %v2853, %v2868
  %v2873 = vadd.f32 %v2854, %v2868
  %v2874 = vadd.f32 %v2855, %v2868
  %v2875 = vadd.f32 %v2856, %v2868
  %v2876 = vadd.f32 %v2857, %v2868
  %v2877 = vadd.f32 %v2858, %v2868
  %v2878 = vadd.f32 %v2859, %v2868
  %v2879 = vadd.f32 %v2860, %v2868
  %v2880 = vadd.f32 %v2861, %v2868
  %v2881 = vadd.f32 %v2862, %v2868
  %v2882 = vadd.f32 %v2863, %v2868
  %v2883 = vadd.f32 %v2864, %v2868
  %v2884 = vadd.f32 %v2865, %v2868
  %v2885 = vadd.f32 %v2866, %v2868
  %v2886 = vmax.f32 %v2870, 0.0
  %v2887 = vmax.f32 %v2871, 0.0
  %v2888 = vmax.f32 %v2872, 0.0
  %v2889 = vmax.f32 %v2873, 0.0
  %v2890 = vmax.f32 %v2874, 0.0
  %v2891 = vmax.f32 %v2875, 0.0
  %v2892 = vmax.f32 %v2876, 0.0
  %v2893 = vmax.f32 %v2877, 0.0
  %v2894 = vmax.f32 %v2878, 0.0
  %v2895 = vmax.f32 %v2879, 0.0
  %v2896 = vmax.f32 %v2880, 0.0
  %v2897 = vmax.f32 %v2881, 0.0
  %v2898 = vmax.f32 %v2882, 0.0
  %v2899 = vmax.f32 %v2883, 0.0
  %v2900 = vmax.f32 %v2884, 0.0
  %v2901 = vmax.f32 %v2885, 0.0
  %2902 = vst.msk [vmem:[%s9] sm:$0xff] %vm85, %v2886
  %2903 = vst.msk [vmem:[%s9 + $0x8] sm:$0xff] %vm85, %v2887
  %2904 = vst.msk [vmem:[%s9 + $0x10] sm:$0xff] %vm85, %v2888
  %2905 = vst.msk [vmem:[%s9 + $0x18] sm:$0xff] %vm85, %v2889
  %2906 = vst.msk [vmem:[%s9 + $0x20] sm:$0xff] %vm85, %v2890
  %2907 = vst.msk [vmem:[%s9 + $0x28] sm:$0xff] %vm85, %v2891
  %2908 = vst.msk [vmem:[%s9 + $0x30] sm:$0xff] %vm85, %v2892
  %2909 = vst.msk [vmem:[%s9 + $0x38] sm:$0xff] %vm85, %v2893
  %2910 = vst.msk [vmem:[%s9 + $0x40] sm:$0xff] %vm85, %v2894
  %2911 = vst.msk [vmem:[%s9 + $0x48] sm:$0xff] %vm85, %v2895
  %2912 = vst.msk [vmem:[%s9 + $0x50] sm:$0xff] %vm85, %v2896
  %2913 = vst.msk [vmem:[%s9 + $0x58] sm:$0xff] %vm85, %v2897
  %2914 = vst.msk [vmem:[%s9 + $0x60] sm:$0xff] %vm85, %v2898
  %2915 = vst.msk [vmem:[%s9 + $0x68] sm:$0xff] %vm85, %v2899
  %2916 = vst.msk [vmem:[%s9 + $0x70] sm:$0xff] %vm85, %v2900
  %2917 = vst.msk [vmem:[%s9 + $0x78] sm:$0xff] %vm85, %v2901
  // Predicated region
  $region38: #{down_forward.1} parent=0 // pred_check
    _
  $region39: #{down_forward.1} parent=0 // pred_check_branch
    %2919 = sbr.rel (0) target = $region41
  $region40: #{down_forward.1} parent=0 // pred_region
    _
  $region41: #{down_forward.1} parent=0 // pred_fallthru
    _
  // Predicated region
  $region42: #{down_forward.1} parent=0 // pred_check
    _
  $region43: #{down_forward.1} parent=0 // pred_check_branch
    %2921 = sbr.rel (0) target = $region45
  $region44: #{down_forward.1} parent=0 // pred_region
    _
  $region45: #{down_forward.1} parent=0 // pred_fallthru
    _

</llo_original>
